<compile_context>
chip_gen: v7x
topology: tpu7x:2x2x1
jax: 0.10.0
libtpu: 0.0.40
codegen_flags: <defaults>
</compile_context>

<pallas_src>
import numpy as np
import jax
import jax.numpy as jnp
from jax.experimental import pallas as pl
from jax.experimental.pallas import tpu as pltpu


# ------------------------------ Pallas kernel -------------------------------

def upsample_layer_kernel(x_ref, w1_ref, b1_ref, w2_ref, b2_ref,
                          uhbd_ref, uwt_ref, o_ref):
    """Fused conv3x3+BN+ReLU -> conv3x3+BN+ReLU -> bilinear 2x, one batch element.

    x_ref:    (1, Cin, H, L)       input, each lane block co (width W) = same plane
    w1_ref:   (Cin*9, L)           conv1 rows: row ci*9+ky*3+kx, block co = s1*w1[co,ci,ky,kx]
    b1_ref:   (1, L)               folded BN1 bias, lane-tiled per output channel
    w2_ref:   (Cout*9, L)          conv2 rows: row r*9+ky*3+kx, block co = s2*w2[co,(co-r)%Cout,ky,kx]
    b2_ref:   (1, L)               folded BN2 bias, lane-tiled
    uhbd_ref: (Cout*2H, Cout*H)    block-diagonal row-interpolation matrix
    uwt_ref:  (L, 2W)              UW^T in the first W rows, zeros below
    o_ref:    (1, Cout*2H, 2W)     output slab (NCHW rows = co*2H + r)
    """
    _, Cin, H, L = x_ref.shape
    Cout = w2_ref.shape[0] // 9
    W = L // Cout

    # Border-validity masks (per lane block / per row), built once per grid step.
    lane_in_blk = jax.lax.broadcasted_iota(jnp.int32, (H, L), 1) % W
    row_i = jax.lax.broadcasted_iota(jnp.int32, (H, L), 0)
    ok_wm1 = lane_in_blk > 0          # x[:, w-1] exists
    ok_wp1 = lane_in_blk < W - 1      # x[:, w+1] exists
    ok_hm1 = row_i > 0                # x[h-1, :] exists
    ok_hp1 = row_i < H - 1            # x[h+1, :] exists

    def _roll(v, shift, axis):
        size = v.shape[axis]
        shift = shift % size          # Python ints: normalize negatives to [0, size)
        if shift == 0:
            return v
        return pltpu.roll(v, shift, axis=axis)

    def conv_taps(acc, base, w_ref, row0):
        """Accumulate 9 taps of one packed input plane into the packed accumulator."""
        # 3 lane-shift variants, computed once and reused across dy and all co.
        xm1 = jnp.where(ok_wm1, _roll(base, 1, 1), 0.0)    # x[:, w-1]
        xp1 = jnp.where(ok_wp1, _roll(base, -1, 1), 0.0)   # x[:, w+1]
        dxs = (xm1, base, xp1)                             # kx = 0, 1, 2
        for ky in range(3):
            for kx in range(3):
                v = dxs[kx]
                if ky == 0:                                # needs x[h-1, :]
                    v = jnp.where(ok_hm1, _roll(v, 1, 0), 0.0)
                elif ky == 2:                              # needs x[h+1, :]
                    v = jnp.where(ok_hp1, _roll(v, -1, 0), 0.0)
                acc = acc + v * w_ref[row0 + ky * 3 + kx, :]
        return acc

    # ---- conv1 (3x3, pad 1) + folded BN + ReLU ----------------------------------
    acc = jnp.zeros((H, L), jnp.float32)
    for ci in range(Cin):
        acc = conv_taps(acc, x_ref[0, ci], w1_ref, ci * 9)   # input already lane-tiled
    y1 = jnp.maximum(acc + b1_ref[...], 0.0)                 # (H, L) packed

    # ---- conv2 (3x3, pad 1) + folded BN + ReLU: rotation-roll over input channels
    acc = jnp.zeros((H, L), jnp.float32)
    for r in range(Cout):
        # block co of the rolled array holds input channel (co - r) % Cout
        acc = conv_taps(acc, _roll(y1, r * W, 1), w2_ref, r * 9)
    y2 = jnp.maximum(acc + b2_ref[...], 0.0)                 # (H, L) packed

    # ---- batched bilinear 2x upsample (align_corners=False) ----------------------
    # Ywide row block co: lanes [0, W) = channel co's plane (other lanes are other
    # channels and get killed by the zero rows of uwt_ref).  Sublane-aligned concat.
    ywide = jnp.concatenate([_roll(y2, -co * W, 1) for co in range(Cout)], axis=0)
    t = jnp.dot(uhbd_ref[...], ywide, preferred_element_type=jnp.float32)  # (Cout*2H, L)
    up = jnp.dot(t, uwt_ref[...], preferred_element_type=jnp.float32)      # (Cout*2H, 2W)
    o_ref[0] = up.astype(o_ref.dtype)                        # single slab store


# -------------------------------- wrapper ------------------------------------

def _upsample_matrix(n):
    """PyTorch bilinear, scale_factor=2, align_corners=False source mapping."""
    m = np.zeros((2 * n, n), dtype=np.float32)
    for o in range(2 * n):
        src = (o + 0.5) / 2.0 - 0.5
        src = max(src, 0.0)
        i0 = min(int(np.floor(src)), n - 1)
        i1 = min(i0 + 1, n - 1)
        lam = src - i0
        m[o, i0] += 1.0 - lam
        m[o, i1] += lam
    return m


def _tile_conv1_rows(w, W):
    """(Cout, Cin, 3, 3) -> (Cin*9, Cout*W): row ci*9+ky*3+kx, lanes co*W+w_ = w[co,ci,ky,kx]."""
    Cout, Cin = w.shape[0], w.shape[1]
    rows = jnp.transpose(w, (1, 2, 3, 0)).reshape(Cin * 9, Cout)
    return jnp.repeat(rows, W, axis=1)


def _tile_conv2_rows_rotated(w, W):
    """(Cout, Cout, 3, 3) -> (Cout*9, Cout*W): row r*9+ky*3+kx, lanes co*W+w_ =
    w[co, (co - r) % Cout, ky, kx]  (matches the in-kernel rotation-roll order)."""
    Cout = w.shape[0]
    blocks = []
    for r in range(Cout):
        sel = jnp.stack([w[co, (co - r) % Cout] for co in range(Cout)], axis=0)  # (Cout,3,3)
        rows = jnp.transpose(sel, (1, 2, 0)).reshape(9, Cout)
        blocks.append(jnp.repeat(rows, W, axis=1))
    return jnp.concatenate(blocks, axis=0)


def upsample_layer_forward(x_nchw, params):
    """Matches UpSampleLayer.forward: x (N, Cin, H, W) -> (N, Cout, 2H, 2W)."""
    N, Cin, H, W = x_nchw.shape
    Cout = params['scale1'].shape[0]
    L = Cout * W

    # Fold the BN scale into the conv weights; keep the folded bias as lane-tiled rows.
    w1_eff = params['w1'] * params['scale1'][:, None, None, None]
    w2_eff = params['w2'] * params['scale2'][:, None, None, None]
    w1_rows = _tile_conv1_rows(w1_eff, W)                        # (Cin*9, L)
    w2_rows = _tile_conv2_rows_rotated(w2_eff, W)                # (Cout*9, L)
    b1_row = jnp.repeat(params['bias1'], W)[None, :]             # (1, L)
    b2_row = jnp.repeat(params['bias2'], W)[None, :]             # (1, L)

    # Interpolation matrices: block-diagonal rows, zero-padded columns.
    uh = _upsample_matrix(H)                                     # (2H, H)
    uh_bd = jnp.asarray(np.kron(np.eye(Cout, dtype=np.float32), uh))   # (Cout*2H, Cout*H)
    uw = _upsample_matrix(W)                                     # (2W, W)
    uwt_wide = np.zeros((L, 2 * W), np.float32)
    uwt_wide[:W, :] = uw.T
    uwt_wide = jnp.asarray(uwt_wide)                             # (L, 2W)

    # Pre-tile the input along lanes so each W-block of the last dim is the same
    # plane (layout plumbing in the wrapper; removes all in-kernel lane concats).
    x_tiled = jnp.tile(x_nchw, (1, 1, 1, Cout))                  # (N, Cin, H, L)

    out2d = pl.pallas_call(
        upsample_layer_kernel,
        out_shape=jax.ShapeDtypeStruct((N, Cout * 2 * H, 2 * W), jnp.float32),
        grid=(N,),
        in_specs=[
            pl.BlockSpec((1, Cin, H, L), lambda n: (n, 0, 0, 0)),            # x (tiled)
            pl.BlockSpec((Cin * 9, L), lambda n: (0, 0)),                    # conv1 rows
            pl.BlockSpec((1, L), lambda n: (0, 0)),                          # bias1 row
            pl.BlockSpec((Cout * 9, L), lambda n: (0, 0)),                   # conv2 rows
            pl.BlockSpec((1, L), lambda n: (0, 0)),                          # bias2 row
            pl.BlockSpec((Cout * 2 * H, Cout * H), lambda n: (0, 0)),        # UH block-diag
            pl.BlockSpec((L, 2 * W), lambda n: (0, 0)),                      # UW^T (padded)
        ],
        out_specs=pl.BlockSpec((1, Cout * 2 * H, 2 * W), lambda n: (n, 0, 0)),
        compiler_params=pltpu.CompilerParams(
            dimension_semantics=("parallel",)),   # v7x: one batch element per TensorCore
    )(x_tiled, w1_rows, b1_row, w2_rows, b2_row, uh_bd, uwt_wide)

    # Free row-major split (co*2H + r) -> (co, r): gives NCHW without a transpose.
    return out2d.reshape(N, Cout, 2 * H, 2 * W)


def init_params(key, in_ch, out_ch):
    """Deterministic parameters. BN is folded in inference mode
    (running_mean=0, running_var=1, eps=1e-5)."""
    eps = 1e-5
    ks = jax.random.split(key, 8)
    p = {}
    for i, (ci, co) in enumerate([(in_ch, out_ch), (out_ch, out_ch)], start=1):
        k0, k1, k2, k3 = ks[4 * (i - 1)], ks[4 * (i - 1) + 1], ks[4 * (i - 1) + 2], ks[4 * (i - 1) + 3]
        w = jax.random.normal(k0, (co, ci, 3, 3), jnp.float32) * 0.1   # OIHW (PyTorch)
        b = jax.random.normal(k1, (co,), jnp.float32) * 0.05
        gamma = 1.0 + 0.1 * jax.random.normal(k2, (co,), jnp.float32)
        beta = 0.05 * jax.random.normal(k3, (co,), jnp.float32)
        running_mean = jnp.zeros((co,), jnp.float32)
        running_var = jnp.ones((co,), jnp.float32)
        scale = gamma / jnp.sqrt(running_var + eps)
        bias = (b - running_mean) * scale + beta
        p[f'w{i}'] = w
        p[f'scale{i}'] = scale
        p[f'bias{i}'] = bias
    return p


# ------------------------------- reference -----------------------------------

def _reference_forward(x_nchw, params):
    """Plain-JAX reference (lax conv + interpolation matmuls), all in NCHW."""
    y = x_nchw
    for i in (1, 2):
        y = jax.lax.conv_general_dilated(
            y, params[f'w{i}'], window_strides=(1, 1), padding='SAME',
            dimension_numbers=('NCHW', 'OIHW', 'NCHW'),
            precision=jax.lax.Precision.HIGHEST)
        y = y * params[f'scale{i}'][None, :, None, None] \
            + params[f'bias{i}'][None, :, None, None]
        y = jnp.maximum(y, 0.0)
    _, _, H, W = y.shape
    uh = jnp.asarray(_upsample_matrix(H))
    uw = jnp.asarray(_upsample_matrix(W))
    t = jnp.einsum('uh,nchw->ncuw', uh, y, precision=jax.lax.Precision.HIGHEST)
    return jnp.einsum('ncuw,vw->ncuv', t, uw, precision=jax.lax.Precision.HIGHEST)


if __name__ == "__main__":
    key = jax.random.PRNGKey(0)
    k_x, k_p = jax.random.split(key)

    N, in_ch, out_ch, H, W = 2, 4, 8, 16, 16
    x = jax.random.normal(k_x, (N, in_ch, H, W), jnp.float32)
    params = init_params(k_p, in_ch, out_ch)

    out = jax.block_until_ready(upsample_layer_forward(x, params))
    assert out.shape == (N, out_ch, 2 * H, 2 * W), out.shape

    ref = jax.block_until_ready(_reference_forward(x, params))
    # Tolerance sized for f32 accumulation-order / MXU pass differences vs the
    # HIGHEST-precision reference; real layout/shift/weight-mapping bugs would show
    # up at O(0.1).
    np.testing.assert_allclose(np.asarray(out), np.asarray(ref),
                               rtol=5e-4, atol=5e-4)
    print("KERNEL_OK")
</pallas_src>

<mosaic_0001>
module attributes {stable_mosaic.version = 11 : i64} {
  func.func @upsample_layer_kernel(%arg0: i32, %arg1: memref<1x4x16x128xf32, #tpu.memory_space<vmem>>, %arg2: memref<36x128xf32, #tpu.memory_space<vmem>>, %arg3: memref<1x128xf32, #tpu.memory_space<vmem>>, %arg4: memref<72x128xf32, #tpu.memory_space<vmem>>, %arg5: memref<1x128xf32, #tpu.memory_space<vmem>>, %arg6: memref<256x128xf32, #tpu.memory_space<vmem>>, %arg7: memref<128x32xf32, #tpu.memory_space<vmem>>, %arg8: memref<1x256x32xf32, #tpu.memory_space<vmem>>) attributes {dimension_semantics = [#tpu.dimension_semantics<parallel>], iteration_bounds = array<i64: 2>, scalar_prefetch = 0 : i64, scratch_operands = 0 : i64, tpu.core_type = #tpu.core_type<tc>, window_params = [{transform_indices = @transform_0, window_bounds = array<i64: 1, 4, 16, 128>}, {pipeline_mode = #tpu.pipeline_mode<synchronous>, transform_indices = @transform_1, window_bounds = array<i64: 36, 128>}, {pipeline_mode = #tpu.pipeline_mode<synchronous>, transform_indices = @transform_2, window_bounds = array<i64: 1, 128>}, {pipeline_mode = #tpu.pipeline_mode<synchronous>, transform_indices = @transform_3, window_bounds = array<i64: 72, 128>}, {pipeline_mode = #tpu.pipeline_mode<synchronous>, transform_indices = @transform_4, window_bounds = array<i64: 1, 128>}, {pipeline_mode = #tpu.pipeline_mode<synchronous>, transform_indices = @transform_5, window_bounds = array<i64: 256, 128>}, {pipeline_mode = #tpu.pipeline_mode<synchronous>, transform_indices = @transform_6, window_bounds = array<i64: 128, 32>}, {transform_indices = @transform_7, window_bounds = array<i64: 1, 256, 32>}]} {
    %0 = tpu.iota {dimensions = array<i32: 1>} : vector<16x128xi32>
    %c16_i32 = arith.constant 16 : i32
    %c0_i32 = arith.constant 0 : i32
    %1 = arith.cmpi eq, %c16_i32, %c0_i32 : i32
    %c1_i32 = arith.constant 1 : i32
    %2 = arith.select %1, %c1_i32, %c16_i32 : i32
    %3 = vector.broadcast %2 : i32 to vector<16x128xi32>
    %4 = arith.remsi %0, %3 : vector<16x128xi32>
    %c0_i32_0 = arith.constant 0 : i32
    %5 = vector.broadcast %c0_i32_0 : i32 to vector<16x128xi32>
    %6 = arith.cmpi ne, %4, %5 : vector<16x128xi32>
    %c0_i32_1 = arith.constant 0 : i32
    %7 = vector.broadcast %c0_i32_1 : i32 to vector<16x128xi32>
    %8 = arith.cmpi slt, %4, %7 : vector<16x128xi32>
    %c0_i32_2 = arith.constant 0 : i32
    %9 = arith.cmpi slt, %2, %c0_i32_2 : i32
    %10 = vector.broadcast %9 : i1 to vector<16x128xi1>
    %11 = vector.broadcast %10 : vector<16x128xi1> to vector<16x128xi1>
    %12 = arith.xori %8, %11 : vector<16x128xi1>
    %13 = arith.andi %12, %6 : vector<16x128xi1>
    %14 = vector.broadcast %2 : i32 to vector<16x128xi32>
    %15 = arith.addi %4, %14 : vector<16x128xi32>
    %16 = arith.select %13, %15, %4 : vector<16x128xi1>, vector<16x128xi32>
    %17 = tpu.iota {dimensions = array<i32: 0>} : vector<16x128xi32>
    %c0_i32_3 = arith.constant 0 : i32
    %18 = vector.broadcast %c0_i32_3 : i32 to vector<16x128xi32>
    %19 = arith.cmpi sgt, %16, %18 : vector<16x128xi32>
    %c15_i32 = arith.constant 15 : i32
    %20 = vector.broadcast %c15_i32 : i32 to vector<16x128xi32>
    %21 = arith.cmpi slt, %16, %20 : vector<16x128xi32>
    %c0_i32_4 = arith.constant 0 : i32
    %22 = vector.broadcast %c0_i32_4 : i32 to vector<16x128xi32>
    %23 = arith.cmpi sgt, %17, %22 : vector<16x128xi32>
    %c15_i32_5 = arith.constant 15 : i32
    %24 = vector.broadcast %c15_i32_5 : i32 to vector<16x128xi32>
    %25 = arith.cmpi slt, %17, %24 : vector<16x128xi32>
    %cst = arith.constant 0.000000e+00 : f32
    %26 = vector.broadcast %cst : f32 to vector<16x128xf32>
    %c0 = arith.constant 0 : index
    %c0_6 = arith.constant 0 : index
    %c0_7 = arith.constant 0 : index
    %c0_8 = arith.constant 0 : index
    %27 = vector.load %arg1[%c0, %c0_6, %c0_7, %c0_8] : memref<1x4x16x128xf32, #tpu.memory_space<vmem>>, vector<1x1x16x128xf32>
    %28 = vector.shape_cast %27 : vector<1x1x16x128xf32> to vector<16x128xf32>
    %c1_i32_9 = arith.constant 1 : i32
    %29 = tpu.dynamic_rotate %28 by %c1_i32_9 dim 1 : vector<16x128xf32>, i32 -> vector<16x128xf32>
    %cst_10 = arith.constant 0.000000e+00 : f32
    %30 = vector.broadcast %cst_10 : f32 to vector<16x128xf32>
    %31 = arith.select %19, %29, %30 : vector<16x128xi1>, vector<16x128xf32>
    %c127_i32 = arith.constant 127 : i32
    %32 = tpu.dynamic_rotate %28 by %c127_i32 dim 1 : vector<16x128xf32>, i32 -> vector<16x128xf32>
    %cst_11 = arith.constant 0.000000e+00 : f32
    %33 = vector.broadcast %cst_11 : f32 to vector<16x128xf32>
    %34 = arith.select %21, %32, %33 : vector<16x128xi1>, vector<16x128xf32>
    %c1_i32_12 = arith.constant 1 : i32
    %35 = tpu.dynamic_rotate %31 by %c1_i32_12 dim 0 : vector<16x128xf32>, i32 -> vector<16x128xf32>
    %cst_13 = arith.constant 0.000000e+00 : f32
    %36 = vector.broadcast %cst_13 : f32 to vector<16x128xf32>
    %37 = arith.select %23, %35, %36 : vector<16x128xi1>, vector<16x128xf32>
    %c0_14 = arith.constant 0 : index
    %c0_15 = arith.constant 0 : index
    %38 = vector.load %arg2[%c0_14, %c0_15] : memref<36x128xf32, #tpu.memory_space<vmem>>, vector<1x128xf32>
    %39 = vector.shape_cast %38 : vector<1x128xf32> to vector<128xf32>
    %40 = vector.shape_cast %39 : vector<128xf32> to vector<1x128xf32>
    %41 = vector.broadcast %40 : vector<1x128xf32> to vector<16x128xf32>
    %42 = arith.mulf %37, %41 : vector<16x128xf32>
    %43 = arith.addf %26, %42 : vector<16x128xf32>
    %c1_i32_16 = arith.constant 1 : i32
    %44 = tpu.dynamic_rotate %28 by %c1_i32_16 dim 0 : vector<16x128xf32>, i32 -> vector<16x128xf32>
    %cst_17 = arith.constant 0.000000e+00 : f32
    %45 = vector.broadcast %cst_17 : f32 to vector<16x128xf32>
    %46 = arith.select %23, %44, %45 : vector<16x128xi1>, vector<16x128xf32>
    %c1 = arith.constant 1 : index
    %c0_18 = arith.constant 0 : index
    %47 = vector.load %arg2[%c1, %c0_18] : memref<36x128xf32, #tpu.memory_space<vmem>>, vector<1x128xf32>
    %48 = vector.shape_cast %47 : vector<1x128xf32> to vector<128xf32>
    %49 = vector.shape_cast %48 : vector<128xf32> to vector<1x128xf32>
    %50 = vector.broadcast %49 : vector<1x128xf32> to vector<16x128xf32>
    %51 = arith.mulf %46, %50 : vector<16x128xf32>
    %52 = arith.addf %43, %51 : vector<16x128xf32>
    %c1_i32_19 = arith.constant 1 : i32
    %53 = tpu.dynamic_rotate %34 by %c1_i32_19 dim 0 : vector<16x128xf32>, i32 -> vector<16x128xf32>
    %cst_20 = arith.constant 0.000000e+00 : f32
    %54 = vector.broadcast %cst_20 : f32 to vector<16x128xf32>
    %55 = arith.select %23, %53, %54 : vector<16x128xi1>, vector<16x128xf32>
    %c2 = arith.constant 2 : index
    %c0_21 = arith.constant 0 : index
    %56 = vector.load %arg2[%c2, %c0_21] : memref<36x128xf32, #tpu.memory_space<vmem>>, vector<1x128xf32>
    %57 = vector.shape_cast %56 : vector<1x128xf32> to vector<128xf32>
    %58 = vector.shape_cast %57 : vector<128xf32> to vector<1x128xf32>
    %59 = vector.broadcast %58 : vector<1x128xf32> to vector<16x128xf32>
    %60 = arith.mulf %55, %59 : vector<16x128xf32>
    %61 = arith.addf %52, %60 : vector<16x128xf32>
    %c3 = arith.constant 3 : index
    %c0_22 = arith.constant 0 : index
    %62 = vector.load %arg2[%c3, %c0_22] : memref<36x128xf32, #tpu.memory_space<vmem>>, vector<1x128xf32>
    %63 = vector.shape_cast %62 : vector<1x128xf32> to vector<128xf32>
    %64 = vector.shape_cast %63 : vector<128xf32> to vector<1x128xf32>
    %65 = vector.broadcast %64 : vector<1x128xf32> to vector<16x128xf32>
    %66 = arith.mulf %31, %65 : vector<16x128xf32>
    %67 = arith.addf %61, %66 : vector<16x128xf32>
    %c4 = arith.constant 4 : index
    %c0_23 = arith.constant 0 : index
    %68 = vector.load %arg2[%c4, %c0_23] : memref<36x128xf32, #tpu.memory_space<vmem>>, vector<1x128xf32>
    %69 = vector.shape_cast %68 : vector<1x128xf32> to vector<128xf32>
    %70 = vector.shape_cast %69 : vector<128xf32> to vector<1x128xf32>
    %71 = vector.broadcast %70 : vector<1x128xf32> to vector<16x128xf32>
    %72 = arith.mulf %28, %71 : vector<16x128xf32>
    %73 = arith.addf %67, %72 : vector<16x128xf32>
    %c5 = arith.constant 5 : index
    %c0_24 = arith.constant 0 : index
    %74 = vector.load %arg2[%c5, %c0_24] : memref<36x128xf32, #tpu.memory_space<vmem>>, vector<1x128xf32>
    %75 = vector.shape_cast %74 : vector<1x128xf32> to vector<128xf32>
    %76 = vector.shape_cast %75 : vector<128xf32> to vector<1x128xf32>
    %77 = vector.broadcast %76 : vector<1x128xf32> to vector<16x128xf32>
    %78 = arith.mulf %34, %77 : vector<16x128xf32>
    %79 = arith.addf %73, %78 : vector<16x128xf32>
    %c15_i32_25 = arith.constant 15 : i32
    %80 = tpu.dynamic_rotate %31 by %c15_i32_25 dim 0 : vector<16x128xf32>, i32 -> vector<16x128xf32>
    %cst_26 = arith.constant 0.000000e+00 : f32
    %81 = vector.broadcast %cst_26 : f32 to vector<16x128xf32>
    %82 = arith.select %25, %80, %81 : vector<16x128xi1>, vector<16x128xf32>
    %c6 = arith.constant 6 : index
    %c0_27 = arith.constant 0 : index
    %83 = vector.load %arg2[%c6, %c0_27] : memref<36x128xf32, #tpu.memory_space<vmem>>, vector<1x128xf32>
    %84 = vector.shape_cast %83 : vector<1x128xf32> to vector<128xf32>
    %85 = vector.shape_cast %84 : vector<128xf32> to vector<1x128xf32>
    %86 = vector.broadcast %85 : vector<1x128xf32> to vector<16x128xf32>
    %87 = arith.mulf %82, %86 : vector<16x128xf32>
    %88 = arith.addf %79, %87 : vector<16x128xf32>
    %c15_i32_28 = arith.constant 15 : i32
    %89 = tpu.dynamic_rotate %28 by %c15_i32_28 dim 0 : vector<16x128xf32>, i32 -> vector<16x128xf32>
    %cst_29 = arith.constant 0.000000e+00 : f32
    %90 = vector.broadcast %cst_29 : f32 to vector<16x128xf32>
    %91 = arith.select %25, %89, %90 : vector<16x128xi1>, vector<16x128xf32>
    %c7 = arith.constant 7 : index
    %c0_30 = arith.constant 0 : index
    %92 = vector.load %arg2[%c7, %c0_30] : memref<36x128xf32, #tpu.memory_space<vmem>>, vector<1x128xf32>
    %93 = vector.shape_cast %92 : vector<1x128xf32> to vector<128xf32>
    %94 = vector.shape_cast %93 : vector<128xf32> to vector<1x128xf32>
    %95 = vector.broadcast %94 : vector<1x128xf32> to vector<16x128xf32>
    %96 = arith.mulf %91, %95 : vector<16x128xf32>
    %97 = arith.addf %88, %96 : vector<16x128xf32>
    %c15_i32_31 = arith.constant 15 : i32
    %98 = tpu.dynamic_rotate %34 by %c15_i32_31 dim 0 : vector<16x128xf32>, i32 -> vector<16x128xf32>
    %cst_32 = arith.constant 0.000000e+00 : f32
    %99 = vector.broadcast %cst_32 : f32 to vector<16x128xf32>
    %100 = arith.select %25, %98, %99 : vector<16x128xi1>, vector<16x128xf32>
    %c8 = arith.constant 8 : index
    %c0_33 = arith.constant 0 : index
    %101 = vector.load %arg2[%c8, %c0_33] : memref<36x128xf32, #tpu.memory_space<vmem>>, vector<1x128xf32>
    %102 = vector.shape_cast %101 : vector<1x128xf32> to vector<128xf32>
    %103 = vector.shape_cast %102 : vector<128xf32> to vector<1x128xf32>
    %104 = vector.broadcast %103 : vector<1x128xf32> to vector<16x128xf32>
    %105 = arith.mulf %100, %104 : vector<16x128xf32>
    %106 = arith.addf %97, %105 : vector<16x128xf32>
    %c0_34 = arith.constant 0 : index
    %c1_35 = arith.constant 1 : index
    %c0_36 = arith.constant 0 : index
    %c0_37 = arith.constant 0 : index
    %107 = vector.load %arg1[%c0_34, %c1_35, %c0_36, %c0_37] : memref<1x4x16x128xf32, #tpu.memory_space<vmem>>, vector<1x1x16x128xf32>
    %108 = vector.shape_cast %107 : vector<1x1x16x128xf32> to vector<16x128xf32>
    %c1_i32_38 = arith.constant 1 : i32
    %109 = tpu.dynamic_rotate %108 by %c1_i32_38 dim 1 : vector<16x128xf32>, i32 -> vector<16x128xf32>
    %cst_39 = arith.constant 0.000000e+00 : f32
    %110 = vector.broadcast %cst_39 : f32 to vector<16x128xf32>
    %111 = arith.select %19, %109, %110 : vector<16x128xi1>, vector<16x128xf32>
    %c127_i32_40 = arith.constant 127 : i32
    %112 = tpu.dynamic_rotate %108 by %c127_i32_40 dim 1 : vector<16x128xf32>, i32 -> vector<16x128xf32>
    %cst_41 = arith.constant 0.000000e+00 : f32
    %113 = vector.broadcast %cst_41 : f32 to vector<16x128xf32>
    %114 = arith.select %21, %112, %113 : vector<16x128xi1>, vector<16x128xf32>
    %c1_i32_42 = arith.constant 1 : i32
    %115 = tpu.dynamic_rotate %111 by %c1_i32_42 dim 0 : vector<16x128xf32>, i32 -> vector<16x128xf32>
    %cst_43 = arith.constant 0.000000e+00 : f32
    %116 = vector.broadcast %cst_43 : f32 to vector<16x128xf32>
    %117 = arith.select %23, %115, %116 : vector<16x128xi1>, vector<16x128xf32>
    %c9 = arith.constant 9 : index
    %c0_44 = arith.constant 0 : index
    %118 = vector.load %arg2[%c9, %c0_44] : memref<36x128xf32, #tpu.memory_space<vmem>>, vector<1x128xf32>
    %119 = vector.shape_cast %118 : vector<1x128xf32> to vector<128xf32>
    %120 = vector.shape_cast %119 : vector<128xf32> to vector<1x128xf32>
    %121 = vector.broadcast %120 : vector<1x128xf32> to vector<16x128xf32>
    %122 = arith.mulf %117, %121 : vector<16x128xf32>
    %123 = arith.addf %106, %122 : vector<16x128xf32>
    %c1_i32_45 = arith.constant 1 : i32
    %124 = tpu.dynamic_rotate %108 by %c1_i32_45 dim 0 : vector<16x128xf32>, i32 -> vector<16x128xf32>
    %cst_46 = arith.constant 0.000000e+00 : f32
    %125 = vector.broadcast %cst_46 : f32 to vector<16x128xf32>
    %126 = arith.select %23, %124, %125 : vector<16x128xi1>, vector<16x128xf32>
    %c10 = arith.constant 10 : index
    %c0_47 = arith.constant 0 : index
    %127 = vector.load %arg2[%c10, %c0_47] : memref<36x128xf32, #tpu.memory_space<vmem>>, vector<1x128xf32>
    %128 = vector.shape_cast %127 : vector<1x128xf32> to vector<128xf32>
    %129 = vector.shape_cast %128 : vector<128xf32> to vector<1x128xf32>
    %130 = vector.broadcast %129 : vector<1x128xf32> to vector<16x128xf32>
    %131 = arith.mulf %126, %130 : vector<16x128xf32>
    %132 = arith.addf %123, %131 : vector<16x128xf32>
    %c1_i32_48 = arith.constant 1 : i32
    %133 = tpu.dynamic_rotate %114 by %c1_i32_48 dim 0 : vector<16x128xf32>, i32 -> vector<16x128xf32>
    %cst_49 = arith.constant 0.000000e+00 : f32
    %134 = vector.broadcast %cst_49 : f32 to vector<16x128xf32>
    %135 = arith.select %23, %133, %134 : vector<16x128xi1>, vector<16x128xf32>
    %c11 = arith.constant 11 : index
    %c0_50 = arith.constant 0 : index
    %136 = vector.load %arg2[%c11, %c0_50] : memref<36x128xf32, #tpu.memory_space<vmem>>, vector<1x128xf32>
    %137 = vector.shape_cast %136 : vector<1x128xf32> to vector<128xf32>
    %138 = vector.shape_cast %137 : vector<128xf32> to vector<1x128xf32>
    %139 = vector.broadcast %138 : vector<1x128xf32> to vector<16x128xf32>
    %140 = arith.mulf %135, %139 : vector<16x128xf32>
    %141 = arith.addf %132, %140 : vector<16x128xf32>
    %c12 = arith.constant 12 : index
    %c0_51 = arith.constant 0 : index
    %142 = vector.load %arg2[%c12, %c0_51] : memref<36x128xf32, #tpu.memory_space<vmem>>, vector<1x128xf32>
    %143 = vector.shape_cast %142 : vector<1x128xf32> to vector<128xf32>
    %144 = vector.shape_cast %143 : vector<128xf32> to vector<1x128xf32>
    %145 = vector.broadcast %144 : vector<1x128xf32> to vector<16x128xf32>
    %146 = arith.mulf %111, %145 : vector<16x128xf32>
    %147 = arith.addf %141, %146 : vector<16x128xf32>
    %c13 = arith.constant 13 : index
    %c0_52 = arith.constant 0 : index
    %148 = vector.load %arg2[%c13, %c0_52] : memref<36x128xf32, #tpu.memory_space<vmem>>, vector<1x128xf32>
    %149 = vector.shape_cast %148 : vector<1x128xf32> to vector<128xf32>
    %150 = vector.shape_cast %149 : vector<128xf32> to vector<1x128xf32>
    %151 = vector.broadcast %150 : vector<1x128xf32> to vector<16x128xf32>
    %152 = arith.mulf %108, %151 : vector<16x128xf32>
    %153 = arith.addf %147, %152 : vector<16x128xf32>
    %c14 = arith.constant 14 : index
    %c0_53 = arith.constant 0 : index
    %154 = vector.load %arg2[%c14, %c0_53] : memref<36x128xf32, #tpu.memory_space<vmem>>, vector<1x128xf32>
    %155 = vector.shape_cast %154 : vector<1x128xf32> to vector<128xf32>
    %156 = vector.shape_cast %155 : vector<128xf32> to vector<1x128xf32>
    %157 = vector.broadcast %156 : vector<1x128xf32> to vector<16x128xf32>
    %158 = arith.mulf %114, %157 : vector<16x128xf32>
    %159 = arith.addf %153, %158 : vector<16x128xf32>
    %c15_i32_54 = arith.constant 15 : i32
    %160 = tpu.dynamic_rotate %111 by %c15_i32_54 dim 0 : vector<16x128xf32>, i32 -> vector<16x128xf32>
    %cst_55 = arith.constant 0.000000e+00 : f32
    %161 = vector.broadcast %cst_55 : f32 to vector<16x128xf32>
    %162 = arith.select %25, %160, %161 : vector<16x128xi1>, vector<16x128xf32>
    %c15 = arith.constant 15 : index
    %c0_56 = arith.constant 0 : index
    %163 = vector.load %arg2[%c15, %c0_56] : memref<36x128xf32, #tpu.memory_space<vmem>>, vector<1x128xf32>
    %164 = vector.shape_cast %163 : vector<1x128xf32> to vector<128xf32>
    %165 = vector.shape_cast %164 : vector<128xf32> to vector<1x128xf32>
    %166 = vector.broadcast %165 : vector<1x128xf32> to vector<16x128xf32>
    %167 = arith.mulf %162, %166 : vector<16x128xf32>
    %168 = arith.addf %159, %167 : vector<16x128xf32>
    %c15_i32_57 = arith.constant 15 : i32
    %169 = tpu.dynamic_rotate %108 by %c15_i32_57 dim 0 : vector<16x128xf32>, i32 -> vector<16x128xf32>
    %cst_58 = arith.constant 0.000000e+00 : f32
    %170 = vector.broadcast %cst_58 : f32 to vector<16x128xf32>
    %171 = arith.select %25, %169, %170 : vector<16x128xi1>, vector<16x128xf32>
    %c16 = arith.constant 16 : index
    %c0_59 = arith.constant 0 : index
    %172 = vector.load %arg2[%c16, %c0_59] : memref<36x128xf32, #tpu.memory_space<vmem>>, vector<1x128xf32>
    %173 = vector.shape_cast %172 : vector<1x128xf32> to vector<128xf32>
    %174 = vector.shape_cast %173 : vector<128xf32> to vector<1x128xf32>
    %175 = vector.broadcast %174 : vector<1x128xf32> to vector<16x128xf32>
    %176 = arith.mulf %171, %175 : vector<16x128xf32>
    %177 = arith.addf %168, %176 : vector<16x128xf32>
    %c15_i32_60 = arith.constant 15 : i32
    %178 = tpu.dynamic_rotate %114 by %c15_i32_60 dim 0 : vector<16x128xf32>, i32 -> vector<16x128xf32>
    %cst_61 = arith.constant 0.000000e+00 : f32
    %179 = vector.broadcast %cst_61 : f32 to vector<16x128xf32>
    %180 = arith.select %25, %178, %179 : vector<16x128xi1>, vector<16x128xf32>
    %c17 = arith.constant 17 : index
    %c0_62 = arith.constant 0 : index
    %181 = vector.load %arg2[%c17, %c0_62] : memref<36x128xf32, #tpu.memory_space<vmem>>, vector<1x128xf32>
    %182 = vector.shape_cast %181 : vector<1x128xf32> to vector<128xf32>
    %183 = vector.shape_cast %182 : vector<128xf32> to vector<1x128xf32>
    %184 = vector.broadcast %183 : vector<1x128xf32> to vector<16x128xf32>
    %185 = arith.mulf %180, %184 : vector<16x128xf32>
    %186 = arith.addf %177, %185 : vector<16x128xf32>
    %c0_63 = arith.constant 0 : index
    %c2_64 = arith.constant 2 : index
    %c0_65 = arith.constant 0 : index
    %c0_66 = arith.constant 0 : index
    %187 = vector.load %arg1[%c0_63, %c2_64, %c0_65, %c0_66] : memref<1x4x16x128xf32, #tpu.memory_space<vmem>>, vector<1x1x16x128xf32>
    %188 = vector.shape_cast %187 : vector<1x1x16x128xf32> to vector<16x128xf32>
    %c1_i32_67 = arith.constant 1 : i32
    %189 = tpu.dynamic_rotate %188 by %c1_i32_67 dim 1 : vector<16x128xf32>, i32 -> vector<16x128xf32>
    %cst_68 = arith.constant 0.000000e+00 : f32
    %190 = vector.broadcast %cst_68 : f32 to vector<16x128xf32>
    %191 = arith.select %19, %189, %190 : vector<16x128xi1>, vector<16x128xf32>
    %c127_i32_69 = arith.constant 127 : i32
    %192 = tpu.dynamic_rotate %188 by %c127_i32_69 dim 1 : vector<16x128xf32>, i32 -> vector<16x128xf32>
    %cst_70 = arith.constant 0.000000e+00 : f32
    %193 = vector.broadcast %cst_70 : f32 to vector<16x128xf32>
    %194 = arith.select %21, %192, %193 : vector<16x128xi1>, vector<16x128xf32>
    %c1_i32_71 = arith.constant 1 : i32
    %195 = tpu.dynamic_rotate %191 by %c1_i32_71 dim 0 : vector<16x128xf32>, i32 -> vector<16x128xf32>
    %cst_72 = arith.constant 0.000000e+00 : f32
    %196 = vector.broadcast %cst_72 : f32 to vector<16x128xf32>
    %197 = arith.select %23, %195, %196 : vector<16x128xi1>, vector<16x128xf32>
    %c18 = arith.constant 18 : index
    %c0_73 = arith.constant 0 : index
    %198 = vector.load %arg2[%c18, %c0_73] : memref<36x128xf32, #tpu.memory_space<vmem>>, vector<1x128xf32>
    %199 = vector.shape_cast %198 : vector<1x128xf32> to vector<128xf32>
    %200 = vector.shape_cast %199 : vector<128xf32> to vector<1x128xf32>
    %201 = vector.broadcast %200 : vector<1x128xf32> to vector<16x128xf32>
    %202 = arith.mulf %197, %201 : vector<16x128xf32>
    %203 = arith.addf %186, %202 : vector<16x128xf32>
    %c1_i32_74 = arith.constant 1 : i32
    %204 = tpu.dynamic_rotate %188 by %c1_i32_74 dim 0 : vector<16x128xf32>, i32 -> vector<16x128xf32>
    %cst_75 = arith.constant 0.000000e+00 : f32
    %205 = vector.broadcast %cst_75 : f32 to vector<16x128xf32>
    %206 = arith.select %23, %204, %205 : vector<16x128xi1>, vector<16x128xf32>
    %c19 = arith.constant 19 : index
    %c0_76 = arith.constant 0 : index
    %207 = vector.load %arg2[%c19, %c0_76] : memref<36x128xf32, #tpu.memory_space<vmem>>, vector<1x128xf32>
    %208 = vector.shape_cast %207 : vector<1x128xf32> to vector<128xf32>
    %209 = vector.shape_cast %208 : vector<128xf32> to vector<1x128xf32>
    %210 = vector.broadcast %209 : vector<1x128xf32> to vector<16x128xf32>
    %211 = arith.mulf %206, %210 : vector<16x128xf32>
    %212 = arith.addf %203, %211 : vector<16x128xf32>
    %c1_i32_77 = arith.constant 1 : i32
    %213 = tpu.dynamic_rotate %194 by %c1_i32_77 dim 0 : vector<16x128xf32>, i32 -> vector<16x128xf32>
    %cst_78 = arith.constant 0.000000e+00 : f32
    %214 = vector.broadcast %cst_78 : f32 to vector<16x128xf32>
    %215 = arith.select %23, %213, %214 : vector<16x128xi1>, vector<16x128xf32>
    %c20 = arith.constant 20 : index
    %c0_79 = arith.constant 0 : index
    %216 = vector.load %arg2[%c20, %c0_79] : memref<36x128xf32, #tpu.memory_space<vmem>>, vector<1x128xf32>
    %217 = vector.shape_cast %216 : vector<1x128xf32> to vector<128xf32>
    %218 = vector.shape_cast %217 : vector<128xf32> to vector<1x128xf32>
    %219 = vector.broadcast %218 : vector<1x128xf32> to vector<16x128xf32>
    %220 = arith.mulf %215, %219 : vector<16x128xf32>
    %221 = arith.addf %212, %220 : vector<16x128xf32>
    %c21 = arith.constant 21 : index
    %c0_80 = arith.constant 0 : index
    %222 = vector.load %arg2[%c21, %c0_80] : memref<36x128xf32, #tpu.memory_space<vmem>>, vector<1x128xf32>
    %223 = vector.shape_cast %222 : vector<1x128xf32> to vector<128xf32>
    %224 = vector.shape_cast %223 : vector<128xf32> to vector<1x128xf32>
    %225 = vector.broadcast %224 : vector<1x128xf32> to vector<16x128xf32>
    %226 = arith.mulf %191, %225 : vector<16x128xf32>
    %227 = arith.addf %221, %226 : vector<16x128xf32>
    %c22 = arith.constant 22 : index
    %c0_81 = arith.constant 0 : index
    %228 = vector.load %arg2[%c22, %c0_81] : memref<36x128xf32, #tpu.memory_space<vmem>>, vector<1x128xf32>
    %229 = vector.shape_cast %228 : vector<1x128xf32> to vector<128xf32>
    %230 = vector.shape_cast %229 : vector<128xf32> to vector<1x128xf32>
    %231 = vector.broadcast %230 : vector<1x128xf32> to vector<16x128xf32>
    %232 = arith.mulf %188, %231 : vector<16x128xf32>
    %233 = arith.addf %227, %232 : vector<16x128xf32>
    %c23 = arith.constant 23 : index
    %c0_82 = arith.constant 0 : index
    %234 = vector.load %arg2[%c23, %c0_82] : memref<36x128xf32, #tpu.memory_space<vmem>>, vector<1x128xf32>
    %235 = vector.shape_cast %234 : vector<1x128xf32> to vector<128xf32>
    %236 = vector.shape_cast %235 : vector<128xf32> to vector<1x128xf32>
    %237 = vector.broadcast %236 : vector<1x128xf32> to vector<16x128xf32>
    %238 = arith.mulf %194, %237 : vector<16x128xf32>
    %239 = arith.addf %233, %238 : vector<16x128xf32>
    %c15_i32_83 = arith.constant 15 : i32
    %240 = tpu.dynamic_rotate %191 by %c15_i32_83 dim 0 : vector<16x128xf32>, i32 -> vector<16x128xf32>
    %cst_84 = arith.constant 0.000000e+00 : f32
    %241 = vector.broadcast %cst_84 : f32 to vector<16x128xf32>
    %242 = arith.select %25, %240, %241 : vector<16x128xi1>, vector<16x128xf32>
    %c24 = arith.constant 24 : index
    %c0_85 = arith.constant 0 : index
    %243 = vector.load %arg2[%c24, %c0_85] : memref<36x128xf32, #tpu.memory_space<vmem>>, vector<1x128xf32>
    %244 = vector.shape_cast %243 : vector<1x128xf32> to vector<128xf32>
    %245 = vector.shape_cast %244 : vector<128xf32> to vector<1x128xf32>
    %246 = vector.broadcast %245 : vector<1x128xf32> to vector<16x128xf32>
    %247 = arith.mulf %242, %246 : vector<16x128xf32>
    %248 = arith.addf %239, %247 : vector<16x128xf32>
    %c15_i32_86 = arith.constant 15 : i32
    %249 = tpu.dynamic_rotate %188 by %c15_i32_86 dim 0 : vector<16x128xf32>, i32 -> vector<16x128xf32>
    %cst_87 = arith.constant 0.000000e+00 : f32
    %250 = vector.broadcast %cst_87 : f32 to vector<16x128xf32>
    %251 = arith.select %25, %249, %250 : vector<16x128xi1>, vector<16x128xf32>
    %c25 = arith.constant 25 : index
    %c0_88 = arith.constant 0 : index
    %252 = vector.load %arg2[%c25, %c0_88] : memref<36x128xf32, #tpu.memory_space<vmem>>, vector<1x128xf32>
    %253 = vector.shape_cast %252 : vector<1x128xf32> to vector<128xf32>
    %254 = vector.shape_cast %253 : vector<128xf32> to vector<1x128xf32>
    %255 = vector.broadcast %254 : vector<1x128xf32> to vector<16x128xf32>
    %256 = arith.mulf %251, %255 : vector<16x128xf32>
    %257 = arith.addf %248, %256 : vector<16x128xf32>
    %c15_i32_89 = arith.constant 15 : i32
    %258 = tpu.dynamic_rotate %194 by %c15_i32_89 dim 0 : vector<16x128xf32>, i32 -> vector<16x128xf32>
    %cst_90 = arith.constant 0.000000e+00 : f32
    %259 = vector.broadcast %cst_90 : f32 to vector<16x128xf32>
    %260 = arith.select %25, %258, %259 : vector<16x128xi1>, vector<16x128xf32>
    %c26 = arith.constant 26 : index
    %c0_91 = arith.constant 0 : index
    %261 = vector.load %arg2[%c26, %c0_91] : memref<36x128xf32, #tpu.memory_space<vmem>>, vector<1x128xf32>
    %262 = vector.shape_cast %261 : vector<1x128xf32> to vector<128xf32>
    %263 = vector.shape_cast %262 : vector<128xf32> to vector<1x128xf32>
    %264 = vector.broadcast %263 : vector<1x128xf32> to vector<16x128xf32>
    %265 = arith.mulf %260, %264 : vector<16x128xf32>
    %266 = arith.addf %257, %265 : vector<16x128xf32>
    %c0_92 = arith.constant 0 : index
    %c3_93 = arith.constant 3 : index
    %c0_94 = arith.constant 0 : index
    %c0_95 = arith.constant 0 : index
    %267 = vector.load %arg1[%c0_92, %c3_93, %c0_94, %c0_95] : memref<1x4x16x128xf32, #tpu.memory_space<vmem>>, vector<1x1x16x128xf32>
    %268 = vector.shape_cast %267 : vector<1x1x16x128xf32> to vector<16x128xf32>
    %c1_i32_96 = arith.constant 1 : i32
    %269 = tpu.dynamic_rotate %268 by %c1_i32_96 dim 1 : vector<16x128xf32>, i32 -> vector<16x128xf32>
    %cst_97 = arith.constant 0.000000e+00 : f32
    %270 = vector.broadcast %cst_97 : f32 to vector<16x128xf32>
    %271 = arith.select %19, %269, %270 : vector<16x128xi1>, vector<16x128xf32>
    %c127_i32_98 = arith.constant 127 : i32
    %272 = tpu.dynamic_rotate %268 by %c127_i32_98 dim 1 : vector<16x128xf32>, i32 -> vector<16x128xf32>
    %cst_99 = arith.constant 0.000000e+00 : f32
    %273 = vector.broadcast %cst_99 : f32 to vector<16x128xf32>
    %274 = arith.select %21, %272, %273 : vector<16x128xi1>, vector<16x128xf32>
    %c1_i32_100 = arith.constant 1 : i32
    %275 = tpu.dynamic_rotate %271 by %c1_i32_100 dim 0 : vector<16x128xf32>, i32 -> vector<16x128xf32>
    %cst_101 = arith.constant 0.000000e+00 : f32
    %276 = vector.broadcast %cst_101 : f32 to vector<16x128xf32>
    %277 = arith.select %23, %275, %276 : vector<16x128xi1>, vector<16x128xf32>
    %c27 = arith.constant 27 : index
    %c0_102 = arith.constant 0 : index
    %278 = vector.load %arg2[%c27, %c0_102] : memref<36x128xf32, #tpu.memory_space<vmem>>, vector<1x128xf32>
    %279 = vector.shape_cast %278 : vector<1x128xf32> to vector<128xf32>
    %280 = vector.shape_cast %279 : vector<128xf32> to vector<1x128xf32>
    %281 = vector.broadcast %280 : vector<1x128xf32> to vector<16x128xf32>
    %282 = arith.mulf %277, %281 : vector<16x128xf32>
    %283 = arith.addf %266, %282 : vector<16x128xf32>
    %c1_i32_103 = arith.constant 1 : i32
    %284 = tpu.dynamic_rotate %268 by %c1_i32_103 dim 0 : vector<16x128xf32>, i32 -> vector<16x128xf32>
    %cst_104 = arith.constant 0.000000e+00 : f32
    %285 = vector.broadcast %cst_104 : f32 to vector<16x128xf32>
    %286 = arith.select %23, %284, %285 : vector<16x128xi1>, vector<16x128xf32>
    %c28 = arith.constant 28 : index
    %c0_105 = arith.constant 0 : index
    %287 = vector.load %arg2[%c28, %c0_105] : memref<36x128xf32, #tpu.memory_space<vmem>>, vector<1x128xf32>
    %288 = vector.shape_cast %287 : vector<1x128xf32> to vector<128xf32>
    %289 = vector.shape_cast %288 : vector<128xf32> to vector<1x128xf32>
    %290 = vector.broadcast %289 : vector<1x128xf32> to vector<16x128xf32>
    %291 = arith.mulf %286, %290 : vector<16x128xf32>
    %292 = arith.addf %283, %291 : vector<16x128xf32>
    %c1_i32_106 = arith.constant 1 : i32
    %293 = tpu.dynamic_rotate %274 by %c1_i32_106 dim 0 : vector<16x128xf32>, i32 -> vector<16x128xf32>
    %cst_107 = arith.constant 0.000000e+00 : f32
    %294 = vector.broadcast %cst_107 : f32 to vector<16x128xf32>
    %295 = arith.select %23, %293, %294 : vector<16x128xi1>, vector<16x128xf32>
    %c29 = arith.constant 29 : index
    %c0_108 = arith.constant 0 : index
    %296 = vector.load %arg2[%c29, %c0_108] : memref<36x128xf32, #tpu.memory_space<vmem>>, vector<1x128xf32>
    %297 = vector.shape_cast %296 : vector<1x128xf32> to vector<128xf32>
    %298 = vector.shape_cast %297 : vector<128xf32> to vector<1x128xf32>
    %299 = vector.broadcast %298 : vector<1x128xf32> to vector<16x128xf32>
    %300 = arith.mulf %295, %299 : vector<16x128xf32>
    %301 = arith.addf %292, %300 : vector<16x128xf32>
    %c30 = arith.constant 30 : index
    %c0_109 = arith.constant 0 : index
    %302 = vector.load %arg2[%c30, %c0_109] : memref<36x128xf32, #tpu.memory_space<vmem>>, vector<1x128xf32>
    %303 = vector.shape_cast %302 : vector<1x128xf32> to vector<128xf32>
    %304 = vector.shape_cast %303 : vector<128xf32> to vector<1x128xf32>
    %305 = vector.broadcast %304 : vector<1x128xf32> to vector<16x128xf32>
    %306 = arith.mulf %271, %305 : vector<16x128xf32>
    %307 = arith.addf %301, %306 : vector<16x128xf32>
    %c31 = arith.constant 31 : index
    %c0_110 = arith.constant 0 : index
    %308 = vector.load %arg2[%c31, %c0_110] : memref<36x128xf32, #tpu.memory_space<vmem>>, vector<1x128xf32>
    %309 = vector.shape_cast %308 : vector<1x128xf32> to vector<128xf32>
    %310 = vector.shape_cast %309 : vector<128xf32> to vector<1x128xf32>
    %311 = vector.broadcast %310 : vector<1x128xf32> to vector<16x128xf32>
    %312 = arith.mulf %268, %311 : vector<16x128xf32>
    %313 = arith.addf %307, %312 : vector<16x128xf32>
    %c32 = arith.constant 32 : index
    %c0_111 = arith.constant 0 : index
    %314 = vector.load %arg2[%c32, %c0_111] : memref<36x128xf32, #tpu.memory_space<vmem>>, vector<1x128xf32>
    %315 = vector.shape_cast %314 : vector<1x128xf32> to vector<128xf32>
    %316 = vector.shape_cast %315 : vector<128xf32> to vector<1x128xf32>
    %317 = vector.broadcast %316 : vector<1x128xf32> to vector<16x128xf32>
    %318 = arith.mulf %274, %317 : vector<16x128xf32>
    %319 = arith.addf %313, %318 : vector<16x128xf32>
    %c15_i32_112 = arith.constant 15 : i32
    %320 = tpu.dynamic_rotate %271 by %c15_i32_112 dim 0 : vector<16x128xf32>, i32 -> vector<16x128xf32>
    %cst_113 = arith.constant 0.000000e+00 : f32
    %321 = vector.broadcast %cst_113 : f32 to vector<16x128xf32>
    %322 = arith.select %25, %320, %321 : vector<16x128xi1>, vector<16x128xf32>
    %c33 = arith.constant 33 : index
    %c0_114 = arith.constant 0 : index
    %323 = vector.load %arg2[%c33, %c0_114] : memref<36x128xf32, #tpu.memory_space<vmem>>, vector<1x128xf32>
    %324 = vector.shape_cast %323 : vector<1x128xf32> to vector<128xf32>
    %325 = vector.shape_cast %324 : vector<128xf32> to vector<1x128xf32>
    %326 = vector.broadcast %325 : vector<1x128xf32> to vector<16x128xf32>
    %327 = arith.mulf %322, %326 : vector<16x128xf32>
    %328 = arith.addf %319, %327 : vector<16x128xf32>
    %c15_i32_115 = arith.constant 15 : i32
    %329 = tpu.dynamic_rotate %268 by %c15_i32_115 dim 0 : vector<16x128xf32>, i32 -> vector<16x128xf32>
    %cst_116 = arith.constant 0.000000e+00 : f32
    %330 = vector.broadcast %cst_116 : f32 to vector<16x128xf32>
    %331 = arith.select %25, %329, %330 : vector<16x128xi1>, vector<16x128xf32>
    %c34 = arith.constant 34 : index
    %c0_117 = arith.constant 0 : index
    %332 = vector.load %arg2[%c34, %c0_117] : memref<36x128xf32, #tpu.memory_space<vmem>>, vector<1x128xf32>
    %333 = vector.shape_cast %332 : vector<1x128xf32> to vector<128xf32>
    %334 = vector.shape_cast %333 : vector<128xf32> to vector<1x128xf32>
    %335 = vector.broadcast %334 : vector<1x128xf32> to vector<16x128xf32>
    %336 = arith.mulf %331, %335 : vector<16x128xf32>
    %337 = arith.addf %328, %336 : vector<16x128xf32>
    %c15_i32_118 = arith.constant 15 : i32
    %338 = tpu.dynamic_rotate %274 by %c15_i32_118 dim 0 : vector<16x128xf32>, i32 -> vector<16x128xf32>
    %cst_119 = arith.constant 0.000000e+00 : f32
    %339 = vector.broadcast %cst_119 : f32 to vector<16x128xf32>
    %340 = arith.select %25, %338, %339 : vector<16x128xi1>, vector<16x128xf32>
    %c35 = arith.constant 35 : index
    %c0_120 = arith.constant 0 : index
    %341 = vector.load %arg2[%c35, %c0_120] : memref<36x128xf32, #tpu.memory_space<vmem>>, vector<1x128xf32>
    %342 = vector.shape_cast %341 : vector<1x128xf32> to vector<128xf32>
    %343 = vector.shape_cast %342 : vector<128xf32> to vector<1x128xf32>
    %344 = vector.broadcast %343 : vector<1x128xf32> to vector<16x128xf32>
    %345 = arith.mulf %340, %344 : vector<16x128xf32>
    %346 = arith.addf %337, %345 : vector<16x128xf32>
    %c0_121 = arith.constant 0 : index
    %c0_122 = arith.constant 0 : index
    %347 = vector.load %arg3[%c0_121, %c0_122] : memref<1x128xf32, #tpu.memory_space<vmem>>, vector<1x128xf32>
    %348 = vector.broadcast %347 : vector<1x128xf32> to vector<16x128xf32>
    %349 = arith.addf %346, %348 : vector<16x128xf32>
    %cst_123 = arith.constant 0.000000e+00 : f32
    %350 = vector.broadcast %cst_123 : f32 to vector<16x128xf32>
    %351 = arith.maximumf %349, %350 : vector<16x128xf32>
    %cst_124 = arith.constant 0.000000e+00 : f32
    %352 = vector.broadcast %cst_124 : f32 to vector<16x128xf32>
    %c1_i32_125 = arith.constant 1 : i32
    %353 = tpu.dynamic_rotate %351 by %c1_i32_125 dim 1 : vector<16x128xf32>, i32 -> vector<16x128xf32>
    %cst_126 = arith.constant 0.000000e+00 : f32
    %354 = vector.broadcast %cst_126 : f32 to vector<16x128xf32>
    %355 = arith.select %19, %353, %354 : vector<16x128xi1>, vector<16x128xf32>
    %c127_i32_127 = arith.constant 127 : i32
    %356 = tpu.dynamic_rotate %351 by %c127_i32_127 dim 1 : vector<16x128xf32>, i32 -> vector<16x128xf32>
    %cst_128 = arith.constant 0.000000e+00 : f32
    %357 = vector.broadcast %cst_128 : f32 to vector<16x128xf32>
    %358 = arith.select %21, %356, %357 : vector<16x128xi1>, vector<16x128xf32>
    %c1_i32_129 = arith.constant 1 : i32
    %359 = tpu.dynamic_rotate %355 by %c1_i32_129 dim 0 : vector<16x128xf32>, i32 -> vector<16x128xf32>
    %cst_130 = arith.constant 0.000000e+00 : f32
    %360 = vector.broadcast %cst_130 : f32 to vector<16x128xf32>
    %361 = arith.select %23, %359, %360 : vector<16x128xi1>, vector<16x128xf32>
    %c0_131 = arith.constant 0 : index
    %c0_132 = arith.constant 0 : index
    %362 = vector.load %arg4[%c0_131, %c0_132] : memref<72x128xf32, #tpu.memory_space<vmem>>, vector<1x128xf32>
    %363 = vector.shape_cast %362 : vector<1x128xf32> to vector<128xf32>
    %364 = vector.shape_cast %363 : vector<128xf32> to vector<1x128xf32>
    %365 = vector.broadcast %364 : vector<1x128xf32> to vector<16x128xf32>
    %366 = arith.mulf %361, %365 : vector<16x128xf32>
    %367 = arith.addf %352, %366 : vector<16x128xf32>
    %c1_i32_133 = arith.constant 1 : i32
    %368 = tpu.dynamic_rotate %351 by %c1_i32_133 dim 0 : vector<16x128xf32>, i32 -> vector<16x128xf32>
    %cst_134 = arith.constant 0.000000e+00 : f32
    %369 = vector.broadcast %cst_134 : f32 to vector<16x128xf32>
    %370 = arith.select %23, %368, %369 : vector<16x128xi1>, vector<16x128xf32>
    %c1_135 = arith.constant 1 : index
    %c0_136 = arith.constant 0 : index
    %371 = vector.load %arg4[%c1_135, %c0_136] : memref<72x128xf32, #tpu.memory_space<vmem>>, vector<1x128xf32>
    %372 = vector.shape_cast %371 : vector<1x128xf32> to vector<128xf32>
    %373 = vector.shape_cast %372 : vector<128xf32> to vector<1x128xf32>
    %374 = vector.broadcast %373 : vector<1x128xf32> to vector<16x128xf32>
    %375 = arith.mulf %370, %374 : vector<16x128xf32>
    %376 = arith.addf %367, %375 : vector<16x128xf32>
    %c1_i32_137 = arith.constant 1 : i32
    %377 = tpu.dynamic_rotate %358 by %c1_i32_137 dim 0 : vector<16x128xf32>, i32 -> vector<16x128xf32>
    %cst_138 = arith.constant 0.000000e+00 : f32
    %378 = vector.broadcast %cst_138 : f32 to vector<16x128xf32>
    %379 = arith.select %23, %377, %378 : vector<16x128xi1>, vector<16x128xf32>
    %c2_139 = arith.constant 2 : index
    %c0_140 = arith.constant 0 : index
    %380 = vector.load %arg4[%c2_139, %c0_140] : memref<72x128xf32, #tpu.memory_space<vmem>>, vector<1x128xf32>
    %381 = vector.shape_cast %380 : vector<1x128xf32> to vector<128xf32>
    %382 = vector.shape_cast %381 : vector<128xf32> to vector<1x128xf32>
    %383 = vector.broadcast %382 : vector<1x128xf32> to vector<16x128xf32>
    %384 = arith.mulf %379, %383 : vector<16x128xf32>
    %385 = arith.addf %376, %384 : vector<16x128xf32>
    %c3_141 = arith.constant 3 : index
    %c0_142 = arith.constant 0 : index
    %386 = vector.load %arg4[%c3_141, %c0_142] : memref<72x128xf32, #tpu.memory_space<vmem>>, vector<1x128xf32>
    %387 = vector.shape_cast %386 : vector<1x128xf32> to vector<128xf32>
    %388 = vector.shape_cast %387 : vector<128xf32> to vector<1x128xf32>
    %389 = vector.broadcast %388 : vector<1x128xf32> to vector<16x128xf32>
    %390 = arith.mulf %355, %389 : vector<16x128xf32>
    %391 = arith.addf %385, %390 : vector<16x128xf32>
    %c4_143 = arith.constant 4 : index
    %c0_144 = arith.constant 0 : index
    %392 = vector.load %arg4[%c4_143, %c0_144] : memref<72x128xf32, #tpu.memory_space<vmem>>, vector<1x128xf32>
    %393 = vector.shape_cast %392 : vector<1x128xf32> to vector<128xf32>
    %394 = vector.shape_cast %393 : vector<128xf32> to vector<1x128xf32>
    %395 = vector.broadcast %394 : vector<1x128xf32> to vector<16x128xf32>
    %396 = arith.mulf %351, %395 : vector<16x128xf32>
    %397 = arith.addf %391, %396 : vector<16x128xf32>
    %c5_145 = arith.constant 5 : index
    %c0_146 = arith.constant 0 : index
    %398 = vector.load %arg4[%c5_145, %c0_146] : memref<72x128xf32, #tpu.memory_space<vmem>>, vector<1x128xf32>
    %399 = vector.shape_cast %398 : vector<1x128xf32> to vector<128xf32>
    %400 = vector.shape_cast %399 : vector<128xf32> to vector<1x128xf32>
    %401 = vector.broadcast %400 : vector<1x128xf32> to vector<16x128xf32>
    %402 = arith.mulf %358, %401 : vector<16x128xf32>
    %403 = arith.addf %397, %402 : vector<16x128xf32>
    %c15_i32_147 = arith.constant 15 : i32
    %404 = tpu.dynamic_rotate %355 by %c15_i32_147 dim 0 : vector<16x128xf32>, i32 -> vector<16x128xf32>
    %cst_148 = arith.constant 0.000000e+00 : f32
    %405 = vector.broadcast %cst_148 : f32 to vector<16x128xf32>
    %406 = arith.select %25, %404, %405 : vector<16x128xi1>, vector<16x128xf32>
    %c6_149 = arith.constant 6 : index
    %c0_150 = arith.constant 0 : index
    %407 = vector.load %arg4[%c6_149, %c0_150] : memref<72x128xf32, #tpu.memory_space<vmem>>, vector<1x128xf32>
    %408 = vector.shape_cast %407 : vector<1x128xf32> to vector<128xf32>
    %409 = vector.shape_cast %408 : vector<128xf32> to vector<1x128xf32>
    %410 = vector.broadcast %409 : vector<1x128xf32> to vector<16x128xf32>
    %411 = arith.mulf %406, %410 : vector<16x128xf32>
    %412 = arith.addf %403, %411 : vector<16x128xf32>
    %c15_i32_151 = arith.constant 15 : i32
    %413 = tpu.dynamic_rotate %351 by %c15_i32_151 dim 0 : vector<16x128xf32>, i32 -> vector<16x128xf32>
    %cst_152 = arith.constant 0.000000e+00 : f32
    %414 = vector.broadcast %cst_152 : f32 to vector<16x128xf32>
    %415 = arith.select %25, %413, %414 : vector<16x128xi1>, vector<16x128xf32>
    %c7_153 = arith.constant 7 : index
    %c0_154 = arith.constant 0 : index
    %416 = vector.load %arg4[%c7_153, %c0_154] : memref<72x128xf32, #tpu.memory_space<vmem>>, vector<1x128xf32>
    %417 = vector.shape_cast %416 : vector<1x128xf32> to vector<128xf32>
    %418 = vector.shape_cast %417 : vector<128xf32> to vector<1x128xf32>
    %419 = vector.broadcast %418 : vector<1x128xf32> to vector<16x128xf32>
    %420 = arith.mulf %415, %419 : vector<16x128xf32>
    %421 = arith.addf %412, %420 : vector<16x128xf32>
    %c15_i32_155 = arith.constant 15 : i32
    %422 = tpu.dynamic_rotate %358 by %c15_i32_155 dim 0 : vector<16x128xf32>, i32 -> vector<16x128xf32>
    %cst_156 = arith.constant 0.000000e+00 : f32
    %423 = vector.broadcast %cst_156 : f32 to vector<16x128xf32>
    %424 = arith.select %25, %422, %423 : vector<16x128xi1>, vector<16x128xf32>
    %c8_157 = arith.constant 8 : index
    %c0_158 = arith.constant 0 : index
    %425 = vector.load %arg4[%c8_157, %c0_158] : memref<72x128xf32, #tpu.memory_space<vmem>>, vector<1x128xf32>
    %426 = vector.shape_cast %425 : vector<1x128xf32> to vector<128xf32>
    %427 = vector.shape_cast %426 : vector<128xf32> to vector<1x128xf32>
    %428 = vector.broadcast %427 : vector<1x128xf32> to vector<16x128xf32>
    %429 = arith.mulf %424, %428 : vector<16x128xf32>
    %430 = arith.addf %421, %429 : vector<16x128xf32>
    %c16_i32_159 = arith.constant 16 : i32
    %431 = tpu.dynamic_rotate %351 by %c16_i32_159 dim 1 : vector<16x128xf32>, i32 -> vector<16x128xf32>
    %c1_i32_160 = arith.constant 1 : i32
    %432 = tpu.dynamic_rotate %431 by %c1_i32_160 dim 1 : vector<16x128xf32>, i32 -> vector<16x128xf32>
    %cst_161 = arith.constant 0.000000e+00 : f32
    %433 = vector.broadcast %cst_161 : f32 to vector<16x128xf32>
    %434 = arith.select %19, %432, %433 : vector<16x128xi1>, vector<16x128xf32>
    %c127_i32_162 = arith.constant 127 : i32
    %435 = tpu.dynamic_rotate %431 by %c127_i32_162 dim 1 : vector<16x128xf32>, i32 -> vector<16x128xf32>
    %cst_163 = arith.constant 0.000000e+00 : f32
    %436 = vector.broadcast %cst_163 : f32 to vector<16x128xf32>
    %437 = arith.select %21, %435, %436 : vector<16x128xi1>, vector<16x128xf32>
    %c1_i32_164 = arith.constant 1 : i32
    %438 = tpu.dynamic_rotate %434 by %c1_i32_164 dim 0 : vector<16x128xf32>, i32 -> vector<16x128xf32>
    %cst_165 = arith.constant 0.000000e+00 : f32
    %439 = vector.broadcast %cst_165 : f32 to vector<16x128xf32>
    %440 = arith.select %23, %438, %439 : vector<16x128xi1>, vector<16x128xf32>
    %c9_166 = arith.constant 9 : index
    %c0_167 = arith.constant 0 : index
    %441 = vector.load %arg4[%c9_166, %c0_167] : memref<72x128xf32, #tpu.memory_space<vmem>>, vector<1x128xf32>
    %442 = vector.shape_cast %441 : vector<1x128xf32> to vector<128xf32>
    %443 = vector.shape_cast %442 : vector<128xf32> to vector<1x128xf32>
    %444 = vector.broadcast %443 : vector<1x128xf32> to vector<16x128xf32>
    %445 = arith.mulf %440, %444 : vector<16x128xf32>
    %446 = arith.addf %430, %445 : vector<16x128xf32>
    %c1_i32_168 = arith.constant 1 : i32
    %447 = tpu.dynamic_rotate %431 by %c1_i32_168 dim 0 : vector<16x128xf32>, i32 -> vector<16x128xf32>
    %cst_169 = arith.constant 0.000000e+00 : f32
    %448 = vector.broadcast %cst_169 : f32 to vector<16x128xf32>
    %449 = arith.select %23, %447, %448 : vector<16x128xi1>, vector<16x128xf32>
    %c10_170 = arith.constant 10 : index
    %c0_171 = arith.constant 0 : index
    %450 = vector.load %arg4[%c10_170, %c0_171] : memref<72x128xf32, #tpu.memory_space<vmem>>, vector<1x128xf32>
    %451 = vector.shape_cast %450 : vector<1x128xf32> to vector<128xf32>
    %452 = vector.shape_cast %451 : vector<128xf32> to vector<1x128xf32>
    %453 = vector.broadcast %452 : vector<1x128xf32> to vector<16x128xf32>
    %454 = arith.mulf %449, %453 : vector<16x128xf32>
    %455 = arith.addf %446, %454 : vector<16x128xf32>
    %c1_i32_172 = arith.constant 1 : i32
    %456 = tpu.dynamic_rotate %437 by %c1_i32_172 dim 0 : vector<16x128xf32>, i32 -> vector<16x128xf32>
    %cst_173 = arith.constant 0.000000e+00 : f32
    %457 = vector.broadcast %cst_173 : f32 to vector<16x128xf32>
    %458 = arith.select %23, %456, %457 : vector<16x128xi1>, vector<16x128xf32>
    %c11_174 = arith.constant 11 : index
    %c0_175 = arith.constant 0 : index
    %459 = vector.load %arg4[%c11_174, %c0_175] : memref<72x128xf32, #tpu.memory_space<vmem>>, vector<1x128xf32>
    %460 = vector.shape_cast %459 : vector<1x128xf32> to vector<128xf32>
    %461 = vector.shape_cast %460 : vector<128xf32> to vector<1x128xf32>
    %462 = vector.broadcast %461 : vector<1x128xf32> to vector<16x128xf32>
    %463 = arith.mulf %458, %462 : vector<16x128xf32>
    %464 = arith.addf %455, %463 : vector<16x128xf32>
    %c12_176 = arith.constant 12 : index
    %c0_177 = arith.constant 0 : index
    %465 = vector.load %arg4[%c12_176, %c0_177] : memref<72x128xf32, #tpu.memory_space<vmem>>, vector<1x128xf32>
    %466 = vector.shape_cast %465 : vector<1x128xf32> to vector<128xf32>
    %467 = vector.shape_cast %466 : vector<128xf32> to vector<1x128xf32>
    %468 = vector.broadcast %467 : vector<1x128xf32> to vector<16x128xf32>
    %469 = arith.mulf %434, %468 : vector<16x128xf32>
    %470 = arith.addf %464, %469 : vector<16x128xf32>
    %c13_178 = arith.constant 13 : index
    %c0_179 = arith.constant 0 : index
    %471 = vector.load %arg4[%c13_178, %c0_179] : memref<72x128xf32, #tpu.memory_space<vmem>>, vector<1x128xf32>
    %472 = vector.shape_cast %471 : vector<1x128xf32> to vector<128xf32>
    %473 = vector.shape_cast %472 : vector<128xf32> to vector<1x128xf32>
    %474 = vector.broadcast %473 : vector<1x128xf32> to vector<16x128xf32>
    %475 = arith.mulf %431, %474 : vector<16x128xf32>
    %476 = arith.addf %470, %475 : vector<16x128xf32>
    %c14_180 = arith.constant 14 : index
    %c0_181 = arith.constant 0 : index
    %477 = vector.load %arg4[%c14_180, %c0_181] : memref<72x128xf32, #tpu.memory_space<vmem>>, vector<1x128xf32>
    %478 = vector.shape_cast %477 : vector<1x128xf32> to vector<128xf32>
    %479 = vector.shape_cast %478 : vector<128xf32> to vector<1x128xf32>
    %480 = vector.broadcast %479 : vector<1x128xf32> to vector<16x128xf32>
    %481 = arith.mulf %437, %480 : vector<16x128xf32>
    %482 = arith.addf %476, %481 : vector<16x128xf32>
    %c15_i32_182 = arith.constant 15 : i32
    %483 = tpu.dynamic_rotate %434 by %c15_i32_182 dim 0 : vector<16x128xf32>, i32 -> vector<16x128xf32>
    %cst_183 = arith.constant 0.000000e+00 : f32
    %484 = vector.broadcast %cst_183 : f32 to vector<16x128xf32>
    %485 = arith.select %25, %483, %484 : vector<16x128xi1>, vector<16x128xf32>
    %c15_184 = arith.constant 15 : index
    %c0_185 = arith.constant 0 : index
    %486 = vector.load %arg4[%c15_184, %c0_185] : memref<72x128xf32, #tpu.memory_space<vmem>>, vector<1x128xf32>
    %487 = vector.shape_cast %486 : vector<1x128xf32> to vector<128xf32>
    %488 = vector.shape_cast %487 : vector<128xf32> to vector<1x128xf32>
    %489 = vector.broadcast %488 : vector<1x128xf32> to vector<16x128xf32>
    %490 = arith.mulf %485, %489 : vector<16x128xf32>
    %491 = arith.addf %482, %490 : vector<16x128xf32>
    %c15_i32_186 = arith.constant 15 : i32
    %492 = tpu.dynamic_rotate %431 by %c15_i32_186 dim 0 : vector<16x128xf32>, i32 -> vector<16x128xf32>
    %cst_187 = arith.constant 0.000000e+00 : f32
    %493 = vector.broadcast %cst_187 : f32 to vector<16x128xf32>
    %494 = arith.select %25, %492, %493 : vector<16x128xi1>, vector<16x128xf32>
    %c16_188 = arith.constant 16 : index
    %c0_189 = arith.constant 0 : index
    %495 = vector.load %arg4[%c16_188, %c0_189] : memref<72x128xf32, #tpu.memory_space<vmem>>, vector<1x128xf32>
    %496 = vector.shape_cast %495 : vector<1x128xf32> to vector<128xf32>
    %497 = vector.shape_cast %496 : vector<128xf32> to vector<1x128xf32>
    %498 = vector.broadcast %497 : vector<1x128xf32> to vector<16x128xf32>
    %499 = arith.mulf %494, %498 : vector<16x128xf32>
    %500 = arith.addf %491, %499 : vector<16x128xf32>
    %c15_i32_190 = arith.constant 15 : i32
    %501 = tpu.dynamic_rotate %437 by %c15_i32_190 dim 0 : vector<16x128xf32>, i32 -> vector<16x128xf32>
    %cst_191 = arith.constant 0.000000e+00 : f32
    %502 = vector.broadcast %cst_191 : f32 to vector<16x128xf32>
    %503 = arith.select %25, %501, %502 : vector<16x128xi1>, vector<16x128xf32>
    %c17_192 = arith.constant 17 : index
    %c0_193 = arith.constant 0 : index
    %504 = vector.load %arg4[%c17_192, %c0_193] : memref<72x128xf32, #tpu.memory_space<vmem>>, vector<1x128xf32>
    %505 = vector.shape_cast %504 : vector<1x128xf32> to vector<128xf32>
    %506 = vector.shape_cast %505 : vector<128xf32> to vector<1x128xf32>
    %507 = vector.broadcast %506 : vector<1x128xf32> to vector<16x128xf32>
    %508 = arith.mulf %503, %507 : vector<16x128xf32>
    %509 = arith.addf %500, %508 : vector<16x128xf32>
    %c32_i32 = arith.constant 32 : i32
    %510 = tpu.dynamic_rotate %351 by %c32_i32 dim 1 : vector<16x128xf32>, i32 -> vector<16x128xf32>
    %c1_i32_194 = arith.constant 1 : i32
    %511 = tpu.dynamic_rotate %510 by %c1_i32_194 dim 1 : vector<16x128xf32>, i32 -> vector<16x128xf32>
    %cst_195 = arith.constant 0.000000e+00 : f32
    %512 = vector.broadcast %cst_195 : f32 to vector<16x128xf32>
    %513 = arith.select %19, %511, %512 : vector<16x128xi1>, vector<16x128xf32>
    %c127_i32_196 = arith.constant 127 : i32
    %514 = tpu.dynamic_rotate %510 by %c127_i32_196 dim 1 : vector<16x128xf32>, i32 -> vector<16x128xf32>
    %cst_197 = arith.constant 0.000000e+00 : f32
    %515 = vector.broadcast %cst_197 : f32 to vector<16x128xf32>
    %516 = arith.select %21, %514, %515 : vector<16x128xi1>, vector<16x128xf32>
    %c1_i32_198 = arith.constant 1 : i32
    %517 = tpu.dynamic_rotate %513 by %c1_i32_198 dim 0 : vector<16x128xf32>, i32 -> vector<16x128xf32>
    %cst_199 = arith.constant 0.000000e+00 : f32
    %518 = vector.broadcast %cst_199 : f32 to vector<16x128xf32>
    %519 = arith.select %23, %517, %518 : vector<16x128xi1>, vector<16x128xf32>
    %c18_200 = arith.constant 18 : index
    %c0_201 = arith.constant 0 : index
    %520 = vector.load %arg4[%c18_200, %c0_201] : memref<72x128xf32, #tpu.memory_space<vmem>>, vector<1x128xf32>
    %521 = vector.shape_cast %520 : vector<1x128xf32> to vector<128xf32>
    %522 = vector.shape_cast %521 : vector<128xf32> to vector<1x128xf32>
    %523 = vector.broadcast %522 : vector<1x128xf32> to vector<16x128xf32>
    %524 = arith.mulf %519, %523 : vector<16x128xf32>
    %525 = arith.addf %509, %524 : vector<16x128xf32>
    %c1_i32_202 = arith.constant 1 : i32
    %526 = tpu.dynamic_rotate %510 by %c1_i32_202 dim 0 : vector<16x128xf32>, i32 -> vector<16x128xf32>
    %cst_203 = arith.constant 0.000000e+00 : f32
    %527 = vector.broadcast %cst_203 : f32 to vector<16x128xf32>
    %528 = arith.select %23, %526, %527 : vector<16x128xi1>, vector<16x128xf32>
    %c19_204 = arith.constant 19 : index
    %c0_205 = arith.constant 0 : index
    %529 = vector.load %arg4[%c19_204, %c0_205] : memref<72x128xf32, #tpu.memory_space<vmem>>, vector<1x128xf32>
    %530 = vector.shape_cast %529 : vector<1x128xf32> to vector<128xf32>
    %531 = vector.shape_cast %530 : vector<128xf32> to vector<1x128xf32>
    %532 = vector.broadcast %531 : vector<1x128xf32> to vector<16x128xf32>
    %533 = arith.mulf %528, %532 : vector<16x128xf32>
    %534 = arith.addf %525, %533 : vector<16x128xf32>
    %c1_i32_206 = arith.constant 1 : i32
    %535 = tpu.dynamic_rotate %516 by %c1_i32_206 dim 0 : vector<16x128xf32>, i32 -> vector<16x128xf32>
    %cst_207 = arith.constant 0.000000e+00 : f32
    %536 = vector.broadcast %cst_207 : f32 to vector<16x128xf32>
    %537 = arith.select %23, %535, %536 : vector<16x128xi1>, vector<16x128xf32>
    %c20_208 = arith.constant 20 : index
    %c0_209 = arith.constant 0 : index
    %538 = vector.load %arg4[%c20_208, %c0_209] : memref<72x128xf32, #tpu.memory_space<vmem>>, vector<1x128xf32>
    %539 = vector.shape_cast %538 : vector<1x128xf32> to vector<128xf32>
    %540 = vector.shape_cast %539 : vector<128xf32> to vector<1x128xf32>
    %541 = vector.broadcast %540 : vector<1x128xf32> to vector<16x128xf32>
    %542 = arith.mulf %537, %541 : vector<16x128xf32>
    %543 = arith.addf %534, %542 : vector<16x128xf32>
    %c21_210 = arith.constant 21 : index
    %c0_211 = arith.constant 0 : index
    %544 = vector.load %arg4[%c21_210, %c0_211] : memref<72x128xf32, #tpu.memory_space<vmem>>, vector<1x128xf32>
    %545 = vector.shape_cast %544 : vector<1x128xf32> to vector<128xf32>
    %546 = vector.shape_cast %545 : vector<128xf32> to vector<1x128xf32>
    %547 = vector.broadcast %546 : vector<1x128xf32> to vector<16x128xf32>
    %548 = arith.mulf %513, %547 : vector<16x128xf32>
    %549 = arith.addf %543, %548 : vector<16x128xf32>
    %c22_212 = arith.constant 22 : index
    %c0_213 = arith.constant 0 : index
    %550 = vector.load %arg4[%c22_212, %c0_213] : memref<72x128xf32, #tpu.memory_space<vmem>>, vector<1x128xf32>
    %551 = vector.shape_cast %550 : vector<1x128xf32> to vector<128xf32>
    %552 = vector.shape_cast %551 : vector<128xf32> to vector<1x128xf32>
    %553 = vector.broadcast %552 : vector<1x128xf32> to vector<16x128xf32>
    %554 = arith.mulf %510, %553 : vector<16x128xf32>
    %555 = arith.addf %549, %554 : vector<16x128xf32>
    %c23_214 = arith.constant 23 : index
    %c0_215 = arith.constant 0 : index
    %556 = vector.load %arg4[%c23_214, %c0_215] : memref<72x128xf32, #tpu.memory_space<vmem>>, vector<1x128xf32>
    %557 = vector.shape_cast %556 : vector<1x128xf32> to vector<128xf32>
    %558 = vector.shape_cast %557 : vector<128xf32> to vector<1x128xf32>
    %559 = vector.broadcast %558 : vector<1x128xf32> to vector<16x128xf32>
    %560 = arith.mulf %516, %559 : vector<16x128xf32>
    %561 = arith.addf %555, %560 : vector<16x128xf32>
    %c15_i32_216 = arith.constant 15 : i32
    %562 = tpu.dynamic_rotate %513 by %c15_i32_216 dim 0 : vector<16x128xf32>, i32 -> vector<16x128xf32>
    %cst_217 = arith.constant 0.000000e+00 : f32
    %563 = vector.broadcast %cst_217 : f32 to vector<16x128xf32>
    %564 = arith.select %25, %562, %563 : vector<16x128xi1>, vector<16x128xf32>
    %c24_218 = arith.constant 24 : index
    %c0_219 = arith.constant 0 : index
    %565 = vector.load %arg4[%c24_218, %c0_219] : memref<72x128xf32, #tpu.memory_space<vmem>>, vector<1x128xf32>
    %566 = vector.shape_cast %565 : vector<1x128xf32> to vector<128xf32>
    %567 = vector.shape_cast %566 : vector<128xf32> to vector<1x128xf32>
    %568 = vector.broadcast %567 : vector<1x128xf32> to vector<16x128xf32>
    %569 = arith.mulf %564, %568 : vector<16x128xf32>
    %570 = arith.addf %561, %569 : vector<16x128xf32>
    %c15_i32_220 = arith.constant 15 : i32
    %571 = tpu.dynamic_rotate %510 by %c15_i32_220 dim 0 : vector<16x128xf32>, i32 -> vector<16x128xf32>
    %cst_221 = arith.constant 0.000000e+00 : f32
    %572 = vector.broadcast %cst_221 : f32 to vector<16x128xf32>
    %573 = arith.select %25, %571, %572 : vector<16x128xi1>, vector<16x128xf32>
    %c25_222 = arith.constant 25 : index
    %c0_223 = arith.constant 0 : index
    %574 = vector.load %arg4[%c25_222, %c0_223] : memref<72x128xf32, #tpu.memory_space<vmem>>, vector<1x128xf32>
    %575 = vector.shape_cast %574 : vector<1x128xf32> to vector<128xf32>
    %576 = vector.shape_cast %575 : vector<128xf32> to vector<1x128xf32>
    %577 = vector.broadcast %576 : vector<1x128xf32> to vector<16x128xf32>
    %578 = arith.mulf %573, %577 : vector<16x128xf32>
    %579 = arith.addf %570, %578 : vector<16x128xf32>
    %c15_i32_224 = arith.constant 15 : i32
    %580 = tpu.dynamic_rotate %516 by %c15_i32_224 dim 0 : vector<16x128xf32>, i32 -> vector<16x128xf32>
    %cst_225 = arith.constant 0.000000e+00 : f32
    %581 = vector.broadcast %cst_225 : f32 to vector<16x128xf32>
    %582 = arith.select %25, %580, %581 : vector<16x128xi1>, vector<16x128xf32>
    %c26_226 = arith.constant 26 : index
    %c0_227 = arith.constant 0 : index
    %583 = vector.load %arg4[%c26_226, %c0_227] : memref<72x128xf32, #tpu.memory_space<vmem>>, vector<1x128xf32>
    %584 = vector.shape_cast %583 : vector<1x128xf32> to vector<128xf32>
    %585 = vector.shape_cast %584 : vector<128xf32> to vector<1x128xf32>
    %586 = vector.broadcast %585 : vector<1x128xf32> to vector<16x128xf32>
    %587 = arith.mulf %582, %586 : vector<16x128xf32>
    %588 = arith.addf %579, %587 : vector<16x128xf32>
    %c48_i32 = arith.constant 48 : i32
    %589 = tpu.dynamic_rotate %351 by %c48_i32 dim 1 : vector<16x128xf32>, i32 -> vector<16x128xf32>
    %c1_i32_228 = arith.constant 1 : i32
    %590 = tpu.dynamic_rotate %589 by %c1_i32_228 dim 1 : vector<16x128xf32>, i32 -> vector<16x128xf32>
    %cst_229 = arith.constant 0.000000e+00 : f32
    %591 = vector.broadcast %cst_229 : f32 to vector<16x128xf32>
    %592 = arith.select %19, %590, %591 : vector<16x128xi1>, vector<16x128xf32>
    %c127_i32_230 = arith.constant 127 : i32
    %593 = tpu.dynamic_rotate %589 by %c127_i32_230 dim 1 : vector<16x128xf32>, i32 -> vector<16x128xf32>
    %cst_231 = arith.constant 0.000000e+00 : f32
    %594 = vector.broadcast %cst_231 : f32 to vector<16x128xf32>
    %595 = arith.select %21, %593, %594 : vector<16x128xi1>, vector<16x128xf32>
    %c1_i32_232 = arith.constant 1 : i32
    %596 = tpu.dynamic_rotate %592 by %c1_i32_232 dim 0 : vector<16x128xf32>, i32 -> vector<16x128xf32>
    %cst_233 = arith.constant 0.000000e+00 : f32
    %597 = vector.broadcast %cst_233 : f32 to vector<16x128xf32>
    %598 = arith.select %23, %596, %597 : vector<16x128xi1>, vector<16x128xf32>
    %c27_234 = arith.constant 27 : index
    %c0_235 = arith.constant 0 : index
    %599 = vector.load %arg4[%c27_234, %c0_235] : memref<72x128xf32, #tpu.memory_space<vmem>>, vector<1x128xf32>
    %600 = vector.shape_cast %599 : vector<1x128xf32> to vector<128xf32>
    %601 = vector.shape_cast %600 : vector<128xf32> to vector<1x128xf32>
    %602 = vector.broadcast %601 : vector<1x128xf32> to vector<16x128xf32>
    %603 = arith.mulf %598, %602 : vector<16x128xf32>
    %604 = arith.addf %588, %603 : vector<16x128xf32>
    %c1_i32_236 = arith.constant 1 : i32
    %605 = tpu.dynamic_rotate %589 by %c1_i32_236 dim 0 : vector<16x128xf32>, i32 -> vector<16x128xf32>
    %cst_237 = arith.constant 0.000000e+00 : f32
    %606 = vector.broadcast %cst_237 : f32 to vector<16x128xf32>
    %607 = arith.select %23, %605, %606 : vector<16x128xi1>, vector<16x128xf32>
    %c28_238 = arith.constant 28 : index
    %c0_239 = arith.constant 0 : index
    %608 = vector.load %arg4[%c28_238, %c0_239] : memref<72x128xf32, #tpu.memory_space<vmem>>, vector<1x128xf32>
    %609 = vector.shape_cast %608 : vector<1x128xf32> to vector<128xf32>
    %610 = vector.shape_cast %609 : vector<128xf32> to vector<1x128xf32>
    %611 = vector.broadcast %610 : vector<1x128xf32> to vector<16x128xf32>
    %612 = arith.mulf %607, %611 : vector<16x128xf32>
    %613 = arith.addf %604, %612 : vector<16x128xf32>
    %c1_i32_240 = arith.constant 1 : i32
    %614 = tpu.dynamic_rotate %595 by %c1_i32_240 dim 0 : vector<16x128xf32>, i32 -> vector<16x128xf32>
    %cst_241 = arith.constant 0.000000e+00 : f32
    %615 = vector.broadcast %cst_241 : f32 to vector<16x128xf32>
    %616 = arith.select %23, %614, %615 : vector<16x128xi1>, vector<16x128xf32>
    %c29_242 = arith.constant 29 : index
    %c0_243 = arith.constant 0 : index
    %617 = vector.load %arg4[%c29_242, %c0_243] : memref<72x128xf32, #tpu.memory_space<vmem>>, vector<1x128xf32>
    %618 = vector.shape_cast %617 : vector<1x128xf32> to vector<128xf32>
    %619 = vector.shape_cast %618 : vector<128xf32> to vector<1x128xf32>
    %620 = vector.broadcast %619 : vector<1x128xf32> to vector<16x128xf32>
    %621 = arith.mulf %616, %620 : vector<16x128xf32>
    %622 = arith.addf %613, %621 : vector<16x128xf32>
    %c30_244 = arith.constant 30 : index
    %c0_245 = arith.constant 0 : index
    %623 = vector.load %arg4[%c30_244, %c0_245] : memref<72x128xf32, #tpu.memory_space<vmem>>, vector<1x128xf32>
    %624 = vector.shape_cast %623 : vector<1x128xf32> to vector<128xf32>
    %625 = vector.shape_cast %624 : vector<128xf32> to vector<1x128xf32>
    %626 = vector.broadcast %625 : vector<1x128xf32> to vector<16x128xf32>
    %627 = arith.mulf %592, %626 : vector<16x128xf32>
    %628 = arith.addf %622, %627 : vector<16x128xf32>
    %c31_246 = arith.constant 31 : index
    %c0_247 = arith.constant 0 : index
    %629 = vector.load %arg4[%c31_246, %c0_247] : memref<72x128xf32, #tpu.memory_space<vmem>>, vector<1x128xf32>
    %630 = vector.shape_cast %629 : vector<1x128xf32> to vector<128xf32>
    %631 = vector.shape_cast %630 : vector<128xf32> to vector<1x128xf32>
    %632 = vector.broadcast %631 : vector<1x128xf32> to vector<16x128xf32>
    %633 = arith.mulf %589, %632 : vector<16x128xf32>
    %634 = arith.addf %628, %633 : vector<16x128xf32>
    %c32_248 = arith.constant 32 : index
    %c0_249 = arith.constant 0 : index
    %635 = vector.load %arg4[%c32_248, %c0_249] : memref<72x128xf32, #tpu.memory_space<vmem>>, vector<1x128xf32>
    %636 = vector.shape_cast %635 : vector<1x128xf32> to vector<128xf32>
    %637 = vector.shape_cast %636 : vector<128xf32> to vector<1x128xf32>
    %638 = vector.broadcast %637 : vector<1x128xf32> to vector<16x128xf32>
    %639 = arith.mulf %595, %638 : vector<16x128xf32>
    %640 = arith.addf %634, %639 : vector<16x128xf32>
    %c15_i32_250 = arith.constant 15 : i32
    %641 = tpu.dynamic_rotate %592 by %c15_i32_250 dim 0 : vector<16x128xf32>, i32 -> vector<16x128xf32>
    %cst_251 = arith.constant 0.000000e+00 : f32
    %642 = vector.broadcast %cst_251 : f32 to vector<16x128xf32>
    %643 = arith.select %25, %641, %642 : vector<16x128xi1>, vector<16x128xf32>
    %c33_252 = arith.constant 33 : index
    %c0_253 = arith.constant 0 : index
    %644 = vector.load %arg4[%c33_252, %c0_253] : memref<72x128xf32, #tpu.memory_space<vmem>>, vector<1x128xf32>
    %645 = vector.shape_cast %644 : vector<1x128xf32> to vector<128xf32>
    %646 = vector.shape_cast %645 : vector<128xf32> to vector<1x128xf32>
    %647 = vector.broadcast %646 : vector<1x128xf32> to vector<16x128xf32>
    %648 = arith.mulf %643, %647 : vector<16x128xf32>
    %649 = arith.addf %640, %648 : vector<16x128xf32>
    %c15_i32_254 = arith.constant 15 : i32
    %650 = tpu.dynamic_rotate %589 by %c15_i32_254 dim 0 : vector<16x128xf32>, i32 -> vector<16x128xf32>
    %cst_255 = arith.constant 0.000000e+00 : f32
    %651 = vector.broadcast %cst_255 : f32 to vector<16x128xf32>
    %652 = arith.select %25, %650, %651 : vector<16x128xi1>, vector<16x128xf32>
    %c34_256 = arith.constant 34 : index
    %c0_257 = arith.constant 0 : index
    %653 = vector.load %arg4[%c34_256, %c0_257] : memref<72x128xf32, #tpu.memory_space<vmem>>, vector<1x128xf32>
    %654 = vector.shape_cast %653 : vector<1x128xf32> to vector<128xf32>
    %655 = vector.shape_cast %654 : vector<128xf32> to vector<1x128xf32>
    %656 = vector.broadcast %655 : vector<1x128xf32> to vector<16x128xf32>
    %657 = arith.mulf %652, %656 : vector<16x128xf32>
    %658 = arith.addf %649, %657 : vector<16x128xf32>
    %c15_i32_258 = arith.constant 15 : i32
    %659 = tpu.dynamic_rotate %595 by %c15_i32_258 dim 0 : vector<16x128xf32>, i32 -> vector<16x128xf32>
    %cst_259 = arith.constant 0.000000e+00 : f32
    %660 = vector.broadcast %cst_259 : f32 to vector<16x128xf32>
    %661 = arith.select %25, %659, %660 : vector<16x128xi1>, vector<16x128xf32>
    %c35_260 = arith.constant 35 : index
    %c0_261 = arith.constant 0 : index
    %662 = vector.load %arg4[%c35_260, %c0_261] : memref<72x128xf32, #tpu.memory_space<vmem>>, vector<1x128xf32>
    %663 = vector.shape_cast %662 : vector<1x128xf32> to vector<128xf32>
    %664 = vector.shape_cast %663 : vector<128xf32> to vector<1x128xf32>
    %665 = vector.broadcast %664 : vector<1x128xf32> to vector<16x128xf32>
    %666 = arith.mulf %661, %665 : vector<16x128xf32>
    %667 = arith.addf %658, %666 : vector<16x128xf32>
    %c64_i32 = arith.constant 64 : i32
    %668 = tpu.dynamic_rotate %351 by %c64_i32 dim 1 : vector<16x128xf32>, i32 -> vector<16x128xf32>
    %c1_i32_262 = arith.constant 1 : i32
    %669 = tpu.dynamic_rotate %668 by %c1_i32_262 dim 1 : vector<16x128xf32>, i32 -> vector<16x128xf32>
    %cst_263 = arith.constant 0.000000e+00 : f32
    %670 = vector.broadcast %cst_263 : f32 to vector<16x128xf32>
    %671 = arith.select %19, %669, %670 : vector<16x128xi1>, vector<16x128xf32>
    %c127_i32_264 = arith.constant 127 : i32
    %672 = tpu.dynamic_rotate %668 by %c127_i32_264 dim 1 : vector<16x128xf32>, i32 -> vector<16x128xf32>
    %cst_265 = arith.constant 0.000000e+00 : f32
    %673 = vector.broadcast %cst_265 : f32 to vector<16x128xf32>
    %674 = arith.select %21, %672, %673 : vector<16x128xi1>, vector<16x128xf32>
    %c1_i32_266 = arith.constant 1 : i32
    %675 = tpu.dynamic_rotate %671 by %c1_i32_266 dim 0 : vector<16x128xf32>, i32 -> vector<16x128xf32>
    %cst_267 = arith.constant 0.000000e+00 : f32
    %676 = vector.broadcast %cst_267 : f32 to vector<16x128xf32>
    %677 = arith.select %23, %675, %676 : vector<16x128xi1>, vector<16x128xf32>
    %c36 = arith.constant 36 : index
    %c0_268 = arith.constant 0 : index
    %678 = vector.load %arg4[%c36, %c0_268] : memref<72x128xf32, #tpu.memory_space<vmem>>, vector<1x128xf32>
    %679 = vector.shape_cast %678 : vector<1x128xf32> to vector<128xf32>
    %680 = vector.shape_cast %679 : vector<128xf32> to vector<1x128xf32>
    %681 = vector.broadcast %680 : vector<1x128xf32> to vector<16x128xf32>
    %682 = arith.mulf %677, %681 : vector<16x128xf32>
    %683 = arith.addf %667, %682 : vector<16x128xf32>
    %c1_i32_269 = arith.constant 1 : i32
    %684 = tpu.dynamic_rotate %668 by %c1_i32_269 dim 0 : vector<16x128xf32>, i32 -> vector<16x128xf32>
    %cst_270 = arith.constant 0.000000e+00 : f32
    %685 = vector.broadcast %cst_270 : f32 to vector<16x128xf32>
    %686 = arith.select %23, %684, %685 : vector<16x128xi1>, vector<16x128xf32>
    %c37 = arith.constant 37 : index
    %c0_271 = arith.constant 0 : index
    %687 = vector.load %arg4[%c37, %c0_271] : memref<72x128xf32, #tpu.memory_space<vmem>>, vector<1x128xf32>
    %688 = vector.shape_cast %687 : vector<1x128xf32> to vector<128xf32>
    %689 = vector.shape_cast %688 : vector<128xf32> to vector<1x128xf32>
    %690 = vector.broadcast %689 : vector<1x128xf32> to vector<16x128xf32>
    %691 = arith.mulf %686, %690 : vector<16x128xf32>
    %692 = arith.addf %683, %691 : vector<16x128xf32>
    %c1_i32_272 = arith.constant 1 : i32
    %693 = tpu.dynamic_rotate %674 by %c1_i32_272 dim 0 : vector<16x128xf32>, i32 -> vector<16x128xf32>
    %cst_273 = arith.constant 0.000000e+00 : f32
    %694 = vector.broadcast %cst_273 : f32 to vector<16x128xf32>
    %695 = arith.select %23, %693, %694 : vector<16x128xi1>, vector<16x128xf32>
    %c38 = arith.constant 38 : index
    %c0_274 = arith.constant 0 : index
    %696 = vector.load %arg4[%c38, %c0_274] : memref<72x128xf32, #tpu.memory_space<vmem>>, vector<1x128xf32>
    %697 = vector.shape_cast %696 : vector<1x128xf32> to vector<128xf32>
    %698 = vector.shape_cast %697 : vector<128xf32> to vector<1x128xf32>
    %699 = vector.broadcast %698 : vector<1x128xf32> to vector<16x128xf32>
    %700 = arith.mulf %695, %699 : vector<16x128xf32>
    %701 = arith.addf %692, %700 : vector<16x128xf32>
    %c39 = arith.constant 39 : index
    %c0_275 = arith.constant 0 : index
    %702 = vector.load %arg4[%c39, %c0_275] : memref<72x128xf32, #tpu.memory_space<vmem>>, vector<1x128xf32>
    %703 = vector.shape_cast %702 : vector<1x128xf32> to vector<128xf32>
    %704 = vector.shape_cast %703 : vector<128xf32> to vector<1x128xf32>
    %705 = vector.broadcast %704 : vector<1x128xf32> to vector<16x128xf32>
    %706 = arith.mulf %671, %705 : vector<16x128xf32>
    %707 = arith.addf %701, %706 : vector<16x128xf32>
    %c40 = arith.constant 40 : index
    %c0_276 = arith.constant 0 : index
    %708 = vector.load %arg4[%c40, %c0_276] : memref<72x128xf32, #tpu.memory_space<vmem>>, vector<1x128xf32>
    %709 = vector.shape_cast %708 : vector<1x128xf32> to vector<128xf32>
    %710 = vector.shape_cast %709 : vector<128xf32> to vector<1x128xf32>
    %711 = vector.broadcast %710 : vector<1x128xf32> to vector<16x128xf32>
    %712 = arith.mulf %668, %711 : vector<16x128xf32>
    %713 = arith.addf %707, %712 : vector<16x128xf32>
    %c41 = arith.constant 41 : index
    %c0_277 = arith.constant 0 : index
    %714 = vector.load %arg4[%c41, %c0_277] : memref<72x128xf32, #tpu.memory_space<vmem>>, vector<1x128xf32>
    %715 = vector.shape_cast %714 : vector<1x128xf32> to vector<128xf32>
    %716 = vector.shape_cast %715 : vector<128xf32> to vector<1x128xf32>
    %717 = vector.broadcast %716 : vector<1x128xf32> to vector<16x128xf32>
    %718 = arith.mulf %674, %717 : vector<16x128xf32>
    %719 = arith.addf %713, %718 : vector<16x128xf32>
    %c15_i32_278 = arith.constant 15 : i32
    %720 = tpu.dynamic_rotate %671 by %c15_i32_278 dim 0 : vector<16x128xf32>, i32 -> vector<16x128xf32>
    %cst_279 = arith.constant 0.000000e+00 : f32
    %721 = vector.broadcast %cst_279 : f32 to vector<16x128xf32>
    %722 = arith.select %25, %720, %721 : vector<16x128xi1>, vector<16x128xf32>
    %c42 = arith.constant 42 : index
    %c0_280 = arith.constant 0 : index
    %723 = vector.load %arg4[%c42, %c0_280] : memref<72x128xf32, #tpu.memory_space<vmem>>, vector<1x128xf32>
    %724 = vector.shape_cast %723 : vector<1x128xf32> to vector<128xf32>
    %725 = vector.shape_cast %724 : vector<128xf32> to vector<1x128xf32>
    %726 = vector.broadcast %725 : vector<1x128xf32> to vector<16x128xf32>
    %727 = arith.mulf %722, %726 : vector<16x128xf32>
    %728 = arith.addf %719, %727 : vector<16x128xf32>
    %c15_i32_281 = arith.constant 15 : i32
    %729 = tpu.dynamic_rotate %668 by %c15_i32_281 dim 0 : vector<16x128xf32>, i32 -> vector<16x128xf32>
    %cst_282 = arith.constant 0.000000e+00 : f32
    %730 = vector.broadcast %cst_282 : f32 to vector<16x128xf32>
    %731 = arith.select %25, %729, %730 : vector<16x128xi1>, vector<16x128xf32>
    %c43 = arith.constant 43 : index
    %c0_283 = arith.constant 0 : index
    %732 = vector.load %arg4[%c43, %c0_283] : memref<72x128xf32, #tpu.memory_space<vmem>>, vector<1x128xf32>
    %733 = vector.shape_cast %732 : vector<1x128xf32> to vector<128xf32>
    %734 = vector.shape_cast %733 : vector<128xf32> to vector<1x128xf32>
    %735 = vector.broadcast %734 : vector<1x128xf32> to vector<16x128xf32>
    %736 = arith.mulf %731, %735 : vector<16x128xf32>
    %737 = arith.addf %728, %736 : vector<16x128xf32>
    %c15_i32_284 = arith.constant 15 : i32
    %738 = tpu.dynamic_rotate %674 by %c15_i32_284 dim 0 : vector<16x128xf32>, i32 -> vector<16x128xf32>
    %cst_285 = arith.constant 0.000000e+00 : f32
    %739 = vector.broadcast %cst_285 : f32 to vector<16x128xf32>
    %740 = arith.select %25, %738, %739 : vector<16x128xi1>, vector<16x128xf32>
    %c44 = arith.constant 44 : index
    %c0_286 = arith.constant 0 : index
    %741 = vector.load %arg4[%c44, %c0_286] : memref<72x128xf32, #tpu.memory_space<vmem>>, vector<1x128xf32>
    %742 = vector.shape_cast %741 : vector<1x128xf32> to vector<128xf32>
    %743 = vector.shape_cast %742 : vector<128xf32> to vector<1x128xf32>
    %744 = vector.broadcast %743 : vector<1x128xf32> to vector<16x128xf32>
    %745 = arith.mulf %740, %744 : vector<16x128xf32>
    %746 = arith.addf %737, %745 : vector<16x128xf32>
    %c80_i32 = arith.constant 80 : i32
    %747 = tpu.dynamic_rotate %351 by %c80_i32 dim 1 : vector<16x128xf32>, i32 -> vector<16x128xf32>
    %c1_i32_287 = arith.constant 1 : i32
    %748 = tpu.dynamic_rotate %747 by %c1_i32_287 dim 1 : vector<16x128xf32>, i32 -> vector<16x128xf32>
    %cst_288 = arith.constant 0.000000e+00 : f32
    %749 = vector.broadcast %cst_288 : f32 to vector<16x128xf32>
    %750 = arith.select %19, %748, %749 : vector<16x128xi1>, vector<16x128xf32>
    %c127_i32_289 = arith.constant 127 : i32
    %751 = tpu.dynamic_rotate %747 by %c127_i32_289 dim 1 : vector<16x128xf32>, i32 -> vector<16x128xf32>
    %cst_290 = arith.constant 0.000000e+00 : f32
    %752 = vector.broadcast %cst_290 : f32 to vector<16x128xf32>
    %753 = arith.select %21, %751, %752 : vector<16x128xi1>, vector<16x128xf32>
    %c1_i32_291 = arith.constant 1 : i32
    %754 = tpu.dynamic_rotate %750 by %c1_i32_291 dim 0 : vector<16x128xf32>, i32 -> vector<16x128xf32>
    %cst_292 = arith.constant 0.000000e+00 : f32
    %755 = vector.broadcast %cst_292 : f32 to vector<16x128xf32>
    %756 = arith.select %23, %754, %755 : vector<16x128xi1>, vector<16x128xf32>
    %c45 = arith.constant 45 : index
    %c0_293 = arith.constant 0 : index
    %757 = vector.load %arg4[%c45, %c0_293] : memref<72x128xf32, #tpu.memory_space<vmem>>, vector<1x128xf32>
    %758 = vector.shape_cast %757 : vector<1x128xf32> to vector<128xf32>
    %759 = vector.shape_cast %758 : vector<128xf32> to vector<1x128xf32>
    %760 = vector.broadcast %759 : vector<1x128xf32> to vector<16x128xf32>
    %761 = arith.mulf %756, %760 : vector<16x128xf32>
    %762 = arith.addf %746, %761 : vector<16x128xf32>
    %c1_i32_294 = arith.constant 1 : i32
    %763 = tpu.dynamic_rotate %747 by %c1_i32_294 dim 0 : vector<16x128xf32>, i32 -> vector<16x128xf32>
    %cst_295 = arith.constant 0.000000e+00 : f32
    %764 = vector.broadcast %cst_295 : f32 to vector<16x128xf32>
    %765 = arith.select %23, %763, %764 : vector<16x128xi1>, vector<16x128xf32>
    %c46 = arith.constant 46 : index
    %c0_296 = arith.constant 0 : index
    %766 = vector.load %arg4[%c46, %c0_296] : memref<72x128xf32, #tpu.memory_space<vmem>>, vector<1x128xf32>
    %767 = vector.shape_cast %766 : vector<1x128xf32> to vector<128xf32>
    %768 = vector.shape_cast %767 : vector<128xf32> to vector<1x128xf32>
    %769 = vector.broadcast %768 : vector<1x128xf32> to vector<16x128xf32>
    %770 = arith.mulf %765, %769 : vector<16x128xf32>
    %771 = arith.addf %762, %770 : vector<16x128xf32>
    %c1_i32_297 = arith.constant 1 : i32
    %772 = tpu.dynamic_rotate %753 by %c1_i32_297 dim 0 : vector<16x128xf32>, i32 -> vector<16x128xf32>
    %cst_298 = arith.constant 0.000000e+00 : f32
    %773 = vector.broadcast %cst_298 : f32 to vector<16x128xf32>
    %774 = arith.select %23, %772, %773 : vector<16x128xi1>, vector<16x128xf32>
    %c47 = arith.constant 47 : index
    %c0_299 = arith.constant 0 : index
    %775 = vector.load %arg4[%c47, %c0_299] : memref<72x128xf32, #tpu.memory_space<vmem>>, vector<1x128xf32>
    %776 = vector.shape_cast %775 : vector<1x128xf32> to vector<128xf32>
    %777 = vector.shape_cast %776 : vector<128xf32> to vector<1x128xf32>
    %778 = vector.broadcast %777 : vector<1x128xf32> to vector<16x128xf32>
    %779 = arith.mulf %774, %778 : vector<16x128xf32>
    %780 = arith.addf %771, %779 : vector<16x128xf32>
    %c48 = arith.constant 48 : index
    %c0_300 = arith.constant 0 : index
    %781 = vector.load %arg4[%c48, %c0_300] : memref<72x128xf32, #tpu.memory_space<vmem>>, vector<1x128xf32>
    %782 = vector.shape_cast %781 : vector<1x128xf32> to vector<128xf32>
    %783 = vector.shape_cast %782 : vector<128xf32> to vector<1x128xf32>
    %784 = vector.broadcast %783 : vector<1x128xf32> to vector<16x128xf32>
    %785 = arith.mulf %750, %784 : vector<16x128xf32>
    %786 = arith.addf %780, %785 : vector<16x128xf32>
    %c49 = arith.constant 49 : index
    %c0_301 = arith.constant 0 : index
    %787 = vector.load %arg4[%c49, %c0_301] : memref<72x128xf32, #tpu.memory_space<vmem>>, vector<1x128xf32>
    %788 = vector.shape_cast %787 : vector<1x128xf32> to vector<128xf32>
    %789 = vector.shape_cast %788 : vector<128xf32> to vector<1x128xf32>
    %790 = vector.broadcast %789 : vector<1x128xf32> to vector<16x128xf32>
    %791 = arith.mulf %747, %790 : vector<16x128xf32>
    %792 = arith.addf %786, %791 : vector<16x128xf32>
    %c50 = arith.constant 50 : index
    %c0_302 = arith.constant 0 : index
    %793 = vector.load %arg4[%c50, %c0_302] : memref<72x128xf32, #tpu.memory_space<vmem>>, vector<1x128xf32>
    %794 = vector.shape_cast %793 : vector<1x128xf32> to vector<128xf32>
    %795 = vector.shape_cast %794 : vector<128xf32> to vector<1x128xf32>
    %796 = vector.broadcast %795 : vector<1x128xf32> to vector<16x128xf32>
    %797 = arith.mulf %753, %796 : vector<16x128xf32>
    %798 = arith.addf %792, %797 : vector<16x128xf32>
    %c15_i32_303 = arith.constant 15 : i32
    %799 = tpu.dynamic_rotate %750 by %c15_i32_303 dim 0 : vector<16x128xf32>, i32 -> vector<16x128xf32>
    %cst_304 = arith.constant 0.000000e+00 : f32
    %800 = vector.broadcast %cst_304 : f32 to vector<16x128xf32>
    %801 = arith.select %25, %799, %800 : vector<16x128xi1>, vector<16x128xf32>
    %c51 = arith.constant 51 : index
    %c0_305 = arith.constant 0 : index
    %802 = vector.load %arg4[%c51, %c0_305] : memref<72x128xf32, #tpu.memory_space<vmem>>, vector<1x128xf32>
    %803 = vector.shape_cast %802 : vector<1x128xf32> to vector<128xf32>
    %804 = vector.shape_cast %803 : vector<128xf32> to vector<1x128xf32>
    %805 = vector.broadcast %804 : vector<1x128xf32> to vector<16x128xf32>
    %806 = arith.mulf %801, %805 : vector<16x128xf32>
    %807 = arith.addf %798, %806 : vector<16x128xf32>
    %c15_i32_306 = arith.constant 15 : i32
    %808 = tpu.dynamic_rotate %747 by %c15_i32_306 dim 0 : vector<16x128xf32>, i32 -> vector<16x128xf32>
    %cst_307 = arith.constant 0.000000e+00 : f32
    %809 = vector.broadcast %cst_307 : f32 to vector<16x128xf32>
    %810 = arith.select %25, %808, %809 : vector<16x128xi1>, vector<16x128xf32>
    %c52 = arith.constant 52 : index
    %c0_308 = arith.constant 0 : index
    %811 = vector.load %arg4[%c52, %c0_308] : memref<72x128xf32, #tpu.memory_space<vmem>>, vector<1x128xf32>
    %812 = vector.shape_cast %811 : vector<1x128xf32> to vector<128xf32>
    %813 = vector.shape_cast %812 : vector<128xf32> to vector<1x128xf32>
    %814 = vector.broadcast %813 : vector<1x128xf32> to vector<16x128xf32>
    %815 = arith.mulf %810, %814 : vector<16x128xf32>
    %816 = arith.addf %807, %815 : vector<16x128xf32>
    %c15_i32_309 = arith.constant 15 : i32
    %817 = tpu.dynamic_rotate %753 by %c15_i32_309 dim 0 : vector<16x128xf32>, i32 -> vector<16x128xf32>
    %cst_310 = arith.constant 0.000000e+00 : f32
    %818 = vector.broadcast %cst_310 : f32 to vector<16x128xf32>
    %819 = arith.select %25, %817, %818 : vector<16x128xi1>, vector<16x128xf32>
    %c53 = arith.constant 53 : index
    %c0_311 = arith.constant 0 : index
    %820 = vector.load %arg4[%c53, %c0_311] : memref<72x128xf32, #tpu.memory_space<vmem>>, vector<1x128xf32>
    %821 = vector.shape_cast %820 : vector<1x128xf32> to vector<128xf32>
    %822 = vector.shape_cast %821 : vector<128xf32> to vector<1x128xf32>
    %823 = vector.broadcast %822 : vector<1x128xf32> to vector<16x128xf32>
    %824 = arith.mulf %819, %823 : vector<16x128xf32>
    %825 = arith.addf %816, %824 : vector<16x128xf32>
    %c96_i32 = arith.constant 96 : i32
    %826 = tpu.dynamic_rotate %351 by %c96_i32 dim 1 : vector<16x128xf32>, i32 -> vector<16x128xf32>
    %c1_i32_312 = arith.constant 1 : i32
    %827 = tpu.dynamic_rotate %826 by %c1_i32_312 dim 1 : vector<16x128xf32>, i32 -> vector<16x128xf32>
    %cst_313 = arith.constant 0.000000e+00 : f32
    %828 = vector.broadcast %cst_313 : f32 to vector<16x128xf32>
    %829 = arith.select %19, %827, %828 : vector<16x128xi1>, vector<16x128xf32>
    %c127_i32_314 = arith.constant 127 : i32
    %830 = tpu.dynamic_rotate %826 by %c127_i32_314 dim 1 : vector<16x128xf32>, i32 -> vector<16x128xf32>
    %cst_315 = arith.constant 0.000000e+00 : f32
    %831 = vector.broadcast %cst_315 : f32 to vector<16x128xf32>
    %832 = arith.select %21, %830, %831 : vector<16x128xi1>, vector<16x128xf32>
    %c1_i32_316 = arith.constant 1 : i32
    %833 = tpu.dynamic_rotate %829 by %c1_i32_316 dim 0 : vector<16x128xf32>, i32 -> vector<16x128xf32>
    %cst_317 = arith.constant 0.000000e+00 : f32
    %834 = vector.broadcast %cst_317 : f32 to vector<16x128xf32>
    %835 = arith.select %23, %833, %834 : vector<16x128xi1>, vector<16x128xf32>
    %c54 = arith.constant 54 : index
    %c0_318 = arith.constant 0 : index
    %836 = vector.load %arg4[%c54, %c0_318] : memref<72x128xf32, #tpu.memory_space<vmem>>, vector<1x128xf32>
    %837 = vector.shape_cast %836 : vector<1x128xf32> to vector<128xf32>
    %838 = vector.shape_cast %837 : vector<128xf32> to vector<1x128xf32>
    %839 = vector.broadcast %838 : vector<1x128xf32> to vector<16x128xf32>
    %840 = arith.mulf %835, %839 : vector<16x128xf32>
    %841 = arith.addf %825, %840 : vector<16x128xf32>
    %c1_i32_319 = arith.constant 1 : i32
    %842 = tpu.dynamic_rotate %826 by %c1_i32_319 dim 0 : vector<16x128xf32>, i32 -> vector<16x128xf32>
    %cst_320 = arith.constant 0.000000e+00 : f32
    %843 = vector.broadcast %cst_320 : f32 to vector<16x128xf32>
    %844 = arith.select %23, %842, %843 : vector<16x128xi1>, vector<16x128xf32>
    %c55 = arith.constant 55 : index
    %c0_321 = arith.constant 0 : index
    %845 = vector.load %arg4[%c55, %c0_321] : memref<72x128xf32, #tpu.memory_space<vmem>>, vector<1x128xf32>
    %846 = vector.shape_cast %845 : vector<1x128xf32> to vector<128xf32>
    %847 = vector.shape_cast %846 : vector<128xf32> to vector<1x128xf32>
    %848 = vector.broadcast %847 : vector<1x128xf32> to vector<16x128xf32>
    %849 = arith.mulf %844, %848 : vector<16x128xf32>
    %850 = arith.addf %841, %849 : vector<16x128xf32>
    %c1_i32_322 = arith.constant 1 : i32
    %851 = tpu.dynamic_rotate %832 by %c1_i32_322 dim 0 : vector<16x128xf32>, i32 -> vector<16x128xf32>
    %cst_323 = arith.constant 0.000000e+00 : f32
    %852 = vector.broadcast %cst_323 : f32 to vector<16x128xf32>
    %853 = arith.select %23, %851, %852 : vector<16x128xi1>, vector<16x128xf32>
    %c56 = arith.constant 56 : index
    %c0_324 = arith.constant 0 : index
    %854 = vector.load %arg4[%c56, %c0_324] : memref<72x128xf32, #tpu.memory_space<vmem>>, vector<1x128xf32>
    %855 = vector.shape_cast %854 : vector<1x128xf32> to vector<128xf32>
    %856 = vector.shape_cast %855 : vector<128xf32> to vector<1x128xf32>
    %857 = vector.broadcast %856 : vector<1x128xf32> to vector<16x128xf32>
    %858 = arith.mulf %853, %857 : vector<16x128xf32>
    %859 = arith.addf %850, %858 : vector<16x128xf32>
    %c57 = arith.constant 57 : index
    %c0_325 = arith.constant 0 : index
    %860 = vector.load %arg4[%c57, %c0_325] : memref<72x128xf32, #tpu.memory_space<vmem>>, vector<1x128xf32>
    %861 = vector.shape_cast %860 : vector<1x128xf32> to vector<128xf32>
    %862 = vector.shape_cast %861 : vector<128xf32> to vector<1x128xf32>
    %863 = vector.broadcast %862 : vector<1x128xf32> to vector<16x128xf32>
    %864 = arith.mulf %829, %863 : vector<16x128xf32>
    %865 = arith.addf %859, %864 : vector<16x128xf32>
    %c58 = arith.constant 58 : index
    %c0_326 = arith.constant 0 : index
    %866 = vector.load %arg4[%c58, %c0_326] : memref<72x128xf32, #tpu.memory_space<vmem>>, vector<1x128xf32>
    %867 = vector.shape_cast %866 : vector<1x128xf32> to vector<128xf32>
    %868 = vector.shape_cast %867 : vector<128xf32> to vector<1x128xf32>
    %869 = vector.broadcast %868 : vector<1x128xf32> to vector<16x128xf32>
    %870 = arith.mulf %826, %869 : vector<16x128xf32>
    %871 = arith.addf %865, %870 : vector<16x128xf32>
    %c59 = arith.constant 59 : index
    %c0_327 = arith.constant 0 : index
    %872 = vector.load %arg4[%c59, %c0_327] : memref<72x128xf32, #tpu.memory_space<vmem>>, vector<1x128xf32>
    %873 = vector.shape_cast %872 : vector<1x128xf32> to vector<128xf32>
    %874 = vector.shape_cast %873 : vector<128xf32> to vector<1x128xf32>
    %875 = vector.broadcast %874 : vector<1x128xf32> to vector<16x128xf32>
    %876 = arith.mulf %832, %875 : vector<16x128xf32>
    %877 = arith.addf %871, %876 : vector<16x128xf32>
    %c15_i32_328 = arith.constant 15 : i32
    %878 = tpu.dynamic_rotate %829 by %c15_i32_328 dim 0 : vector<16x128xf32>, i32 -> vector<16x128xf32>
    %cst_329 = arith.constant 0.000000e+00 : f32
    %879 = vector.broadcast %cst_329 : f32 to vector<16x128xf32>
    %880 = arith.select %25, %878, %879 : vector<16x128xi1>, vector<16x128xf32>
    %c60 = arith.constant 60 : index
    %c0_330 = arith.constant 0 : index
    %881 = vector.load %arg4[%c60, %c0_330] : memref<72x128xf32, #tpu.memory_space<vmem>>, vector<1x128xf32>
    %882 = vector.shape_cast %881 : vector<1x128xf32> to vector<128xf32>
    %883 = vector.shape_cast %882 : vector<128xf32> to vector<1x128xf32>
    %884 = vector.broadcast %883 : vector<1x128xf32> to vector<16x128xf32>
    %885 = arith.mulf %880, %884 : vector<16x128xf32>
    %886 = arith.addf %877, %885 : vector<16x128xf32>
    %c15_i32_331 = arith.constant 15 : i32
    %887 = tpu.dynamic_rotate %826 by %c15_i32_331 dim 0 : vector<16x128xf32>, i32 -> vector<16x128xf32>
    %cst_332 = arith.constant 0.000000e+00 : f32
    %888 = vector.broadcast %cst_332 : f32 to vector<16x128xf32>
    %889 = arith.select %25, %887, %888 : vector<16x128xi1>, vector<16x128xf32>
    %c61 = arith.constant 61 : index
    %c0_333 = arith.constant 0 : index
    %890 = vector.load %arg4[%c61, %c0_333] : memref<72x128xf32, #tpu.memory_space<vmem>>, vector<1x128xf32>
    %891 = vector.shape_cast %890 : vector<1x128xf32> to vector<128xf32>
    %892 = vector.shape_cast %891 : vector<128xf32> to vector<1x128xf32>
    %893 = vector.broadcast %892 : vector<1x128xf32> to vector<16x128xf32>
    %894 = arith.mulf %889, %893 : vector<16x128xf32>
    %895 = arith.addf %886, %894 : vector<16x128xf32>
    %c15_i32_334 = arith.constant 15 : i32
    %896 = tpu.dynamic_rotate %832 by %c15_i32_334 dim 0 : vector<16x128xf32>, i32 -> vector<16x128xf32>
    %cst_335 = arith.constant 0.000000e+00 : f32
    %897 = vector.broadcast %cst_335 : f32 to vector<16x128xf32>
    %898 = arith.select %25, %896, %897 : vector<16x128xi1>, vector<16x128xf32>
    %c62 = arith.constant 62 : index
    %c0_336 = arith.constant 0 : index
    %899 = vector.load %arg4[%c62, %c0_336] : memref<72x128xf32, #tpu.memory_space<vmem>>, vector<1x128xf32>
    %900 = vector.shape_cast %899 : vector<1x128xf32> to vector<128xf32>
    %901 = vector.shape_cast %900 : vector<128xf32> to vector<1x128xf32>
    %902 = vector.broadcast %901 : vector<1x128xf32> to vector<16x128xf32>
    %903 = arith.mulf %898, %902 : vector<16x128xf32>
    %904 = arith.addf %895, %903 : vector<16x128xf32>
    %c112_i32 = arith.constant 112 : i32
    %905 = tpu.dynamic_rotate %351 by %c112_i32 dim 1 : vector<16x128xf32>, i32 -> vector<16x128xf32>
    %c1_i32_337 = arith.constant 1 : i32
    %906 = tpu.dynamic_rotate %905 by %c1_i32_337 dim 1 : vector<16x128xf32>, i32 -> vector<16x128xf32>
    %cst_338 = arith.constant 0.000000e+00 : f32
    %907 = vector.broadcast %cst_338 : f32 to vector<16x128xf32>
    %908 = arith.select %19, %906, %907 : vector<16x128xi1>, vector<16x128xf32>
    %c127_i32_339 = arith.constant 127 : i32
    %909 = tpu.dynamic_rotate %905 by %c127_i32_339 dim 1 : vector<16x128xf32>, i32 -> vector<16x128xf32>
    %cst_340 = arith.constant 0.000000e+00 : f32
    %910 = vector.broadcast %cst_340 : f32 to vector<16x128xf32>
    %911 = arith.select %21, %909, %910 : vector<16x128xi1>, vector<16x128xf32>
    %c1_i32_341 = arith.constant 1 : i32
    %912 = tpu.dynamic_rotate %908 by %c1_i32_341 dim 0 : vector<16x128xf32>, i32 -> vector<16x128xf32>
    %cst_342 = arith.constant 0.000000e+00 : f32
    %913 = vector.broadcast %cst_342 : f32 to vector<16x128xf32>
    %914 = arith.select %23, %912, %913 : vector<16x128xi1>, vector<16x128xf32>
    %c63 = arith.constant 63 : index
    %c0_343 = arith.constant 0 : index
    %915 = vector.load %arg4[%c63, %c0_343] : memref<72x128xf32, #tpu.memory_space<vmem>>, vector<1x128xf32>
    %916 = vector.shape_cast %915 : vector<1x128xf32> to vector<128xf32>
    %917 = vector.shape_cast %916 : vector<128xf32> to vector<1x128xf32>
    %918 = vector.broadcast %917 : vector<1x128xf32> to vector<16x128xf32>
    %919 = arith.mulf %914, %918 : vector<16x128xf32>
    %920 = arith.addf %904, %919 : vector<16x128xf32>
    %c1_i32_344 = arith.constant 1 : i32
    %921 = tpu.dynamic_rotate %905 by %c1_i32_344 dim 0 : vector<16x128xf32>, i32 -> vector<16x128xf32>
    %cst_345 = arith.constant 0.000000e+00 : f32
    %922 = vector.broadcast %cst_345 : f32 to vector<16x128xf32>
    %923 = arith.select %23, %921, %922 : vector<16x128xi1>, vector<16x128xf32>
    %c64 = arith.constant 64 : index
    %c0_346 = arith.constant 0 : index
    %924 = vector.load %arg4[%c64, %c0_346] : memref<72x128xf32, #tpu.memory_space<vmem>>, vector<1x128xf32>
    %925 = vector.shape_cast %924 : vector<1x128xf32> to vector<128xf32>
    %926 = vector.shape_cast %925 : vector<128xf32> to vector<1x128xf32>
    %927 = vector.broadcast %926 : vector<1x128xf32> to vector<16x128xf32>
    %928 = arith.mulf %923, %927 : vector<16x128xf32>
    %929 = arith.addf %920, %928 : vector<16x128xf32>
    %c1_i32_347 = arith.constant 1 : i32
    %930 = tpu.dynamic_rotate %911 by %c1_i32_347 dim 0 : vector<16x128xf32>, i32 -> vector<16x128xf32>
    %cst_348 = arith.constant 0.000000e+00 : f32
    %931 = vector.broadcast %cst_348 : f32 to vector<16x128xf32>
    %932 = arith.select %23, %930, %931 : vector<16x128xi1>, vector<16x128xf32>
    %c65 = arith.constant 65 : index
    %c0_349 = arith.constant 0 : index
    %933 = vector.load %arg4[%c65, %c0_349] : memref<72x128xf32, #tpu.memory_space<vmem>>, vector<1x128xf32>
    %934 = vector.shape_cast %933 : vector<1x128xf32> to vector<128xf32>
    %935 = vector.shape_cast %934 : vector<128xf32> to vector<1x128xf32>
    %936 = vector.broadcast %935 : vector<1x128xf32> to vector<16x128xf32>
    %937 = arith.mulf %932, %936 : vector<16x128xf32>
    %938 = arith.addf %929, %937 : vector<16x128xf32>
    %c66 = arith.constant 66 : index
    %c0_350 = arith.constant 0 : index
    %939 = vector.load %arg4[%c66, %c0_350] : memref<72x128xf32, #tpu.memory_space<vmem>>, vector<1x128xf32>
    %940 = vector.shape_cast %939 : vector<1x128xf32> to vector<128xf32>
    %941 = vector.shape_cast %940 : vector<128xf32> to vector<1x128xf32>
    %942 = vector.broadcast %941 : vector<1x128xf32> to vector<16x128xf32>
    %943 = arith.mulf %908, %942 : vector<16x128xf32>
    %944 = arith.addf %938, %943 : vector<16x128xf32>
    %c67 = arith.constant 67 : index
    %c0_351 = arith.constant 0 : index
    %945 = vector.load %arg4[%c67, %c0_351] : memref<72x128xf32, #tpu.memory_space<vmem>>, vector<1x128xf32>
    %946 = vector.shape_cast %945 : vector<1x128xf32> to vector<128xf32>
    %947 = vector.shape_cast %946 : vector<128xf32> to vector<1x128xf32>
    %948 = vector.broadcast %947 : vector<1x128xf32> to vector<16x128xf32>
    %949 = arith.mulf %905, %948 : vector<16x128xf32>
    %950 = arith.addf %944, %949 : vector<16x128xf32>
    %c68 = arith.constant 68 : index
    %c0_352 = arith.constant 0 : index
    %951 = vector.load %arg4[%c68, %c0_352] : memref<72x128xf32, #tpu.memory_space<vmem>>, vector<1x128xf32>
    %952 = vector.shape_cast %951 : vector<1x128xf32> to vector<128xf32>
    %953 = vector.shape_cast %952 : vector<128xf32> to vector<1x128xf32>
    %954 = vector.broadcast %953 : vector<1x128xf32> to vector<16x128xf32>
    %955 = arith.mulf %911, %954 : vector<16x128xf32>
    %956 = arith.addf %950, %955 : vector<16x128xf32>
    %c15_i32_353 = arith.constant 15 : i32
    %957 = tpu.dynamic_rotate %908 by %c15_i32_353 dim 0 : vector<16x128xf32>, i32 -> vector<16x128xf32>
    %cst_354 = arith.constant 0.000000e+00 : f32
    %958 = vector.broadcast %cst_354 : f32 to vector<16x128xf32>
    %959 = arith.select %25, %957, %958 : vector<16x128xi1>, vector<16x128xf32>
    %c69 = arith.constant 69 : index
    %c0_355 = arith.constant 0 : index
    %960 = vector.load %arg4[%c69, %c0_355] : memref<72x128xf32, #tpu.memory_space<vmem>>, vector<1x128xf32>
    %961 = vector.shape_cast %960 : vector<1x128xf32> to vector<128xf32>
    %962 = vector.shape_cast %961 : vector<128xf32> to vector<1x128xf32>
    %963 = vector.broadcast %962 : vector<1x128xf32> to vector<16x128xf32>
    %964 = arith.mulf %959, %963 : vector<16x128xf32>
    %965 = arith.addf %956, %964 : vector<16x128xf32>
    %c15_i32_356 = arith.constant 15 : i32
    %966 = tpu.dynamic_rotate %905 by %c15_i32_356 dim 0 : vector<16x128xf32>, i32 -> vector<16x128xf32>
    %cst_357 = arith.constant 0.000000e+00 : f32
    %967 = vector.broadcast %cst_357 : f32 to vector<16x128xf32>
    %968 = arith.select %25, %966, %967 : vector<16x128xi1>, vector<16x128xf32>
    %c70 = arith.constant 70 : index
    %c0_358 = arith.constant 0 : index
    %969 = vector.load %arg4[%c70, %c0_358] : memref<72x128xf32, #tpu.memory_space<vmem>>, vector<1x128xf32>
    %970 = vector.shape_cast %969 : vector<1x128xf32> to vector<128xf32>
    %971 = vector.shape_cast %970 : vector<128xf32> to vector<1x128xf32>
    %972 = vector.broadcast %971 : vector<1x128xf32> to vector<16x128xf32>
    %973 = arith.mulf %968, %972 : vector<16x128xf32>
    %974 = arith.addf %965, %973 : vector<16x128xf32>
    %c15_i32_359 = arith.constant 15 : i32
    %975 = tpu.dynamic_rotate %911 by %c15_i32_359 dim 0 : vector<16x128xf32>, i32 -> vector<16x128xf32>
    %cst_360 = arith.constant 0.000000e+00 : f32
    %976 = vector.broadcast %cst_360 : f32 to vector<16x128xf32>
    %977 = arith.select %25, %975, %976 : vector<16x128xi1>, vector<16x128xf32>
    %c71 = arith.constant 71 : index
    %c0_361 = arith.constant 0 : index
    %978 = vector.load %arg4[%c71, %c0_361] : memref<72x128xf32, #tpu.memory_space<vmem>>, vector<1x128xf32>
    %979 = vector.shape_cast %978 : vector<1x128xf32> to vector<128xf32>
    %980 = vector.shape_cast %979 : vector<128xf32> to vector<1x128xf32>
    %981 = vector.broadcast %980 : vector<1x128xf32> to vector<16x128xf32>
    %982 = arith.mulf %977, %981 : vector<16x128xf32>
    %983 = arith.addf %974, %982 : vector<16x128xf32>
    %c0_362 = arith.constant 0 : index
    %c0_363 = arith.constant 0 : index
    %984 = vector.load %arg5[%c0_362, %c0_363] : memref<1x128xf32, #tpu.memory_space<vmem>>, vector<1x128xf32>
    %985 = vector.broadcast %984 : vector<1x128xf32> to vector<16x128xf32>
    %986 = arith.addf %983, %985 : vector<16x128xf32>
    %cst_364 = arith.constant 0.000000e+00 : f32
    %987 = vector.broadcast %cst_364 : f32 to vector<16x128xf32>
    %988 = arith.maximumf %986, %987 : vector<16x128xf32>
    %c112_i32_365 = arith.constant 112 : i32
    %989 = tpu.dynamic_rotate %988 by %c112_i32_365 dim 1 : vector<16x128xf32>, i32 -> vector<16x128xf32>
    %c96_i32_366 = arith.constant 96 : i32
    %990 = tpu.dynamic_rotate %988 by %c96_i32_366 dim 1 : vector<16x128xf32>, i32 -> vector<16x128xf32>
    %c80_i32_367 = arith.constant 80 : i32
    %991 = tpu.dynamic_rotate %988 by %c80_i32_367 dim 1 : vector<16x128xf32>, i32 -> vector<16x128xf32>
    %c64_i32_368 = arith.constant 64 : i32
    %992 = tpu.dynamic_rotate %988 by %c64_i32_368 dim 1 : vector<16x128xf32>, i32 -> vector<16x128xf32>
    %c48_i32_369 = arith.constant 48 : i32
    %993 = tpu.dynamic_rotate %988 by %c48_i32_369 dim 1 : vector<16x128xf32>, i32 -> vector<16x128xf32>
    %c32_i32_370 = arith.constant 32 : i32
    %994 = tpu.dynamic_rotate %988 by %c32_i32_370 dim 1 : vector<16x128xf32>, i32 -> vector<16x128xf32>
    %c16_i32_371 = arith.constant 16 : i32
    %995 = tpu.dynamic_rotate %988 by %c16_i32_371 dim 1 : vector<16x128xf32>, i32 -> vector<16x128xf32>
    %996 = tpu.concatenate %988, %989, %990, %991, %992, %993, %994, %995 in 0 : vector<16x128xf32>, vector<16x128xf32>, vector<16x128xf32>, vector<16x128xf32>, vector<16x128xf32>, vector<16x128xf32>, vector<16x128xf32>, vector<16x128xf32> -> vector<128x128xf32>
    %c0_372 = arith.constant 0 : index
    %c0_373 = arith.constant 0 : index
    %997 = vector.load %arg6[%c0_372, %c0_373] : memref<256x128xf32, #tpu.memory_space<vmem>>, vector<256x128xf32>
    %cst_374 = arith.constant dense<0.000000e+00> : vector<256x128xf32>
    %998 = tpu.matmul %997, %996, %cst_374 {dimension_numbers = #tpu.dot_dimension_numbers<[1], [0], [0], [1], [0, 0, 1, 1], [], []>} : vector<256x128xf32>, vector<128x128xf32>, vector<256x128xf32> -> vector<256x128xf32>
    %c0_375 = arith.constant 0 : index
    %c0_376 = arith.constant 0 : index
    %999 = vector.load %arg7[%c0_375, %c0_376] : memref<128x32xf32, #tpu.memory_space<vmem>>, vector<128x32xf32>
    %cst_377 = arith.constant dense<0.000000e+00> : vector<256x32xf32>
    %1000 = tpu.matmul %998, %999, %cst_377 {dimension_numbers = #tpu.dot_dimension_numbers<[1], [0], [0], [1], [0, 0, 1, 1], [], []>} : vector<256x128xf32>, vector<128x32xf32>, vector<256x32xf32> -> vector<256x32xf32>
    %c0_378 = arith.constant 0 : index
    %c0_379 = arith.constant 0 : index
    %c0_380 = arith.constant 0 : index
    %1001 = vector.load %arg8[%c0_378, %c0_379, %c0_380] : memref<1x256x32xf32, #tpu.memory_space<vmem>>, vector<1x256x32xf32>
    %1002 = vector.shape_cast %1001 : vector<1x256x32xf32> to vector<256x32xf32>
    %1003 = vector.shape_cast %1000 : vector<256x32xf32> to vector<1x256x32xf32>
    tpu.vector_store %arg8[%c0_378, %c0_379, %c0_380], %1003 {strides = array<i32>} : memref<1x256x32xf32, #tpu.memory_space<vmem>>, vector<1x256x32xf32>,
    return
  }
  func.func @transform_0(%arg0: i32) -> (i32, i32, i32, i32) {
    %c0_i32 = arith.constant 0 : i32
    %c0_i32_0 = arith.constant 0 : i32
    %c0_i32_1 = arith.constant 0 : i32
    %c0_i32_2 = arith.constant 0 : i32
    return %arg0, %c0_i32, %c0_i32_0, %c0_i32_1 : i32, i32, i32, i32
  }
  func.func @transform_1(%arg0: i32) -> (i32, i32) {
    %c0_i32 = arith.constant 0 : i32
    %c0_i32_0 = arith.constant 0 : i32
    %c0_i32_1 = arith.constant 0 : i32
    return %c0_i32, %c0_i32_0 : i32, i32
  }
  func.func @transform_2(%arg0: i32) -> (i32, i32) {
    %c0_i32 = arith.constant 0 : i32
    %c0_i32_0 = arith.constant 0 : i32
    %c0_i32_1 = arith.constant 0 : i32
    return %c0_i32, %c0_i32_0 : i32, i32
  }
  func.func @transform_3(%arg0: i32) -> (i32, i32) {
    %c0_i32 = arith.constant 0 : i32
    %c0_i32_0 = arith.constant 0 : i32
    %c0_i32_1 = arith.constant 0 : i32
    return %c0_i32, %c0_i32_0 : i32, i32
  }
  func.func @transform_4(%arg0: i32) -> (i32, i32) {
    %c0_i32 = arith.constant 0 : i32
    %c0_i32_0 = arith.constant 0 : i32
    %c0_i32_1 = arith.constant 0 : i32
    return %c0_i32, %c0_i32_0 : i32, i32
  }
  func.func @transform_5(%arg0: i32) -> (i32, i32) {
    %c0_i32 = arith.constant 0 : i32
    %c0_i32_0 = arith.constant 0 : i32
    %c0_i32_1 = arith.constant 0 : i32
    return %c0_i32, %c0_i32_0 : i32, i32
  }
  func.func @transform_6(%arg0: i32) -> (i32, i32) {
    %c0_i32 = arith.constant 0 : i32
    %c0_i32_0 = arith.constant 0 : i32
    %c0_i32_1 = arith.constant 0 : i32
    return %c0_i32, %c0_i32_0 : i32, i32
  }
  func.func @transform_7(%arg0: i32) -> (i32, i32, i32) {
    %c0_i32 = arith.constant 0 : i32
    %c0_i32_0 = arith.constant 0 : i32
    %c0_i32_1 = arith.constant 0 : i32
    return %arg0, %c0_i32, %c0_i32_0 : i32, i32, i32
  }
}

</mosaic_0001>

<llo_original>
// kernel: tpu_custom_call.1
$region0: #{tpu_custom_call.1}
  #allocation0 [shape = 'u32[]', space=smem, size = 0x4, offset = 0x4, fixed_abs, tag = 'smem constant byte address 0x4 - core index']
  #allocation1 [shape = 'u32[144,128]{1,0:T(1,128)}', space=vmem, size = 0x12000, scoped, tag = 'internal scratch']
  %s0 = inlined_call_operand.vmem [shape: f32[2,4,16,128], index: 0, kind: input, shape index: {}]
  %s1 = inlined_call_operand.hbm [shape: f32[36,128], index: 1, kind: input, shape index: {}]
  %s2 = inlined_call_operand.vmem [shape: f32[1,128], index: 2, kind: input, shape index: {}]
  %s3 = inlined_call_operand.hbm [shape: f32[72,128], index: 3, kind: input, shape index: {}]
  %s4 = inlined_call_operand.vmem [shape: f32[1,128], index: 4, kind: input, shape index: {}]
  %s5 = inlined_call_operand.hbm [shape: f32[256,128], index: 5, kind: input, shape index: {}]
  %s6 = inlined_call_operand.vmem [shape: f32[128,32], index: 6, kind: input, shape index: {}]
  %s7 = inlined_call_operand.vmem [shape: f32[2,256,32], index: 7, kind: output, shape index: {}]
  %s8 = sld [smem:[#allocation0]]
  $region73: #{tpu_custom_call.1} parent=0
    _
  %s10 = ssub.s32 1, %s8
  %s11 = scalar_select 0, %s10, %s8
  $region1: #{tpu_custom_call.1} parent=0
    #allocation2 [shape = 'u8[20480]{0}', space=vmem, size = 0x5000, scoped, tag = 'input window, operand 1, single buffered']
    #allocation3 [shape = 's32[2]{0}', space=sflag, size = 0x8, scoped, tag = 'scoped memory for tpu_custom_call.1']
    #allocation4 [shape = 'u8[36864]{0}', space=vmem, size = 0x9000, scoped, tag = 'input window, operand 3, single buffered']
    #allocation5 [shape = 's32[1]{0}', space=sflag, size = 0x4, scoped, tag = 'scoped memory for tpu_custom_call.1']
    #allocation6 [shape = 'u8[131072]{0}', space=vmem, size = 0x20000, scoped, tag = 'input window, operand 5, single buffered']
    %12 = vsyncpa [#allocation3], 0
    %13 = vsyncpa [#allocation5], 0
    loop: start=0, step=1, limit=4
    $region2: #{tpu_custom_call.1} parent=1 // loop_pre_header
      _
    $region3: #{tpu_custom_call.1} parent=1 // loop_header
      %s15 = sphi 0, %s19
      %p16 = scmp.ge.s32.totalorder %s15, 4
      %s25 = sphi 0, %s27
      %s28 = sphi 0, %s25
      %s29 = sphi 0, %s28
      %s45 = sphi 0, %s29
      %s49 = sphi 0, %s49
      %s51 = sphi 0, %s49
      %s52 = sphi 0, %s51
      %s66 = sphi 0, %s52
      %s70 = sphi 0, %s70
      %s72 = sphi 0, %s70
      %s73 = sphi 0, %s72
      %s87 = sphi 0, %s73
      %s91 = sphi 0, %s91
      %s93 = sphi 0, %s91
      %s94 = sphi 0, %s93
      %s108 = sphi 0, %s94
      %s112 = sphi 0, %s112
      %s114 = sphi 0, %s112
      %s115 = sphi 0, %s114
      %s129 = sphi 0, %s115
      %s133 = sphi 0, %s133
      %s135 = sphi 0, %s133
      %s136 = sphi 0, %s135
      %s150 = sphi 0, %s136
      %s154 = sphi 0, %s154
      %s156 = sphi 0, %s154
      %s157 = sphi 0, %s156
      %s171 = sphi 0, %s157
      %s177 = sphi 0, %s179
      %s180 = sphi 0, %s177
      %s181 = sphi 0, %s180
      %s197 = sphi 0, %s181
    $region4: #{tpu_custom_call.1} parent=1 // loop_header_branch
      %18 = sbr.rel (%p16) target = $region8
    $region5: #{tpu_custom_call.1} parent=1 // loop_body
      %s20 = ssub.s32 %s15, 1
      %s21 = ssub.s32 %s15, 2
      %s22 = sadd.s32 %s15, 1
      %s23 = ssub.s32 %s15, %s22
      %p24 = scmp.eq.s32.totalorder %s23, 0
      %s26 = sadd.s32 %s25, 1
      %s27 = scalar_select %p24, %s25, %s26
      %p30 = pneg %p24
      %p31 = scmp.eq.s32.totalorder %s15, 1
      %p32 = por %p30, %p31
      %p33 = scmp.ne.s32.totalorder %s25, %s28
      %p34 = scmp.eq.s32.totalorder %s15, 0
      %p35 = por %p33, %p34
      %p36 = scmp.ne.s32.totalorder %s25, %s28
      %p37 = scmp.eq.s32.totalorder %s20, 1
      %p38 = por %p36, %p37
      %p39 = scmp.ne.s32.totalorder %s28, %s29
      %p40 = scmp.eq.s32.totalorder %s20, 0
      %p41 = por %p39, %p40
      %p42 = scmp.ne.s32.totalorder %s28, %s29
      %p43 = scmp.eq.s32.totalorder %s21, 1
      %p44 = por %p42, %p43
      %p46 = scmp.ne.s32.totalorder %s29, %s45
      %p47 = scmp.eq.s32.totalorder %s21, 0
      %p48 = por %p46, %p47
      %s50 = sadd.s32 %s49, 1
      %p53 = scmp.eq.s32.totalorder %s15, 1
      %p54 = scmp.ne.s32.totalorder %s49, %s51
      %p55 = scmp.eq.s32.totalorder %s15, 0
      %p56 = por %p54, %p55
      %p57 = scmp.ne.s32.totalorder %s49, %s51
      %p58 = scmp.eq.s32.totalorder %s20, 1
      %p59 = por %p57, %p58
      %p60 = scmp.ne.s32.totalorder %s51, %s52
      %p61 = scmp.eq.s32.totalorder %s20, 0
      %p62 = por %p60, %p61
      %p63 = scmp.ne.s32.totalorder %s51, %s52
      %p64 = scmp.eq.s32.totalorder %s21, 1
      %p65 = por %p63, %p64
      %p67 = scmp.ne.s32.totalorder %s52, %s66
      %p68 = scmp.eq.s32.totalorder %s21, 0
      %p69 = por %p67, %p68
      %s71 = sadd.s32 %s70, 1
      %p74 = scmp.eq.s32.totalorder %s15, 1
      %p75 = scmp.ne.s32.totalorder %s70, %s72
      %p76 = scmp.eq.s32.totalorder %s15, 0
      %p77 = por %p75, %p76
      %p78 = scmp.ne.s32.totalorder %s70, %s72
      %p79 = scmp.eq.s32.totalorder %s20, 1
      %p80 = por %p78, %p79
      %p81 = scmp.ne.s32.totalorder %s72, %s73
      %p82 = scmp.eq.s32.totalorder %s20, 0
      %p83 = por %p81, %p82
      %p84 = scmp.ne.s32.totalorder %s72, %s73
      %p85 = scmp.eq.s32.totalorder %s21, 1
      %p86 = por %p84, %p85
      %p88 = scmp.ne.s32.totalorder %s73, %s87
      %p89 = scmp.eq.s32.totalorder %s21, 0
      %p90 = por %p88, %p89
      %s92 = sadd.s32 %s91, 1
      %p95 = scmp.eq.s32.totalorder %s15, 1
      %p96 = scmp.ne.s32.totalorder %s91, %s93
      %p97 = scmp.eq.s32.totalorder %s15, 0
      %p98 = por %p96, %p97
      %p99 = scmp.ne.s32.totalorder %s91, %s93
      %p100 = scmp.eq.s32.totalorder %s20, 1
      %p101 = por %p99, %p100
      %p102 = scmp.ne.s32.totalorder %s93, %s94
      %p103 = scmp.eq.s32.totalorder %s20, 0
      %p104 = por %p102, %p103
      %p105 = scmp.ne.s32.totalorder %s93, %s94
      %p106 = scmp.eq.s32.totalorder %s21, 1
      %p107 = por %p105, %p106
      %p109 = scmp.ne.s32.totalorder %s94, %s108
      %p110 = scmp.eq.s32.totalorder %s21, 0
      %p111 = por %p109, %p110
      %s113 = sadd.s32 %s112, 1
      %p116 = scmp.eq.s32.totalorder %s15, 1
      %p117 = scmp.ne.s32.totalorder %s112, %s114
      %p118 = scmp.eq.s32.totalorder %s15, 0
      %p119 = por %p117, %p118
      %p120 = scmp.ne.s32.totalorder %s112, %s114
      %p121 = scmp.eq.s32.totalorder %s20, 1
      %p122 = por %p120, %p121
      %p123 = scmp.ne.s32.totalorder %s114, %s115
      %p124 = scmp.eq.s32.totalorder %s20, 0
      %p125 = por %p123, %p124
      %p126 = scmp.ne.s32.totalorder %s114, %s115
      %p127 = scmp.eq.s32.totalorder %s21, 1
      %p128 = por %p126, %p127
      %p130 = scmp.ne.s32.totalorder %s115, %s129
      %p131 = scmp.eq.s32.totalorder %s21, 0
      %p132 = por %p130, %p131
      %s134 = sadd.s32 %s133, 1
      %p137 = scmp.eq.s32.totalorder %s15, 1
      %p138 = scmp.ne.s32.totalorder %s133, %s135
      %p139 = scmp.eq.s32.totalorder %s15, 0
      %p140 = por %p138, %p139
      %p141 = scmp.ne.s32.totalorder %s133, %s135
      %p142 = scmp.eq.s32.totalorder %s20, 1
      %p143 = por %p141, %p142
      %p144 = scmp.ne.s32.totalorder %s135, %s136
      %p145 = scmp.eq.s32.totalorder %s20, 0
      %p146 = por %p144, %p145
      %p147 = scmp.ne.s32.totalorder %s135, %s136
      %p148 = scmp.eq.s32.totalorder %s21, 1
      %p149 = por %p147, %p148
      %p151 = scmp.ne.s32.totalorder %s136, %s150
      %p152 = scmp.eq.s32.totalorder %s21, 0
      %p153 = por %p151, %p152
      %s155 = sadd.s32 %s154, 1
      %p158 = scmp.eq.s32.totalorder %s15, 1
      %p159 = scmp.ne.s32.totalorder %s154, %s156
      %p160 = scmp.eq.s32.totalorder %s15, 0
      %p161 = por %p159, %p160
      %p162 = scmp.ne.s32.totalorder %s154, %s156
      %p163 = scmp.eq.s32.totalorder %s20, 1
      %p164 = por %p162, %p163
      %p165 = scmp.ne.s32.totalorder %s156, %s157
      %p166 = scmp.eq.s32.totalorder %s20, 0
      %p167 = por %p165, %p166
      %p168 = scmp.ne.s32.totalorder %s156, %s157
      %p169 = scmp.eq.s32.totalorder %s21, 1
      %p170 = por %p168, %p169
      %p172 = scmp.ne.s32.totalorder %s157, %s171
      %p173 = scmp.eq.s32.totalorder %s21, 0
      %p174 = por %p172, %p173
      %s175 = ssub.s32 %s15, %s22
      %p176 = scmp.eq.s32.totalorder %s175, 0
      %s178 = sadd.s32 %s177, 1
      %s179 = scalar_select %p176, %s177, %s178
      %p182 = pneg %p176
      %p183 = scmp.eq.s32.totalorder %s15, 1
      %p184 = por %p182, %p183
      %p185 = scmp.ne.s32.totalorder %s177, %s180
      %p186 = scmp.eq.s32.totalorder %s15, 0
      %p187 = por %p185, %p186
      %p188 = scmp.ne.s32.totalorder %s177, %s180
      %p189 = scmp.eq.s32.totalorder %s20, 1
      %p190 = por %p188, %p189
      %p191 = scmp.ne.s32.totalorder %s180, %s181
      %p192 = scmp.eq.s32.totalorder %s20, 0
      %p193 = por %p191, %p192
      %p194 = scmp.ne.s32.totalorder %s180, %s181
      %p195 = scmp.eq.s32.totalorder %s21, 1
      %p196 = por %p194, %p195
      %p198 = scmp.ne.s32.totalorder %s181, %s197
      %p199 = scmp.eq.s32.totalorder %s21, 0
      %p200 = por %p198, %p199
      %p201 = scmp.le.s32.totalorder 1, %s15
      %p202 = scmp.lt.s32.totalorder %s15, 3
      %p203 = pnand %p201, %p202
      %p204 = pneg %p203
      // Predicated region
      $region9: #{tpu_custom_call.1} parent=5 // pred_check
        _
      $region10: #{tpu_custom_call.1} parent=5 // pred_check_branch
        %206 = sbr.rel (%p203) target = $region12
      $region11: #{tpu_custom_call.1} parent=5 // pred_region
        %s207 = ssub.s32 %s15, 1
        // Predicated region
        $region13: #{tpu_custom_call.1} parent=11 // pred_check
          %p208 = pneg %p62
        $region14: #{tpu_custom_call.1} parent=11 // pred_check_branch
          %210 = sbr.rel (%p208) target = $region16
        $region15: #{tpu_custom_call.1} parent=11 // pred_region
          %s212 = ssub.s32 640, 640
          %213 = vsyncadd [#allocation3], %s212
          %s214 = sshll.u32 [#allocation2], 4
          %s215 = int_to_ptr.vmem [resolvable:$true] %s214
          %220 = dma.hbm_to_vmem [thread:$0]  %s1, 640, %s215, [#allocation3], 128, 128, 8
        $region16: #{tpu_custom_call.1} parent=11 // pred_fallthru
          _
        // Predicated region
        $region17: #{tpu_custom_call.1} parent=11 // pred_check
          %p221 = pneg %p83
        $region18: #{tpu_custom_call.1} parent=11 // pred_check_branch
          %223 = sbr.rel (%p221) target = $region20
        $region19: #{tpu_custom_call.1} parent=11 // pred_region
          _
        $region20: #{tpu_custom_call.1} parent=11 // pred_fallthru
          _
        // Predicated region
        $region21: #{tpu_custom_call.1} parent=11 // pred_check
          %p224 = pneg %p104
        $region22: #{tpu_custom_call.1} parent=11 // pred_check_branch
          %226 = sbr.rel (%p224) target = $region24
        $region23: #{tpu_custom_call.1} parent=11 // pred_region
          %s228 = ssub.s32 1152, 1152
          %229 = vsyncadd [#allocation5], %s228
          %s230 = sshll.u32 [#allocation4], 4
          %s231 = int_to_ptr.vmem [resolvable:$true] %s230
          %236 = dma.hbm_to_vmem [thread:$0]  %s3, 1152, %s231, [#allocation5], 128, 128, 8
        $region24: #{tpu_custom_call.1} parent=11 // pred_fallthru
          _
        // Predicated region
        $region25: #{tpu_custom_call.1} parent=11 // pred_check
          %p237 = pneg %p125
        $region26: #{tpu_custom_call.1} parent=11 // pred_check_branch
          %239 = sbr.rel (%p237) target = $region28
        $region27: #{tpu_custom_call.1} parent=11 // pred_region
          _
        $region28: #{tpu_custom_call.1} parent=11 // pred_fallthru
          _
        // Predicated region
        $region29: #{tpu_custom_call.1} parent=11 // pred_check
          %p240 = pneg %p146
        $region30: #{tpu_custom_call.1} parent=11 // pred_check_branch
          %242 = sbr.rel (%p240) target = $region32
        $region31: #{tpu_custom_call.1} parent=11 // pred_region
          %s244 = ssub.s32 4096, 4096
          %245 = vsyncadd [#allocation5], %s244
          %s246 = sshll.u32 [#allocation6], 4
          %s247 = int_to_ptr.vmem [resolvable:$true] %s246
          %252 = dma.hbm_to_vmem [thread:$0]  %s5, 4096, %s247, [#allocation5], 128, 128, 8
        $region32: #{tpu_custom_call.1} parent=11 // pred_fallthru
          _
        // Predicated region
        $region33: #{tpu_custom_call.1} parent=11 // pred_check
          %p253 = pneg %p167
        $region34: #{tpu_custom_call.1} parent=11 // pred_check_branch
          %255 = sbr.rel (%p253) target = $region36
        $region35: #{tpu_custom_call.1} parent=11 // pred_region
          _
        $region36: #{tpu_custom_call.1} parent=11 // pred_fallthru
          _
      $region12: #{tpu_custom_call.1} parent=5 // pred_fallthru
        _
      %p256 = scmp.lt.s32.totalorder %s15, 2
      // Predicated region
      $region37: #{tpu_custom_call.1} parent=5 // pred_check
        %p257 = pneg %p256
      $region38: #{tpu_custom_call.1} parent=5 // pred_check_branch
        %259 = sbr.rel (%p257) target = $region40
      $region39: #{tpu_custom_call.1} parent=5 // pred_region
        // Predicated region
        $region41: #{tpu_custom_call.1} parent=39 // pred_check
          %p260 = pneg %p35
        $region42: #{tpu_custom_call.1} parent=39 // pred_check_branch
          %262 = sbr.rel (%p260) target = $region44
        $region43: #{tpu_custom_call.1} parent=39 // pred_region
          %p263 = scmp.lt.s32.totalorder %s15, 1
          %s264 = scalar_select %p263, %s15, 1
          %s265 = smul.addr %s264, 8
          %s266 = smul.addr %s265, 8
          %s267 = scalar_lea.vmem %s0, %s266
        $region44: #{tpu_custom_call.1} parent=39 // pred_fallthru
          _
      $region40: #{tpu_custom_call.1} parent=5 // pred_fallthru
        _
      %p268 = scmp.le.s32.totalorder 1, %s15
      %p269 = scmp.lt.s32.totalorder %s15, 3
      %p270 = pnand %p268, %p269
      %p271 = pneg %p270
      // Predicated region
      $region45: #{tpu_custom_call.1} parent=5 // pred_check
        _
      $region46: #{tpu_custom_call.1} parent=5 // pred_check_branch
        %273 = sbr.rel (%p270) target = $region48
      $region47: #{tpu_custom_call.1} parent=5 // pred_region
        %s274 = ssub.s32 %s15, 1
        // Predicated region
        $region49: #{tpu_custom_call.1} parent=47 // pred_check
          %p275 = pneg %p62
        $region50: #{tpu_custom_call.1} parent=47 // pred_check_branch
          %277 = sbr.rel (%p275) target = $region52
        $region51: #{tpu_custom_call.1} parent=47 // pred_region
          %278 = dma.done [#allocation3], 640
        $region52: #{tpu_custom_call.1} parent=47 // pred_fallthru
          _
        // Predicated region
        $region53: #{tpu_custom_call.1} parent=47 // pred_check
          %p279 = pneg %p104
        $region54: #{tpu_custom_call.1} parent=47 // pred_check_branch
          %281 = sbr.rel (%p279) target = $region56
        $region55: #{tpu_custom_call.1} parent=47 // pred_region
          %282 = dma.done [#allocation5], 1152
        $region56: #{tpu_custom_call.1} parent=47 // pred_fallthru
          _
        // Predicated region
        $region57: #{tpu_custom_call.1} parent=47 // pred_check
          %p283 = pneg %p146
        $region58: #{tpu_custom_call.1} parent=47 // pred_check_branch
          %285 = sbr.rel (%p283) target = $region60
        $region59: #{tpu_custom_call.1} parent=47 // pred_region
          %286 = dma.done [#allocation5], 4096
        $region60: #{tpu_custom_call.1} parent=47 // pred_fallthru
          _
        %p287 = scmp.lt.s32.totalorder %s20, 1
        %s288 = scalar_select %p287, %s20, 1
        %s289 = smul.addr %s288, 8
        %s290 = smul.addr %s289, 8
        %s291 = scalar_lea.vmem %s0, %s290
        %p292 = pneg %p41
        %p293 = pneg %p38
        %p294 = pneg %p62
        %p295 = pneg %p59
        %p296 = pneg %p83
        %p297 = pneg %p80
        %p298 = pneg %p104
        %p299 = pneg %p101
        %p300 = pneg %p125
        %p301 = pneg %p122
        %p302 = pneg %p146
        %p303 = pneg %p143
        %p304 = pneg %p167
        %p305 = pneg %p164
        %p306 = pneg %p193
        %p307 = pneg %p190
        %p308 = scmp.lt.s32.totalorder %s20, 1
        %s309 = scalar_select %p308, %s20, 1
        %s310 = smul.addr %s309, 32
        %s311 = smul.addr %s310, 8
        %s312 = scalar_lea.vmem %s7, %s311
        %p313 = scmp.lt.s32.totalorder %s20, 1
        %s314 = scalar_select %p313, %s20, 1
        %s315 = smul.addr %s314, 8
        %s316 = smul.addr %s315, 8
        %s317 = scalar_lea.vmem %s0, %s316
        %p318 = scmp.lt.s32.totalorder %s20, 1
        %s319 = scalar_select %p318, %s20, 1
        %s320 = smul.addr %s319, 32
        %s321 = smul.addr %s320, 8
        %s322 = scalar_lea.vmem %s7, %s321
        %v323 = vlaneseq
        %v324 = vand.u32 %v323, 127
        %vm325 = vcmp.lt.s32.totalorder %v324, 0
        %v326 = vsub.s32 0, %v324
        %v327 = vsel %vm325, %v326, %v324
        %v328 = vshrl.u32 %v327, 4
        %v329 = vand.u32 %v327, 15
        %v330 = vsub.s32 0, %v329
        %v331 = vsel %vm325, %v330, %v329
        %vm332 = vcmp.ne.s32.totalorder %v331, 0
        %vm333 = vcmp.lt.s32.totalorder %v331, 0
        %vm334 = vmand %vm333, %vm332
        %v335 = vadd.s32 %v331, 16
        %v336 = vsel %vm334, %v335, %v331
        %v337 = vlaneseq
        %v338 = vshrl.u32 %v337, 7
        %v339 = vadd.s32 %v338, 8
        %vm340 = vcmp.gt.s32.totalorder %v336, 0
        %vm341 = vcmp.lt.s32.totalorder %v336, 15
        %vm342 = vcmp.gt.s32.totalorder %v338, 0
        %vm343 = vcmp.gt.s32.totalorder %v339, 0
        %vm344 = vcmp.lt.s32.totalorder %v338, 15
        %vm345 = vcmp.lt.s32.totalorder %v339, 15
        %v346 = vld [vmem:[%s317] sm:$0xff]
        %v347 = vld [vmem:[%s317 + $0x8] sm:$0xff]
        %348 = vrot.lane.b32.xlu0 %v346, 1
        %v349 = vpop.permute.xlu0 %348
        %350 = vrot.lane.b32.xlu0 %v347, 1
        %v351 = vpop.permute.xlu0 %350
        %v352 = vsel %vm340, %v349, 0.0
        %v353 = vsel %vm340, %v351, 0.0
        %354 = vrot.lane.b32.xlu0 %v346, 127
        %v355 = vpop.permute.xlu0 %354
        %356 = vrot.lane.b32.xlu0 %v347, 127
        %v357 = vpop.permute.xlu0 %356
        %v358 = vsel %vm341, %v355, 0.0
        %v359 = vsel %vm341, %v357, 0.0
        %v360 = vrot.slane %v352, 7
        %v361 = vrot.slane %v353, 7
        %vm362 = vcmp.lt.s32.totalorder %v338, 1
        %v363 = vsel %vm362, %v360, %v361
        %v364 = vsel %vm362, %v361, %v360
        %v365 = vsel %vm342, %v364, 0.0
        %v366 = vsel %vm343, %v363, 0.0
        %v367 = vld [vmem:[#allocation2] sm:$0x1]
        %v368 = vlaneseq
        %v369 = vshrl.u32 %v368, 7
        %v370 = vsub.s32 0, %v369
        %v371 = vrot.slane %v367, %v370
        %v372 = vmul.f32 %v365, %v371
        %v373 = vmul.f32 %v366, %v371
        %v374 = vadd.f32 %v372, 0.0
        %v375 = vadd.f32 %v373, 0.0
        %v376 = vrot.slane %v346, 7
        %v377 = vrot.slane %v347, 7
        %v378 = vsel %vm362, %v376, %v377
        %v379 = vsel %vm362, %v377, %v376
        %v380 = vsel %vm342, %v379, 0.0
        %v381 = vsel %vm343, %v378, 0.0
        %v382 = vld [vmem:[#allocation2 + $0x1] sm:$0x1]
        %v383 = vlaneseq
        %v384 = vshrl.u32 %v383, 7
        %v385 = vsub.s32 0, %v384
        %v386 = vrot.slane %v382, %v385
        %v387 = vmul.f32 %v380, %v386
        %v388 = vmul.f32 %v381, %v386
        %v389 = vadd.f32 %v374, %v387
        %v390 = vadd.f32 %v375, %v388
        %v391 = vrot.slane %v358, 7
        %v392 = vrot.slane %v359, 7
        %v393 = vsel %vm362, %v391, %v392
        %v394 = vsel %vm362, %v392, %v391
        %v395 = vsel %vm342, %v394, 0.0
        %v396 = vsel %vm343, %v393, 0.0
        %v397 = vld [vmem:[#allocation2 + $0x2] sm:$0x1]
        %v398 = vlaneseq
        %v399 = vshrl.u32 %v398, 7
        %v400 = vsub.s32 0, %v399
        %v401 = vrot.slane %v397, %v400
        %v402 = vmul.f32 %v395, %v401
        %v403 = vmul.f32 %v396, %v401
        %v404 = vadd.f32 %v389, %v402
        %v405 = vadd.f32 %v390, %v403
        %v406 = vld [vmem:[#allocation2 + $0x3] sm:$0x1]
        %v407 = vlaneseq
        %v408 = vshrl.u32 %v407, 7
        %v409 = vsub.s32 0, %v408
        %v410 = vrot.slane %v406, %v409
        %v411 = vmul.f32 %v352, %v410
        %v412 = vmul.f32 %v353, %v410
        %v413 = vadd.f32 %v404, %v411
        %v414 = vadd.f32 %v405, %v412
        %v415 = vld [vmem:[#allocation2 + $0x4] sm:$0x1]
        %v416 = vlaneseq
        %v417 = vshrl.u32 %v416, 7
        %v418 = vsub.s32 0, %v417
        %v419 = vrot.slane %v415, %v418
        %v420 = vmul.f32 %v346, %v419
        %v421 = vmul.f32 %v347, %v419
        %v422 = vadd.f32 %v413, %v420
        %v423 = vadd.f32 %v414, %v421
        %v424 = vld [vmem:[#allocation2 + $0x5] sm:$0x1]
        %v425 = vlaneseq
        %v426 = vshrl.u32 %v425, 7
        %v427 = vsub.s32 0, %v426
        %v428 = vrot.slane %v424, %v427
        %v429 = vmul.f32 %v358, %v428
        %v430 = vmul.f32 %v359, %v428
        %v431 = vadd.f32 %v422, %v429
        %v432 = vadd.f32 %v423, %v430
        %v433 = vrot.slane %v352, 1
        %v434 = vrot.slane %v353, 1
        %vm435 = vcmp.lt.s32.totalorder %v338, 7
        %v436 = vsel %vm435, %v433, %v434
        %v437 = vsel %vm435, %v434, %v433
        %v438 = vsel %vm344, %v436, 0.0
        %v439 = vsel %vm345, %v437, 0.0
        %v440 = vld [vmem:[#allocation2 + $0x6] sm:$0x1]
        %v441 = vlaneseq
        %v442 = vshrl.u32 %v441, 7
        %v443 = vsub.s32 0, %v442
        %v444 = vrot.slane %v440, %v443
        %v445 = vmul.f32 %v438, %v444
        %v446 = vmul.f32 %v439, %v444
        %v447 = vadd.f32 %v431, %v445
        %v448 = vadd.f32 %v432, %v446
        %v449 = vrot.slane %v346, 1
        %v450 = vrot.slane %v347, 1
        %v451 = vsel %vm435, %v449, %v450
        %v452 = vsel %vm435, %v450, %v449
        %v453 = vsel %vm344, %v451, 0.0
        %v454 = vsel %vm345, %v452, 0.0
        %v455 = vld [vmem:[#allocation2 + $0x7] sm:$0x1]
        %v456 = vlaneseq
        %v457 = vshrl.u32 %v456, 7
        %v458 = vsub.s32 0, %v457
        %v459 = vrot.slane %v455, %v458
        %v460 = vmul.f32 %v453, %v459
        %v461 = vmul.f32 %v454, %v459
        %v462 = vadd.f32 %v447, %v460
        %v463 = vadd.f32 %v448, %v461
        %v464 = vrot.slane %v358, 1
        %v465 = vrot.slane %v359, 1
        %v466 = vsel %vm435, %v464, %v465
        %v467 = vsel %vm435, %v465, %v464
        %v468 = vsel %vm344, %v466, 0.0
        %v469 = vsel %vm345, %v467, 0.0
        %v470 = vld [vmem:[#allocation2 + $0x8] sm:$0x1]
        %v471 = vlaneseq
        %v472 = vshrl.u32 %v471, 7
        %v473 = vsub.s32 0, %v472
        %v474 = vrot.slane %v470, %v473
        %v475 = vmul.f32 %v468, %v474
        %v476 = vmul.f32 %v469, %v474
        %v477 = vadd.f32 %v462, %v475
        %v478 = vadd.f32 %v463, %v476
        %s479 = scalar_lea.vmem %s317, 16
        %v480 = vld [vmem:[%s479] sm:$0xff]
        %v481 = vld [vmem:[%s479 + $0x8] sm:$0xff]
        %482 = vrot.lane.b32.xlu0 %v480, 1
        %v483 = vpop.permute.xlu0 %482
        %484 = vrot.lane.b32.xlu0 %v481, 1
        %v485 = vpop.permute.xlu0 %484
        %v486 = vsel %vm340, %v483, 0.0
        %v487 = vsel %vm340, %v485, 0.0
        %488 = vrot.lane.b32.xlu0 %v480, 127
        %v489 = vpop.permute.xlu0 %488
        %490 = vrot.lane.b32.xlu0 %v481, 127
        %v491 = vpop.permute.xlu0 %490
        %v492 = vsel %vm341, %v489, 0.0
        %v493 = vsel %vm341, %v491, 0.0
        %v494 = vrot.slane %v486, 7
        %v495 = vrot.slane %v487, 7
        %v496 = vsel %vm362, %v494, %v495
        %v497 = vsel %vm362, %v495, %v494
        %v498 = vsel %vm342, %v497, 0.0
        %v499 = vsel %vm343, %v496, 0.0
        %v500 = vld [vmem:[#allocation2 + $0x9] sm:$0x1]
        %v501 = vlaneseq
        %v502 = vshrl.u32 %v501, 7
        %v503 = vsub.s32 0, %v502
        %v504 = vrot.slane %v500, %v503
        %v505 = vmul.f32 %v498, %v504
        %v506 = vmul.f32 %v499, %v504
        %v507 = vadd.f32 %v477, %v505
        %v508 = vadd.f32 %v478, %v506
        %v509 = vrot.slane %v480, 7
        %v510 = vrot.slane %v481, 7
        %v511 = vsel %vm362, %v509, %v510
        %v512 = vsel %vm362, %v510, %v509
        %v513 = vsel %vm342, %v512, 0.0
        %v514 = vsel %vm343, %v511, 0.0
        %v515 = vld [vmem:[#allocation2 + $0xa] sm:$0x1]
        %v516 = vlaneseq
        %v517 = vshrl.u32 %v516, 7
        %v518 = vsub.s32 0, %v517
        %v519 = vrot.slane %v515, %v518
        %v520 = vmul.f32 %v513, %v519
        %v521 = vmul.f32 %v514, %v519
        %v522 = vadd.f32 %v507, %v520
        %v523 = vadd.f32 %v508, %v521
        %v524 = vrot.slane %v492, 7
        %v525 = vrot.slane %v493, 7
        %v526 = vsel %vm362, %v524, %v525
        %v527 = vsel %vm362, %v525, %v524
        %v528 = vsel %vm342, %v527, 0.0
        %v529 = vsel %vm343, %v526, 0.0
        %v530 = vld [vmem:[#allocation2 + $0xb] sm:$0x1]
        %v531 = vlaneseq
        %v532 = vshrl.u32 %v531, 7
        %v533 = vsub.s32 0, %v532
        %v534 = vrot.slane %v530, %v533
        %v535 = vmul.f32 %v528, %v534
        %v536 = vmul.f32 %v529, %v534
        %v537 = vadd.f32 %v522, %v535
        %v538 = vadd.f32 %v523, %v536
        %v539 = vld [vmem:[#allocation2 + $0xc] sm:$0x1]
        %v540 = vlaneseq
        %v541 = vshrl.u32 %v540, 7
        %v542 = vsub.s32 0, %v541
        %v543 = vrot.slane %v539, %v542
        %v544 = vmul.f32 %v486, %v543
        %v545 = vmul.f32 %v487, %v543
        %v546 = vadd.f32 %v537, %v544
        %v547 = vadd.f32 %v538, %v545
        %v548 = vld [vmem:[#allocation2 + $0xd] sm:$0x1]
        %v549 = vlaneseq
        %v550 = vshrl.u32 %v549, 7
        %v551 = vsub.s32 0, %v550
        %v552 = vrot.slane %v548, %v551
        %v553 = vmul.f32 %v480, %v552
        %v554 = vmul.f32 %v481, %v552
        %v555 = vadd.f32 %v546, %v553
        %v556 = vadd.f32 %v547, %v554
        %v557 = vld [vmem:[#allocation2 + $0xe] sm:$0x1]
        %v558 = vlaneseq
        %v559 = vshrl.u32 %v558, 7
        %v560 = vsub.s32 0, %v559
        %v561 = vrot.slane %v557, %v560
        %v562 = vmul.f32 %v492, %v561
        %v563 = vmul.f32 %v493, %v561
        %v564 = vadd.f32 %v555, %v562
        %v565 = vadd.f32 %v556, %v563
        %v566 = vrot.slane %v486, 1
        %v567 = vrot.slane %v487, 1
        %v568 = vsel %vm435, %v566, %v567
        %v569 = vsel %vm435, %v567, %v566
        %v570 = vsel %vm344, %v568, 0.0
        %v571 = vsel %vm345, %v569, 0.0
        %v572 = vld [vmem:[#allocation2 + $0xf] sm:$0x1]
        %v573 = vlaneseq
        %v574 = vshrl.u32 %v573, 7
        %v575 = vsub.s32 0, %v574
        %v576 = vrot.slane %v572, %v575
        %v577 = vmul.f32 %v570, %v576
        %v578 = vmul.f32 %v571, %v576
        %v579 = vadd.f32 %v564, %v577
        %v580 = vadd.f32 %v565, %v578
        %v581 = vrot.slane %v480, 1
        %v582 = vrot.slane %v481, 1
        %v583 = vsel %vm435, %v581, %v582
        %v584 = vsel %vm435, %v582, %v581
        %v585 = vsel %vm344, %v583, 0.0
        %v586 = vsel %vm345, %v584, 0.0
        %v587 = vld [vmem:[#allocation2 + $0x10] sm:$0x1]
        %v588 = vlaneseq
        %v589 = vshrl.u32 %v588, 7
        %v590 = vsub.s32 0, %v589
        %v591 = vrot.slane %v587, %v590
        %v592 = vmul.f32 %v585, %v591
        %v593 = vmul.f32 %v586, %v591
        %v594 = vadd.f32 %v579, %v592
        %v595 = vadd.f32 %v580, %v593
        %v596 = vrot.slane %v492, 1
        %v597 = vrot.slane %v493, 1
        %v598 = vsel %vm435, %v596, %v597
        %v599 = vsel %vm435, %v597, %v596
        %v600 = vsel %vm344, %v598, 0.0
        %v601 = vsel %vm345, %v599, 0.0
        %v602 = vld [vmem:[#allocation2 + $0x11] sm:$0x1]
        %v603 = vlaneseq
        %v604 = vshrl.u32 %v603, 7
        %v605 = vsub.s32 0, %v604
        %v606 = vrot.slane %v602, %v605
        %v607 = vmul.f32 %v600, %v606
        %v608 = vmul.f32 %v601, %v606
        %v609 = vadd.f32 %v594, %v607
        %v610 = vadd.f32 %v595, %v608
        %s611 = scalar_lea.vmem %s317, 32
        %v612 = vld [vmem:[%s611] sm:$0xff]
        %v613 = vld [vmem:[%s611 + $0x8] sm:$0xff]
        %614 = vrot.lane.b32.xlu0 %v612, 1
        %v615 = vpop.permute.xlu0 %614
        %616 = vrot.lane.b32.xlu0 %v613, 1
        %v617 = vpop.permute.xlu0 %616
        %v618 = vsel %vm340, %v615, 0.0
        %v619 = vsel %vm340, %v617, 0.0
        %620 = vrot.lane.b32.xlu0 %v612, 127
        %v621 = vpop.permute.xlu0 %620
        %622 = vrot.lane.b32.xlu0 %v613, 127
        %v623 = vpop.permute.xlu0 %622
        %v624 = vsel %vm341, %v621, 0.0
        %v625 = vsel %vm341, %v623, 0.0
        %v626 = vrot.slane %v618, 7
        %v627 = vrot.slane %v619, 7
        %v628 = vsel %vm362, %v626, %v627
        %v629 = vsel %vm362, %v627, %v626
        %v630 = vsel %vm342, %v629, 0.0
        %v631 = vsel %vm343, %v628, 0.0
        %v632 = vld [vmem:[#allocation2 + $0x12] sm:$0x1]
        %v633 = vlaneseq
        %v634 = vshrl.u32 %v633, 7
        %v635 = vsub.s32 0, %v634
        %v636 = vrot.slane %v632, %v635
        %v637 = vmul.f32 %v630, %v636
        %v638 = vmul.f32 %v631, %v636
        %v639 = vadd.f32 %v609, %v637
        %v640 = vadd.f32 %v610, %v638
        %v641 = vrot.slane %v612, 7
        %v642 = vrot.slane %v613, 7
        %v643 = vsel %vm362, %v641, %v642
        %v644 = vsel %vm362, %v642, %v641
        %v645 = vsel %vm342, %v644, 0.0
        %v646 = vsel %vm343, %v643, 0.0
        %v647 = vld [vmem:[#allocation2 + $0x13] sm:$0x1]
        %v648 = vlaneseq
        %v649 = vshrl.u32 %v648, 7
        %v650 = vsub.s32 0, %v649
        %v651 = vrot.slane %v647, %v650
        %v652 = vmul.f32 %v645, %v651
        %v653 = vmul.f32 %v646, %v651
        %v654 = vadd.f32 %v639, %v652
        %v655 = vadd.f32 %v640, %v653
        %v656 = vrot.slane %v624, 7
        %v657 = vrot.slane %v625, 7
        %v658 = vsel %vm362, %v656, %v657
        %v659 = vsel %vm362, %v657, %v656
        %v660 = vsel %vm342, %v659, 0.0
        %v661 = vsel %vm343, %v658, 0.0
        %v662 = vld [vmem:[#allocation2 + $0x14] sm:$0x1]
        %v663 = vlaneseq
        %v664 = vshrl.u32 %v663, 7
        %v665 = vsub.s32 0, %v664
        %v666 = vrot.slane %v662, %v665
        %v667 = vmul.f32 %v660, %v666
        %v668 = vmul.f32 %v661, %v666
        %v669 = vadd.f32 %v654, %v667
        %v670 = vadd.f32 %v655, %v668
        %v671 = vld [vmem:[#allocation2 + $0x15] sm:$0x1]
        %v672 = vlaneseq
        %v673 = vshrl.u32 %v672, 7
        %v674 = vsub.s32 0, %v673
        %v675 = vrot.slane %v671, %v674
        %v676 = vmul.f32 %v618, %v675
        %v677 = vmul.f32 %v619, %v675
        %v678 = vadd.f32 %v669, %v676
        %v679 = vadd.f32 %v670, %v677
        %v680 = vld [vmem:[#allocation2 + $0x16] sm:$0x1]
        %v681 = vlaneseq
        %v682 = vshrl.u32 %v681, 7
        %v683 = vsub.s32 0, %v682
        %v684 = vrot.slane %v680, %v683
        %v685 = vmul.f32 %v612, %v684
        %v686 = vmul.f32 %v613, %v684
        %v687 = vadd.f32 %v678, %v685
        %v688 = vadd.f32 %v679, %v686
        %v689 = vld [vmem:[#allocation2 + $0x17] sm:$0x1]
        %v690 = vlaneseq
        %v691 = vshrl.u32 %v690, 7
        %v692 = vsub.s32 0, %v691
        %v693 = vrot.slane %v689, %v692
        %v694 = vmul.f32 %v624, %v693
        %v695 = vmul.f32 %v625, %v693
        %v696 = vadd.f32 %v687, %v694
        %v697 = vadd.f32 %v688, %v695
        %v698 = vrot.slane %v618, 1
        %v699 = vrot.slane %v619, 1
        %v700 = vsel %vm435, %v698, %v699
        %v701 = vsel %vm435, %v699, %v698
        %v702 = vsel %vm344, %v700, 0.0
        %v703 = vsel %vm345, %v701, 0.0
        %v704 = vld [vmem:[#allocation2 + $0x18] sm:$0x1]
        %v705 = vlaneseq
        %v706 = vshrl.u32 %v705, 7
        %v707 = vsub.s32 0, %v706
        %v708 = vrot.slane %v704, %v707
        %v709 = vmul.f32 %v702, %v708
        %v710 = vmul.f32 %v703, %v708
        %v711 = vadd.f32 %v696, %v709
        %v712 = vadd.f32 %v697, %v710
        %v713 = vrot.slane %v612, 1
        %v714 = vrot.slane %v613, 1
        %v715 = vsel %vm435, %v713, %v714
        %v716 = vsel %vm435, %v714, %v713
        %v717 = vsel %vm344, %v715, 0.0
        %v718 = vsel %vm345, %v716, 0.0
        %v719 = vld [vmem:[#allocation2 + $0x19] sm:$0x1]
        %v720 = vlaneseq
        %v721 = vshrl.u32 %v720, 7
        %v722 = vsub.s32 0, %v721
        %v723 = vrot.slane %v719, %v722
        %v724 = vmul.f32 %v717, %v723
        %v725 = vmul.f32 %v718, %v723
        %v726 = vadd.f32 %v711, %v724
        %v727 = vadd.f32 %v712, %v725
        %v728 = vrot.slane %v624, 1
        %v729 = vrot.slane %v625, 1
        %v730 = vsel %vm435, %v728, %v729
        %v731 = vsel %vm435, %v729, %v728
        %v732 = vsel %vm344, %v730, 0.0
        %v733 = vsel %vm345, %v731, 0.0
        %v734 = vld [vmem:[#allocation2 + $0x1a] sm:$0x1]
        %v735 = vlaneseq
        %v736 = vshrl.u32 %v735, 7
        %v737 = vsub.s32 0, %v736
        %v738 = vrot.slane %v734, %v737
        %v739 = vmul.f32 %v732, %v738
        %v740 = vmul.f32 %v733, %v738
        %v741 = vadd.f32 %v726, %v739
        %v742 = vadd.f32 %v727, %v740
        %s743 = scalar_lea.vmem %s317, 48
        %v744 = vld [vmem:[%s743] sm:$0xff]
        %v745 = vld [vmem:[%s743 + $0x8] sm:$0xff]
        %746 = vrot.lane.b32.xlu0 %v744, 1
        %v747 = vpop.permute.xlu0 %746
        %748 = vrot.lane.b32.xlu0 %v745, 1
        %v749 = vpop.permute.xlu0 %748
        %v750 = vsel %vm340, %v747, 0.0
        %v751 = vsel %vm340, %v749, 0.0
        %752 = vrot.lane.b32.xlu0 %v744, 127
        %v753 = vpop.permute.xlu0 %752
        %754 = vrot.lane.b32.xlu0 %v745, 127
        %v755 = vpop.permute.xlu0 %754
        %v756 = vsel %vm341, %v753, 0.0
        %v757 = vsel %vm341, %v755, 0.0
        %v758 = vrot.slane %v750, 7
        %v759 = vrot.slane %v751, 7
        %v760 = vsel %vm362, %v758, %v759
        %v761 = vsel %vm362, %v759, %v758
        %v762 = vsel %vm342, %v761, 0.0
        %v763 = vsel %vm343, %v760, 0.0
        %v764 = vld [vmem:[#allocation2 + $0x1b] sm:$0x1]
        %v765 = vlaneseq
        %v766 = vshrl.u32 %v765, 7
        %v767 = vsub.s32 0, %v766
        %v768 = vrot.slane %v764, %v767
        %v769 = vmul.f32 %v762, %v768
        %v770 = vmul.f32 %v763, %v768
        %v771 = vadd.f32 %v741, %v769
        %v772 = vadd.f32 %v742, %v770
        %v773 = vrot.slane %v744, 7
        %v774 = vrot.slane %v745, 7
        %v775 = vsel %vm362, %v773, %v774
        %v776 = vsel %vm362, %v774, %v773
        %v777 = vsel %vm342, %v776, 0.0
        %v778 = vsel %vm343, %v775, 0.0
        %v779 = vld [vmem:[#allocation2 + $0x1c] sm:$0x1]
        %v780 = vlaneseq
        %v781 = vshrl.u32 %v780, 7
        %v782 = vsub.s32 0, %v781
        %v783 = vrot.slane %v779, %v782
        %v784 = vmul.f32 %v777, %v783
        %v785 = vmul.f32 %v778, %v783
        %v786 = vadd.f32 %v771, %v784
        %v787 = vadd.f32 %v772, %v785
        %v788 = vrot.slane %v756, 7
        %v789 = vrot.slane %v757, 7
        %v790 = vsel %vm362, %v788, %v789
        %v791 = vsel %vm362, %v789, %v788
        %v792 = vsel %vm342, %v791, 0.0
        %v793 = vsel %vm343, %v790, 0.0
        %v794 = vld [vmem:[#allocation2 + $0x1d] sm:$0x1]
        %v795 = vlaneseq
        %v796 = vshrl.u32 %v795, 7
        %v797 = vsub.s32 0, %v796
        %v798 = vrot.slane %v794, %v797
        %v799 = vmul.f32 %v792, %v798
        %v800 = vmul.f32 %v793, %v798
        %v801 = vadd.f32 %v786, %v799
        %v802 = vadd.f32 %v787, %v800
        %v803 = vld [vmem:[#allocation2 + $0x1e] sm:$0x1]
        %v804 = vlaneseq
        %v805 = vshrl.u32 %v804, 7
        %v806 = vsub.s32 0, %v805
        %v807 = vrot.slane %v803, %v806
        %v808 = vmul.f32 %v750, %v807
        %v809 = vmul.f32 %v751, %v807
        %v810 = vadd.f32 %v801, %v808
        %v811 = vadd.f32 %v802, %v809
        %v812 = vld [vmem:[#allocation2 + $0x1f] sm:$0x1]
        %v813 = vlaneseq
        %v814 = vshrl.u32 %v813, 7
        %v815 = vsub.s32 0, %v814
        %v816 = vrot.slane %v812, %v815
        %v817 = vmul.f32 %v744, %v816
        %v818 = vmul.f32 %v745, %v816
        %v819 = vadd.f32 %v810, %v817
        %v820 = vadd.f32 %v811, %v818
        %v821 = vld [vmem:[#allocation2 + $0x20] sm:$0x1]
        %v822 = vlaneseq
        %v823 = vshrl.u32 %v822, 7
        %v824 = vsub.s32 0, %v823
        %v825 = vrot.slane %v821, %v824
        %v826 = vmul.f32 %v756, %v825
        %v827 = vmul.f32 %v757, %v825
        %v828 = vadd.f32 %v819, %v826
        %v829 = vadd.f32 %v820, %v827
        %v830 = vrot.slane %v750, 1
        %v831 = vrot.slane %v751, 1
        %v832 = vsel %vm435, %v830, %v831
        %v833 = vsel %vm435, %v831, %v830
        %v834 = vsel %vm344, %v832, 0.0
        %v835 = vsel %vm345, %v833, 0.0
        %v836 = vld [vmem:[#allocation2 + $0x21] sm:$0x1]
        %v837 = vlaneseq
        %v838 = vshrl.u32 %v837, 7
        %v839 = vsub.s32 0, %v838
        %v840 = vrot.slane %v836, %v839
        %v841 = vmul.f32 %v834, %v840
        %v842 = vmul.f32 %v835, %v840
        %v843 = vadd.f32 %v828, %v841
        %v844 = vadd.f32 %v829, %v842
        %v845 = vrot.slane %v744, 1
        %v846 = vrot.slane %v745, 1
        %v847 = vsel %vm435, %v845, %v846
        %v848 = vsel %vm435, %v846, %v845
        %v849 = vsel %vm344, %v847, 0.0
        %v850 = vsel %vm345, %v848, 0.0
        %v851 = vld [vmem:[#allocation2 + $0x22] sm:$0x1]
        %v852 = vlaneseq
        %v853 = vshrl.u32 %v852, 7
        %v854 = vsub.s32 0, %v853
        %v855 = vrot.slane %v851, %v854
        %v856 = vmul.f32 %v849, %v855
        %v857 = vmul.f32 %v850, %v855
        %v858 = vadd.f32 %v843, %v856
        %v859 = vadd.f32 %v844, %v857
        %v860 = vrot.slane %v756, 1
        %v861 = vrot.slane %v757, 1
        %v862 = vsel %vm435, %v860, %v861
        %v863 = vsel %vm435, %v861, %v860
        %v864 = vsel %vm344, %v862, 0.0
        %v865 = vsel %vm345, %v863, 0.0
        %v866 = vld [vmem:[#allocation2 + $0x23] sm:$0x1]
        %v867 = vlaneseq
        %v868 = vshrl.u32 %v867, 7
        %v869 = vsub.s32 0, %v868
        %v870 = vrot.slane %v866, %v869
        %v871 = vmul.f32 %v864, %v870
        %v872 = vmul.f32 %v865, %v870
        %v873 = vadd.f32 %v858, %v871
        %v874 = vadd.f32 %v859, %v872
        %v875 = vld [vmem:[%s2] sm:$0x1]
        %v877 = vlaneseq
        %v878 = vshrl.u32 %v877, 7
        %v879 = vsub.s32 0, %v878
        %v880 = vrot.slane %v875, %v879
        %v882 = vadd.f32 %v873, %v880
        %v883 = vadd.f32 %v874, %v880
        %v884 = vmax.f32 %v882, 0.0
        %v885 = vmax.f32 %v883, 0.0
        %886 = vrot.lane.b32.xlu0 %v884, 1
        %v887 = vpop.permute.xlu0 %886
        %888 = vrot.lane.b32.xlu0 %v885, 1
        %v889 = vpop.permute.xlu0 %888
        %v890 = vsel %vm340, %v887, 0.0
        %v891 = vsel %vm340, %v889, 0.0
        %892 = vrot.lane.b32.xlu0 %v884, 127
        %v893 = vpop.permute.xlu0 %892
        %894 = vrot.lane.b32.xlu0 %v885, 127
        %v895 = vpop.permute.xlu0 %894
        %v896 = vsel %vm341, %v893, 0.0
        %v897 = vsel %vm341, %v895, 0.0
        %v898 = vrot.slane %v890, 7
        %v899 = vrot.slane %v891, 7
        %v900 = vsel %vm362, %v898, %v899
        %v901 = vsel %vm362, %v899, %v898
        %v902 = vsel %vm342, %v901, 0.0
        %v903 = vsel %vm343, %v900, 0.0
        %v904 = vld [vmem:[#allocation4] sm:$0x1]
        %v905 = vlaneseq
        %v906 = vshrl.u32 %v905, 7
        %v907 = vsub.s32 0, %v906
        %v908 = vrot.slane %v904, %v907
        %v909 = vmul.f32 %v902, %v908
        %v910 = vmul.f32 %v903, %v908
        %v911 = vadd.f32 %v909, 0.0
        %v912 = vadd.f32 %v910, 0.0
        %v913 = vrot.slane %v884, 7
        %v914 = vrot.slane %v885, 7
        %v915 = vsel %vm362, %v913, %v914
        %v916 = vsel %vm362, %v914, %v913
        %v917 = vsel %vm342, %v916, 0.0
        %v918 = vsel %vm343, %v915, 0.0
        %v919 = vld [vmem:[#allocation4 + $0x1] sm:$0x1]
        %v920 = vlaneseq
        %v921 = vshrl.u32 %v920, 7
        %v922 = vsub.s32 0, %v921
        %v923 = vrot.slane %v919, %v922
        %v924 = vmul.f32 %v917, %v923
        %v925 = vmul.f32 %v918, %v923
        %v926 = vadd.f32 %v911, %v924
        %v927 = vadd.f32 %v912, %v925
        %v928 = vrot.slane %v896, 7
        %v929 = vrot.slane %v897, 7
        %v930 = vsel %vm362, %v928, %v929
        %v931 = vsel %vm362, %v929, %v928
        %v932 = vsel %vm342, %v931, 0.0
        %v933 = vsel %vm343, %v930, 0.0
        %v934 = vld [vmem:[#allocation4 + $0x2] sm:$0x1]
        %v935 = vlaneseq
        %v936 = vshrl.u32 %v935, 7
        %v937 = vsub.s32 0, %v936
        %v938 = vrot.slane %v934, %v937
        %v939 = vmul.f32 %v932, %v938
        %v940 = vmul.f32 %v933, %v938
        %v941 = vadd.f32 %v926, %v939
        %v942 = vadd.f32 %v927, %v940
        %v943 = vld [vmem:[#allocation4 + $0x3] sm:$0x1]
        %v944 = vlaneseq
        %v945 = vshrl.u32 %v944, 7
        %v946 = vsub.s32 0, %v945
        %v947 = vrot.slane %v943, %v946
        %v948 = vmul.f32 %v890, %v947
        %v949 = vmul.f32 %v891, %v947
        %v950 = vadd.f32 %v941, %v948
        %v951 = vadd.f32 %v942, %v949
        %v952 = vld [vmem:[#allocation4 + $0x4] sm:$0x1]
        %v953 = vlaneseq
        %v954 = vshrl.u32 %v953, 7
        %v955 = vsub.s32 0, %v954
        %v956 = vrot.slane %v952, %v955
        %v957 = vmul.f32 %v884, %v956
        %v958 = vmul.f32 %v885, %v956
        %v959 = vadd.f32 %v950, %v957
        %v960 = vadd.f32 %v951, %v958
        %v961 = vld [vmem:[#allocation4 + $0x5] sm:$0x1]
        %v962 = vlaneseq
        %v963 = vshrl.u32 %v962, 7
        %v964 = vsub.s32 0, %v963
        %v965 = vrot.slane %v961, %v964
        %v966 = vmul.f32 %v896, %v965
        %v967 = vmul.f32 %v897, %v965
        %v968 = vadd.f32 %v959, %v966
        %v969 = vadd.f32 %v960, %v967
        %v970 = vrot.slane %v890, 1
        %v971 = vrot.slane %v891, 1
        %v972 = vsel %vm435, %v970, %v971
        %v973 = vsel %vm435, %v971, %v970
        %v974 = vsel %vm344, %v972, 0.0
        %v975 = vsel %vm345, %v973, 0.0
        %v976 = vld [vmem:[#allocation4 + $0x6] sm:$0x1]
        %v977 = vlaneseq
        %v978 = vshrl.u32 %v977, 7
        %v979 = vsub.s32 0, %v978
        %v980 = vrot.slane %v976, %v979
        %v981 = vmul.f32 %v974, %v980
        %v982 = vmul.f32 %v975, %v980
        %v983 = vadd.f32 %v968, %v981
        %v984 = vadd.f32 %v969, %v982
        %v985 = vrot.slane %v884, 1
        %v986 = vrot.slane %v885, 1
        %v987 = vsel %vm435, %v985, %v986
        %v988 = vsel %vm435, %v986, %v985
        %v989 = vsel %vm344, %v987, 0.0
        %v990 = vsel %vm345, %v988, 0.0
        %v991 = vld [vmem:[#allocation4 + $0x7] sm:$0x1]
        %v992 = vlaneseq
        %v993 = vshrl.u32 %v992, 7
        %v994 = vsub.s32 0, %v993
        %v995 = vrot.slane %v991, %v994
        %v996 = vmul.f32 %v989, %v995
        %v997 = vmul.f32 %v990, %v995
        %v998 = vadd.f32 %v983, %v996
        %v999 = vadd.f32 %v984, %v997
        %v1000 = vrot.slane %v896, 1
        %v1001 = vrot.slane %v897, 1
        %v1002 = vsel %vm435, %v1000, %v1001
        %v1003 = vsel %vm435, %v1001, %v1000
        %v1004 = vsel %vm344, %v1002, 0.0
        %v1005 = vsel %vm345, %v1003, 0.0
        %v1006 = vld [vmem:[#allocation4 + $0x8] sm:$0x1]
        %v1007 = vlaneseq
        %v1008 = vshrl.u32 %v1007, 7
        %v1009 = vsub.s32 0, %v1008
        %v1010 = vrot.slane %v1006, %v1009
        %v1011 = vmul.f32 %v1004, %v1010
        %v1012 = vmul.f32 %v1005, %v1010
        %v1013 = vadd.f32 %v998, %v1011
        %v1014 = vadd.f32 %v999, %v1012
        %1015 = vrot.lane.b32.xlu0 %v884, 16
        %v1016 = vpop.permute.xlu0 %1015
        %1017 = vrot.lane.b32.xlu0 %v885, 16
        %v1018 = vpop.permute.xlu0 %1017
        %1019 = vrot.lane.b32.xlu0 %v1016, 1
        %v1020 = vpop.permute.xlu0 %1019
        %1021 = vrot.lane.b32.xlu0 %v1018, 1
        %v1022 = vpop.permute.xlu0 %1021
        %v1023 = vsel %vm340, %v1020, 0.0
        %v1024 = vsel %vm340, %v1022, 0.0
        %1025 = vrot.lane.b32.xlu0 %v1016, 127
        %v1026 = vpop.permute.xlu0 %1025
        %1027 = vrot.lane.b32.xlu0 %v1018, 127
        %v1028 = vpop.permute.xlu0 %1027
        %v1029 = vsel %vm341, %v1026, 0.0
        %v1030 = vsel %vm341, %v1028, 0.0
        %v1031 = vrot.slane %v1023, 7
        %v1032 = vrot.slane %v1024, 7
        %v1033 = vsel %vm362, %v1031, %v1032
        %v1034 = vsel %vm362, %v1032, %v1031
        %v1035 = vsel %vm342, %v1034, 0.0
        %v1036 = vsel %vm343, %v1033, 0.0
        %v1037 = vld [vmem:[#allocation4 + $0x9] sm:$0x1]
        %v1038 = vlaneseq
        %v1039 = vshrl.u32 %v1038, 7
        %v1040 = vsub.s32 0, %v1039
        %v1041 = vrot.slane %v1037, %v1040
        %v1042 = vmul.f32 %v1035, %v1041
        %v1043 = vmul.f32 %v1036, %v1041
        %v1044 = vadd.f32 %v1013, %v1042
        %v1045 = vadd.f32 %v1014, %v1043
        %v1046 = vrot.slane %v1016, 7
        %v1047 = vrot.slane %v1018, 7
        %v1048 = vsel %vm362, %v1046, %v1047
        %v1049 = vsel %vm362, %v1047, %v1046
        %v1050 = vsel %vm342, %v1049, 0.0
        %v1051 = vsel %vm343, %v1048, 0.0
        %v1052 = vld [vmem:[#allocation4 + $0xa] sm:$0x1]
        %v1053 = vlaneseq
        %v1054 = vshrl.u32 %v1053, 7
        %v1055 = vsub.s32 0, %v1054
        %v1056 = vrot.slane %v1052, %v1055
        %v1057 = vmul.f32 %v1050, %v1056
        %v1058 = vmul.f32 %v1051, %v1056
        %v1059 = vadd.f32 %v1044, %v1057
        %v1060 = vadd.f32 %v1045, %v1058
        %v1061 = vrot.slane %v1029, 7
        %v1062 = vrot.slane %v1030, 7
        %v1063 = vsel %vm362, %v1061, %v1062
        %v1064 = vsel %vm362, %v1062, %v1061
        %v1065 = vsel %vm342, %v1064, 0.0
        %v1066 = vsel %vm343, %v1063, 0.0
        %v1067 = vld [vmem:[#allocation4 + $0xb] sm:$0x1]
        %v1068 = vlaneseq
        %v1069 = vshrl.u32 %v1068, 7
        %v1070 = vsub.s32 0, %v1069
        %v1071 = vrot.slane %v1067, %v1070
        %v1072 = vmul.f32 %v1065, %v1071
        %v1073 = vmul.f32 %v1066, %v1071
        %v1074 = vadd.f32 %v1059, %v1072
        %v1075 = vadd.f32 %v1060, %v1073
        %v1076 = vld [vmem:[#allocation4 + $0xc] sm:$0x1]
        %v1077 = vlaneseq
        %v1078 = vshrl.u32 %v1077, 7
        %v1079 = vsub.s32 0, %v1078
        %v1080 = vrot.slane %v1076, %v1079
        %v1081 = vmul.f32 %v1023, %v1080
        %v1082 = vmul.f32 %v1024, %v1080
        %v1083 = vadd.f32 %v1074, %v1081
        %v1084 = vadd.f32 %v1075, %v1082
        %v1085 = vld [vmem:[#allocation4 + $0xd] sm:$0x1]
        %v1086 = vlaneseq
        %v1087 = vshrl.u32 %v1086, 7
        %v1088 = vsub.s32 0, %v1087
        %v1089 = vrot.slane %v1085, %v1088
        %v1090 = vmul.f32 %v1016, %v1089
        %v1091 = vmul.f32 %v1018, %v1089
        %v1092 = vadd.f32 %v1083, %v1090
        %v1093 = vadd.f32 %v1084, %v1091
        %v1094 = vld [vmem:[#allocation4 + $0xe] sm:$0x1]
        %v1095 = vlaneseq
        %v1096 = vshrl.u32 %v1095, 7
        %v1097 = vsub.s32 0, %v1096
        %v1098 = vrot.slane %v1094, %v1097
        %v1099 = vmul.f32 %v1029, %v1098
        %v1100 = vmul.f32 %v1030, %v1098
        %v1101 = vadd.f32 %v1092, %v1099
        %v1102 = vadd.f32 %v1093, %v1100
        %v1103 = vrot.slane %v1023, 1
        %v1104 = vrot.slane %v1024, 1
        %v1105 = vsel %vm435, %v1103, %v1104
        %v1106 = vsel %vm435, %v1104, %v1103
        %v1107 = vsel %vm344, %v1105, 0.0
        %v1108 = vsel %vm345, %v1106, 0.0
        %v1109 = vld [vmem:[#allocation4 + $0xf] sm:$0x1]
        %v1110 = vlaneseq
        %v1111 = vshrl.u32 %v1110, 7
        %v1112 = vsub.s32 0, %v1111
        %v1113 = vrot.slane %v1109, %v1112
        %v1114 = vmul.f32 %v1107, %v1113
        %v1115 = vmul.f32 %v1108, %v1113
        %v1116 = vadd.f32 %v1101, %v1114
        %v1117 = vadd.f32 %v1102, %v1115
        %v1118 = vrot.slane %v1016, 1
        %v1119 = vrot.slane %v1018, 1
        %v1120 = vsel %vm435, %v1118, %v1119
        %v1121 = vsel %vm435, %v1119, %v1118
        %v1122 = vsel %vm344, %v1120, 0.0
        %v1123 = vsel %vm345, %v1121, 0.0
        %v1124 = vld [vmem:[#allocation4 + $0x10] sm:$0x1]
        %v1125 = vlaneseq
        %v1126 = vshrl.u32 %v1125, 7
        %v1127 = vsub.s32 0, %v1126
        %v1128 = vrot.slane %v1124, %v1127
        %v1129 = vmul.f32 %v1122, %v1128
        %v1130 = vmul.f32 %v1123, %v1128
        %v1131 = vadd.f32 %v1116, %v1129
        %v1132 = vadd.f32 %v1117, %v1130
        %v1133 = vrot.slane %v1029, 1
        %v1134 = vrot.slane %v1030, 1
        %v1135 = vsel %vm435, %v1133, %v1134
        %v1136 = vsel %vm435, %v1134, %v1133
        %v1137 = vsel %vm344, %v1135, 0.0
        %v1138 = vsel %vm345, %v1136, 0.0
        %v1139 = vld [vmem:[#allocation4 + $0x11] sm:$0x1]
        %v1140 = vlaneseq
        %v1141 = vshrl.u32 %v1140, 7
        %v1142 = vsub.s32 0, %v1141
        %v1143 = vrot.slane %v1139, %v1142
        %v1144 = vmul.f32 %v1137, %v1143
        %v1145 = vmul.f32 %v1138, %v1143
        %v1146 = vadd.f32 %v1131, %v1144
        %v1147 = vadd.f32 %v1132, %v1145
        %1148 = vrot.lane.b32.xlu0 %v884, 32
        %v1149 = vpop.permute.xlu0 %1148
        %1150 = vrot.lane.b32.xlu0 %v885, 32
        %v1151 = vpop.permute.xlu0 %1150
        %1152 = vrot.lane.b32.xlu0 %v1149, 1
        %v1153 = vpop.permute.xlu0 %1152
        %1154 = vrot.lane.b32.xlu0 %v1151, 1
        %v1155 = vpop.permute.xlu0 %1154
        %v1156 = vsel %vm340, %v1153, 0.0
        %v1157 = vsel %vm340, %v1155, 0.0
        %1158 = vrot.lane.b32.xlu0 %v1149, 127
        %v1159 = vpop.permute.xlu0 %1158
        %1160 = vrot.lane.b32.xlu0 %v1151, 127
        %v1161 = vpop.permute.xlu0 %1160
        %v1162 = vsel %vm341, %v1159, 0.0
        %v1163 = vsel %vm341, %v1161, 0.0
        %v1164 = vrot.slane %v1156, 7
        %v1165 = vrot.slane %v1157, 7
        %v1166 = vsel %vm362, %v1164, %v1165
        %v1167 = vsel %vm362, %v1165, %v1164
        %v1168 = vsel %vm342, %v1167, 0.0
        %v1169 = vsel %vm343, %v1166, 0.0
        %v1170 = vld [vmem:[#allocation4 + $0x12] sm:$0x1]
        %v1171 = vlaneseq
        %v1172 = vshrl.u32 %v1171, 7
        %v1173 = vsub.s32 0, %v1172
        %v1174 = vrot.slane %v1170, %v1173
        %v1175 = vmul.f32 %v1168, %v1174
        %v1176 = vmul.f32 %v1169, %v1174
        %v1177 = vadd.f32 %v1146, %v1175
        %v1178 = vadd.f32 %v1147, %v1176
        %v1179 = vrot.slane %v1149, 7
        %v1180 = vrot.slane %v1151, 7
        %v1181 = vsel %vm362, %v1179, %v1180
        %v1182 = vsel %vm362, %v1180, %v1179
        %v1183 = vsel %vm342, %v1182, 0.0
        %v1184 = vsel %vm343, %v1181, 0.0
        %v1185 = vld [vmem:[#allocation4 + $0x13] sm:$0x1]
        %v1186 = vlaneseq
        %v1187 = vshrl.u32 %v1186, 7
        %v1188 = vsub.s32 0, %v1187
        %v1189 = vrot.slane %v1185, %v1188
        %v1190 = vmul.f32 %v1183, %v1189
        %v1191 = vmul.f32 %v1184, %v1189
        %v1192 = vadd.f32 %v1177, %v1190
        %v1193 = vadd.f32 %v1178, %v1191
        %v1194 = vrot.slane %v1162, 7
        %v1195 = vrot.slane %v1163, 7
        %v1196 = vsel %vm362, %v1194, %v1195
        %v1197 = vsel %vm362, %v1195, %v1194
        %v1198 = vsel %vm342, %v1197, 0.0
        %v1199 = vsel %vm343, %v1196, 0.0
        %v1200 = vld [vmem:[#allocation4 + $0x14] sm:$0x1]
        %v1201 = vlaneseq
        %v1202 = vshrl.u32 %v1201, 7
        %v1203 = vsub.s32 0, %v1202
        %v1204 = vrot.slane %v1200, %v1203
        %v1205 = vmul.f32 %v1198, %v1204
        %v1206 = vmul.f32 %v1199, %v1204
        %v1207 = vadd.f32 %v1192, %v1205
        %v1208 = vadd.f32 %v1193, %v1206
        %v1209 = vld [vmem:[#allocation4 + $0x15] sm:$0x1]
        %v1210 = vlaneseq
        %v1211 = vshrl.u32 %v1210, 7
        %v1212 = vsub.s32 0, %v1211
        %v1213 = vrot.slane %v1209, %v1212
        %v1214 = vmul.f32 %v1156, %v1213
        %v1215 = vmul.f32 %v1157, %v1213
        %v1216 = vadd.f32 %v1207, %v1214
        %v1217 = vadd.f32 %v1208, %v1215
        %v1218 = vld [vmem:[#allocation4 + $0x16] sm:$0x1]
        %v1219 = vlaneseq
        %v1220 = vshrl.u32 %v1219, 7
        %v1221 = vsub.s32 0, %v1220
        %v1222 = vrot.slane %v1218, %v1221
        %v1223 = vmul.f32 %v1149, %v1222
        %v1224 = vmul.f32 %v1151, %v1222
        %v1225 = vadd.f32 %v1216, %v1223
        %v1226 = vadd.f32 %v1217, %v1224
        %v1227 = vld [vmem:[#allocation4 + $0x17] sm:$0x1]
        %v1228 = vlaneseq
        %v1229 = vshrl.u32 %v1228, 7
        %v1230 = vsub.s32 0, %v1229
        %v1231 = vrot.slane %v1227, %v1230
        %v1232 = vmul.f32 %v1162, %v1231
        %v1233 = vmul.f32 %v1163, %v1231
        %v1234 = vadd.f32 %v1225, %v1232
        %v1235 = vadd.f32 %v1226, %v1233
        %v1236 = vrot.slane %v1156, 1
        %v1237 = vrot.slane %v1157, 1
        %v1238 = vsel %vm435, %v1236, %v1237
        %v1239 = vsel %vm435, %v1237, %v1236
        %v1240 = vsel %vm344, %v1238, 0.0
        %v1241 = vsel %vm345, %v1239, 0.0
        %v1242 = vld [vmem:[#allocation4 + $0x18] sm:$0x1]
        %v1243 = vlaneseq
        %v1244 = vshrl.u32 %v1243, 7
        %v1245 = vsub.s32 0, %v1244
        %v1246 = vrot.slane %v1242, %v1245
        %v1247 = vmul.f32 %v1240, %v1246
        %v1248 = vmul.f32 %v1241, %v1246
        %v1249 = vadd.f32 %v1234, %v1247
        %v1250 = vadd.f32 %v1235, %v1248
        %v1251 = vrot.slane %v1149, 1
        %v1252 = vrot.slane %v1151, 1
        %v1253 = vsel %vm435, %v1251, %v1252
        %v1254 = vsel %vm435, %v1252, %v1251
        %v1255 = vsel %vm344, %v1253, 0.0
        %v1256 = vsel %vm345, %v1254, 0.0
        %v1257 = vld [vmem:[#allocation4 + $0x19] sm:$0x1]
        %v1258 = vlaneseq
        %v1259 = vshrl.u32 %v1258, 7
        %v1260 = vsub.s32 0, %v1259
        %v1261 = vrot.slane %v1257, %v1260
        %v1262 = vmul.f32 %v1255, %v1261
        %v1263 = vmul.f32 %v1256, %v1261
        %v1264 = vadd.f32 %v1249, %v1262
        %v1265 = vadd.f32 %v1250, %v1263
        %v1266 = vrot.slane %v1162, 1
        %v1267 = vrot.slane %v1163, 1
        %v1268 = vsel %vm435, %v1266, %v1267
        %v1269 = vsel %vm435, %v1267, %v1266
        %v1270 = vsel %vm344, %v1268, 0.0
        %v1271 = vsel %vm345, %v1269, 0.0
        %v1272 = vld [vmem:[#allocation4 + $0x1a] sm:$0x1]
        %v1273 = vlaneseq
        %v1274 = vshrl.u32 %v1273, 7
        %v1275 = vsub.s32 0, %v1274
        %v1276 = vrot.slane %v1272, %v1275
        %v1277 = vmul.f32 %v1270, %v1276
        %v1278 = vmul.f32 %v1271, %v1276
        %v1279 = vadd.f32 %v1264, %v1277
        %v1280 = vadd.f32 %v1265, %v1278
        %1281 = vrot.lane.b32.xlu0 %v884, 48
        %v1282 = vpop.permute.xlu0 %1281
        %1283 = vrot.lane.b32.xlu0 %v885, 48
        %v1284 = vpop.permute.xlu0 %1283
        %1285 = vrot.lane.b32.xlu0 %v1282, 1
        %v1286 = vpop.permute.xlu0 %1285
        %1287 = vrot.lane.b32.xlu0 %v1284, 1
        %v1288 = vpop.permute.xlu0 %1287
        %v1289 = vsel %vm340, %v1286, 0.0
        %v1290 = vsel %vm340, %v1288, 0.0
        %1291 = vrot.lane.b32.xlu0 %v1282, 127
        %v1292 = vpop.permute.xlu0 %1291
        %1293 = vrot.lane.b32.xlu0 %v1284, 127
        %v1294 = vpop.permute.xlu0 %1293
        %v1295 = vsel %vm341, %v1292, 0.0
        %v1296 = vsel %vm341, %v1294, 0.0
        %v1297 = vrot.slane %v1289, 7
        %v1298 = vrot.slane %v1290, 7
        %v1299 = vsel %vm362, %v1297, %v1298
        %v1300 = vsel %vm362, %v1298, %v1297
        %v1301 = vsel %vm342, %v1300, 0.0
        %v1302 = vsel %vm343, %v1299, 0.0
        %v1303 = vld [vmem:[#allocation4 + $0x1b] sm:$0x1]
        %v1304 = vlaneseq
        %v1305 = vshrl.u32 %v1304, 7
        %v1306 = vsub.s32 0, %v1305
        %v1307 = vrot.slane %v1303, %v1306
        %v1308 = vmul.f32 %v1301, %v1307
        %v1309 = vmul.f32 %v1302, %v1307
        %v1310 = vadd.f32 %v1279, %v1308
        %v1311 = vadd.f32 %v1280, %v1309
        %v1312 = vrot.slane %v1282, 7
        %v1313 = vrot.slane %v1284, 7
        %v1314 = vsel %vm362, %v1312, %v1313
        %v1315 = vsel %vm362, %v1313, %v1312
        %v1316 = vsel %vm342, %v1315, 0.0
        %v1317 = vsel %vm343, %v1314, 0.0
        %v1318 = vld [vmem:[#allocation4 + $0x1c] sm:$0x1]
        %v1319 = vlaneseq
        %v1320 = vshrl.u32 %v1319, 7
        %v1321 = vsub.s32 0, %v1320
        %v1322 = vrot.slane %v1318, %v1321
        %v1323 = vmul.f32 %v1316, %v1322
        %v1324 = vmul.f32 %v1317, %v1322
        %v1325 = vadd.f32 %v1310, %v1323
        %v1326 = vadd.f32 %v1311, %v1324
        %v1327 = vrot.slane %v1295, 7
        %v1328 = vrot.slane %v1296, 7
        %v1329 = vsel %vm362, %v1327, %v1328
        %v1330 = vsel %vm362, %v1328, %v1327
        %v1331 = vsel %vm342, %v1330, 0.0
        %v1332 = vsel %vm343, %v1329, 0.0
        %v1333 = vld [vmem:[#allocation4 + $0x1d] sm:$0x1]
        %v1334 = vlaneseq
        %v1335 = vshrl.u32 %v1334, 7
        %v1336 = vsub.s32 0, %v1335
        %v1337 = vrot.slane %v1333, %v1336
        %v1338 = vmul.f32 %v1331, %v1337
        %v1339 = vmul.f32 %v1332, %v1337
        %v1340 = vadd.f32 %v1325, %v1338
        %v1341 = vadd.f32 %v1326, %v1339
        %v1342 = vld [vmem:[#allocation4 + $0x1e] sm:$0x1]
        %v1343 = vlaneseq
        %v1344 = vshrl.u32 %v1343, 7
        %v1345 = vsub.s32 0, %v1344
        %v1346 = vrot.slane %v1342, %v1345
        %v1347 = vmul.f32 %v1289, %v1346
        %v1348 = vmul.f32 %v1290, %v1346
        %v1349 = vadd.f32 %v1340, %v1347
        %v1350 = vadd.f32 %v1341, %v1348
        %v1351 = vld [vmem:[#allocation4 + $0x1f] sm:$0x1]
        %v1352 = vlaneseq
        %v1353 = vshrl.u32 %v1352, 7
        %v1354 = vsub.s32 0, %v1353
        %v1355 = vrot.slane %v1351, %v1354
        %v1356 = vmul.f32 %v1282, %v1355
        %v1357 = vmul.f32 %v1284, %v1355
        %v1358 = vadd.f32 %v1349, %v1356
        %v1359 = vadd.f32 %v1350, %v1357
        %v1360 = vld [vmem:[#allocation4 + $0x20] sm:$0x1]
        %v1361 = vlaneseq
        %v1362 = vshrl.u32 %v1361, 7
        %v1363 = vsub.s32 0, %v1362
        %v1364 = vrot.slane %v1360, %v1363
        %v1365 = vmul.f32 %v1295, %v1364
        %v1366 = vmul.f32 %v1296, %v1364
        %v1367 = vadd.f32 %v1358, %v1365
        %v1368 = vadd.f32 %v1359, %v1366
        %v1369 = vrot.slane %v1289, 1
        %v1370 = vrot.slane %v1290, 1
        %v1371 = vsel %vm435, %v1369, %v1370
        %v1372 = vsel %vm435, %v1370, %v1369
        %v1373 = vsel %vm344, %v1371, 0.0
        %v1374 = vsel %vm345, %v1372, 0.0
        %v1375 = vld [vmem:[#allocation4 + $0x21] sm:$0x1]
        %v1376 = vlaneseq
        %v1377 = vshrl.u32 %v1376, 7
        %v1378 = vsub.s32 0, %v1377
        %v1379 = vrot.slane %v1375, %v1378
        %v1380 = vmul.f32 %v1373, %v1379
        %v1381 = vmul.f32 %v1374, %v1379
        %v1382 = vadd.f32 %v1367, %v1380
        %v1383 = vadd.f32 %v1368, %v1381
        %v1384 = vrot.slane %v1282, 1
        %v1385 = vrot.slane %v1284, 1
        %v1386 = vsel %vm435, %v1384, %v1385
        %v1387 = vsel %vm435, %v1385, %v1384
        %v1388 = vsel %vm344, %v1386, 0.0
        %v1389 = vsel %vm345, %v1387, 0.0
        %v1390 = vld [vmem:[#allocation4 + $0x22] sm:$0x1]
        %v1391 = vlaneseq
        %v1392 = vshrl.u32 %v1391, 7
        %v1393 = vsub.s32 0, %v1392
        %v1394 = vrot.slane %v1390, %v1393
        %v1395 = vmul.f32 %v1388, %v1394
        %v1396 = vmul.f32 %v1389, %v1394
        %v1397 = vadd.f32 %v1382, %v1395
        %v1398 = vadd.f32 %v1383, %v1396
        %v1399 = vrot.slane %v1295, 1
        %v1400 = vrot.slane %v1296, 1
        %v1401 = vsel %vm435, %v1399, %v1400
        %v1402 = vsel %vm435, %v1400, %v1399
        %v1403 = vsel %vm344, %v1401, 0.0
        %v1404 = vsel %vm345, %v1402, 0.0
        %v1405 = vld [vmem:[#allocation4 + $0x23] sm:$0x1]
        %v1406 = vlaneseq
        %v1407 = vshrl.u32 %v1406, 7
        %v1408 = vsub.s32 0, %v1407
        %v1409 = vrot.slane %v1405, %v1408
        %v1410 = vmul.f32 %v1403, %v1409
        %v1411 = vmul.f32 %v1404, %v1409
        %v1412 = vadd.f32 %v1397, %v1410
        %v1413 = vadd.f32 %v1398, %v1411
        %1414 = vrot.lane.b32.xlu0 %v884, 64
        %v1415 = vpop.permute.xlu0 %1414
        %1416 = vrot.lane.b32.xlu0 %v885, 64
        %v1417 = vpop.permute.xlu0 %1416
        %1418 = vrot.lane.b32.xlu0 %v1415, 1
        %v1419 = vpop.permute.xlu0 %1418
        %1420 = vrot.lane.b32.xlu0 %v1417, 1
        %v1421 = vpop.permute.xlu0 %1420
        %v1422 = vsel %vm340, %v1419, 0.0
        %v1423 = vsel %vm340, %v1421, 0.0
        %1424 = vrot.lane.b32.xlu0 %v1415, 127
        %v1425 = vpop.permute.xlu0 %1424
        %1426 = vrot.lane.b32.xlu0 %v1417, 127
        %v1427 = vpop.permute.xlu0 %1426
        %v1428 = vsel %vm341, %v1425, 0.0
        %v1429 = vsel %vm341, %v1427, 0.0
        %v1430 = vrot.slane %v1422, 7
        %v1431 = vrot.slane %v1423, 7
        %v1432 = vsel %vm362, %v1430, %v1431
        %v1433 = vsel %vm362, %v1431, %v1430
        %v1434 = vsel %vm342, %v1433, 0.0
        %v1435 = vsel %vm343, %v1432, 0.0
        %v1436 = vld [vmem:[#allocation4 + $0x24] sm:$0x1]
        %v1437 = vlaneseq
        %v1438 = vshrl.u32 %v1437, 7
        %v1439 = vsub.s32 0, %v1438
        %v1440 = vrot.slane %v1436, %v1439
        %v1441 = vmul.f32 %v1434, %v1440
        %v1442 = vmul.f32 %v1435, %v1440
        %v1443 = vadd.f32 %v1412, %v1441
        %v1444 = vadd.f32 %v1413, %v1442
        %v1445 = vrot.slane %v1415, 7
        %v1446 = vrot.slane %v1417, 7
        %v1447 = vsel %vm362, %v1445, %v1446
        %v1448 = vsel %vm362, %v1446, %v1445
        %v1449 = vsel %vm342, %v1448, 0.0
        %v1450 = vsel %vm343, %v1447, 0.0
        %v1451 = vld [vmem:[#allocation4 + $0x25] sm:$0x1]
        %v1452 = vlaneseq
        %v1453 = vshrl.u32 %v1452, 7
        %v1454 = vsub.s32 0, %v1453
        %v1455 = vrot.slane %v1451, %v1454
        %v1456 = vmul.f32 %v1449, %v1455
        %v1457 = vmul.f32 %v1450, %v1455
        %v1458 = vadd.f32 %v1443, %v1456
        %v1459 = vadd.f32 %v1444, %v1457
        %v1460 = vrot.slane %v1428, 7
        %v1461 = vrot.slane %v1429, 7
        %v1462 = vsel %vm362, %v1460, %v1461
        %v1463 = vsel %vm362, %v1461, %v1460
        %v1464 = vsel %vm342, %v1463, 0.0
        %v1465 = vsel %vm343, %v1462, 0.0
        %v1466 = vld [vmem:[#allocation4 + $0x26] sm:$0x1]
        %v1467 = vlaneseq
        %v1468 = vshrl.u32 %v1467, 7
        %v1469 = vsub.s32 0, %v1468
        %v1470 = vrot.slane %v1466, %v1469
        %v1471 = vmul.f32 %v1464, %v1470
        %v1472 = vmul.f32 %v1465, %v1470
        %v1473 = vadd.f32 %v1458, %v1471
        %v1474 = vadd.f32 %v1459, %v1472
        %v1475 = vld [vmem:[#allocation4 + $0x27] sm:$0x1]
        %v1476 = vlaneseq
        %v1477 = vshrl.u32 %v1476, 7
        %v1478 = vsub.s32 0, %v1477
        %v1479 = vrot.slane %v1475, %v1478
        %v1480 = vmul.f32 %v1422, %v1479
        %v1481 = vmul.f32 %v1423, %v1479
        %v1482 = vadd.f32 %v1473, %v1480
        %v1483 = vadd.f32 %v1474, %v1481
        %v1484 = vld [vmem:[#allocation4 + $0x28] sm:$0x1]
        %v1485 = vlaneseq
        %v1486 = vshrl.u32 %v1485, 7
        %v1487 = vsub.s32 0, %v1486
        %v1488 = vrot.slane %v1484, %v1487
        %v1489 = vmul.f32 %v1415, %v1488
        %v1490 = vmul.f32 %v1417, %v1488
        %v1491 = vadd.f32 %v1482, %v1489
        %v1492 = vadd.f32 %v1483, %v1490
        %v1493 = vld [vmem:[#allocation4 + $0x29] sm:$0x1]
        %v1494 = vlaneseq
        %v1495 = vshrl.u32 %v1494, 7
        %v1496 = vsub.s32 0, %v1495
        %v1497 = vrot.slane %v1493, %v1496
        %v1498 = vmul.f32 %v1428, %v1497
        %v1499 = vmul.f32 %v1429, %v1497
        %v1500 = vadd.f32 %v1491, %v1498
        %v1501 = vadd.f32 %v1492, %v1499
        %v1502 = vrot.slane %v1422, 1
        %v1503 = vrot.slane %v1423, 1
        %v1504 = vsel %vm435, %v1502, %v1503
        %v1505 = vsel %vm435, %v1503, %v1502
        %v1506 = vsel %vm344, %v1504, 0.0
        %v1507 = vsel %vm345, %v1505, 0.0
        %v1508 = vld [vmem:[#allocation4 + $0x2a] sm:$0x1]
        %v1509 = vlaneseq
        %v1510 = vshrl.u32 %v1509, 7
        %v1511 = vsub.s32 0, %v1510
        %v1512 = vrot.slane %v1508, %v1511
        %v1513 = vmul.f32 %v1506, %v1512
        %v1514 = vmul.f32 %v1507, %v1512
        %v1515 = vadd.f32 %v1500, %v1513
        %v1516 = vadd.f32 %v1501, %v1514
        %v1517 = vrot.slane %v1415, 1
        %v1518 = vrot.slane %v1417, 1
        %v1519 = vsel %vm435, %v1517, %v1518
        %v1520 = vsel %vm435, %v1518, %v1517
        %v1521 = vsel %vm344, %v1519, 0.0
        %v1522 = vsel %vm345, %v1520, 0.0
        %v1523 = vld [vmem:[#allocation4 + $0x2b] sm:$0x1]
        %v1524 = vlaneseq
        %v1525 = vshrl.u32 %v1524, 7
        %v1526 = vsub.s32 0, %v1525
        %v1527 = vrot.slane %v1523, %v1526
        %v1528 = vmul.f32 %v1521, %v1527
        %v1529 = vmul.f32 %v1522, %v1527
        %v1530 = vadd.f32 %v1515, %v1528
        %v1531 = vadd.f32 %v1516, %v1529
        %v1532 = vrot.slane %v1428, 1
        %v1533 = vrot.slane %v1429, 1
        %v1534 = vsel %vm435, %v1532, %v1533
        %v1535 = vsel %vm435, %v1533, %v1532
        %v1536 = vsel %vm344, %v1534, 0.0
        %v1537 = vsel %vm345, %v1535, 0.0
        %v1538 = vld [vmem:[#allocation4 + $0x2c] sm:$0x1]
        %v1539 = vlaneseq
        %v1540 = vshrl.u32 %v1539, 7
        %v1541 = vsub.s32 0, %v1540
        %v1542 = vrot.slane %v1538, %v1541
        %v1543 = vmul.f32 %v1536, %v1542
        %v1544 = vmul.f32 %v1537, %v1542
        %v1545 = vadd.f32 %v1530, %v1543
        %v1546 = vadd.f32 %v1531, %v1544
        %1547 = vrot.lane.b32.xlu0 %v884, 80
        %v1548 = vpop.permute.xlu0 %1547
        %1549 = vrot.lane.b32.xlu0 %v885, 80
        %v1550 = vpop.permute.xlu0 %1549
        %1551 = vrot.lane.b32.xlu0 %v1548, 1
        %v1552 = vpop.permute.xlu0 %1551
        %1553 = vrot.lane.b32.xlu0 %v1550, 1
        %v1554 = vpop.permute.xlu0 %1553
        %v1555 = vsel %vm340, %v1552, 0.0
        %v1556 = vsel %vm340, %v1554, 0.0
        %1557 = vrot.lane.b32.xlu0 %v1548, 127
        %v1558 = vpop.permute.xlu0 %1557
        %1559 = vrot.lane.b32.xlu0 %v1550, 127
        %v1560 = vpop.permute.xlu0 %1559
        %v1561 = vsel %vm341, %v1558, 0.0
        %v1562 = vsel %vm341, %v1560, 0.0
        %v1563 = vrot.slane %v1555, 7
        %v1564 = vrot.slane %v1556, 7
        %v1565 = vsel %vm362, %v1563, %v1564
        %v1566 = vsel %vm362, %v1564, %v1563
        %v1567 = vsel %vm342, %v1566, 0.0
        %v1568 = vsel %vm343, %v1565, 0.0
        %v1569 = vld [vmem:[#allocation4 + $0x2d] sm:$0x1]
        %v1570 = vlaneseq
        %v1571 = vshrl.u32 %v1570, 7
        %v1572 = vsub.s32 0, %v1571
        %v1573 = vrot.slane %v1569, %v1572
        %v1574 = vmul.f32 %v1567, %v1573
        %v1575 = vmul.f32 %v1568, %v1573
        %v1576 = vadd.f32 %v1545, %v1574
        %v1577 = vadd.f32 %v1546, %v1575
        %v1578 = vrot.slane %v1548, 7
        %v1579 = vrot.slane %v1550, 7
        %v1580 = vsel %vm362, %v1578, %v1579
        %v1581 = vsel %vm362, %v1579, %v1578
        %v1582 = vsel %vm342, %v1581, 0.0
        %v1583 = vsel %vm343, %v1580, 0.0
        %v1584 = vld [vmem:[#allocation4 + $0x2e] sm:$0x1]
        %v1585 = vlaneseq
        %v1586 = vshrl.u32 %v1585, 7
        %v1587 = vsub.s32 0, %v1586
        %v1588 = vrot.slane %v1584, %v1587
        %v1589 = vmul.f32 %v1582, %v1588
        %v1590 = vmul.f32 %v1583, %v1588
        %v1591 = vadd.f32 %v1576, %v1589
        %v1592 = vadd.f32 %v1577, %v1590
        %v1593 = vrot.slane %v1561, 7
        %v1594 = vrot.slane %v1562, 7
        %v1595 = vsel %vm362, %v1593, %v1594
        %v1596 = vsel %vm362, %v1594, %v1593
        %v1597 = vsel %vm342, %v1596, 0.0
        %v1598 = vsel %vm343, %v1595, 0.0
        %v1599 = vld [vmem:[#allocation4 + $0x2f] sm:$0x1]
        %v1600 = vlaneseq
        %v1601 = vshrl.u32 %v1600, 7
        %v1602 = vsub.s32 0, %v1601
        %v1603 = vrot.slane %v1599, %v1602
        %v1604 = vmul.f32 %v1597, %v1603
        %v1605 = vmul.f32 %v1598, %v1603
        %v1606 = vadd.f32 %v1591, %v1604
        %v1607 = vadd.f32 %v1592, %v1605
        %v1608 = vld [vmem:[#allocation4 + $0x30] sm:$0x1]
        %v1609 = vlaneseq
        %v1610 = vshrl.u32 %v1609, 7
        %v1611 = vsub.s32 0, %v1610
        %v1612 = vrot.slane %v1608, %v1611
        %v1613 = vmul.f32 %v1555, %v1612
        %v1614 = vmul.f32 %v1556, %v1612
        %v1615 = vadd.f32 %v1606, %v1613
        %v1616 = vadd.f32 %v1607, %v1614
        %v1617 = vld [vmem:[#allocation4 + $0x31] sm:$0x1]
        %v1618 = vlaneseq
        %v1619 = vshrl.u32 %v1618, 7
        %v1620 = vsub.s32 0, %v1619
        %v1621 = vrot.slane %v1617, %v1620
        %v1622 = vmul.f32 %v1548, %v1621
        %v1623 = vmul.f32 %v1550, %v1621
        %v1624 = vadd.f32 %v1615, %v1622
        %v1625 = vadd.f32 %v1616, %v1623
        %v1626 = vld [vmem:[#allocation4 + $0x32] sm:$0x1]
        %v1627 = vlaneseq
        %v1628 = vshrl.u32 %v1627, 7
        %v1629 = vsub.s32 0, %v1628
        %v1630 = vrot.slane %v1626, %v1629
        %v1631 = vmul.f32 %v1561, %v1630
        %v1632 = vmul.f32 %v1562, %v1630
        %v1633 = vadd.f32 %v1624, %v1631
        %v1634 = vadd.f32 %v1625, %v1632
        %v1635 = vrot.slane %v1555, 1
        %v1636 = vrot.slane %v1556, 1
        %v1637 = vsel %vm435, %v1635, %v1636
        %v1638 = vsel %vm435, %v1636, %v1635
        %v1639 = vsel %vm344, %v1637, 0.0
        %v1640 = vsel %vm345, %v1638, 0.0
        %v1641 = vld [vmem:[#allocation4 + $0x33] sm:$0x1]
        %v1642 = vlaneseq
        %v1643 = vshrl.u32 %v1642, 7
        %v1644 = vsub.s32 0, %v1643
        %v1645 = vrot.slane %v1641, %v1644
        %v1646 = vmul.f32 %v1639, %v1645
        %v1647 = vmul.f32 %v1640, %v1645
        %v1648 = vadd.f32 %v1633, %v1646
        %v1649 = vadd.f32 %v1634, %v1647
        %v1650 = vrot.slane %v1548, 1
        %v1651 = vrot.slane %v1550, 1
        %v1652 = vsel %vm435, %v1650, %v1651
        %v1653 = vsel %vm435, %v1651, %v1650
        %v1654 = vsel %vm344, %v1652, 0.0
        %v1655 = vsel %vm345, %v1653, 0.0
        %v1656 = vld [vmem:[#allocation4 + $0x34] sm:$0x1]
        %v1657 = vlaneseq
        %v1658 = vshrl.u32 %v1657, 7
        %v1659 = vsub.s32 0, %v1658
        %v1660 = vrot.slane %v1656, %v1659
        %v1661 = vmul.f32 %v1654, %v1660
        %v1662 = vmul.f32 %v1655, %v1660
        %v1663 = vadd.f32 %v1648, %v1661
        %v1664 = vadd.f32 %v1649, %v1662
        %v1665 = vrot.slane %v1561, 1
        %v1666 = vrot.slane %v1562, 1
        %v1667 = vsel %vm435, %v1665, %v1666
        %v1668 = vsel %vm435, %v1666, %v1665
        %v1669 = vsel %vm344, %v1667, 0.0
        %v1670 = vsel %vm345, %v1668, 0.0
        %v1671 = vld [vmem:[#allocation4 + $0x35] sm:$0x1]
        %v1672 = vlaneseq
        %v1673 = vshrl.u32 %v1672, 7
        %v1674 = vsub.s32 0, %v1673
        %v1675 = vrot.slane %v1671, %v1674
        %v1676 = vmul.f32 %v1669, %v1675
        %v1677 = vmul.f32 %v1670, %v1675
        %v1678 = vadd.f32 %v1663, %v1676
        %v1679 = vadd.f32 %v1664, %v1677
        %1680 = vrot.lane.b32.xlu0 %v884, 96
        %v1681 = vpop.permute.xlu0 %1680
        %1682 = vrot.lane.b32.xlu0 %v885, 96
        %v1683 = vpop.permute.xlu0 %1682
        %1684 = vrot.lane.b32.xlu0 %v1681, 1
        %v1685 = vpop.permute.xlu0 %1684
        %1686 = vrot.lane.b32.xlu0 %v1683, 1
        %v1687 = vpop.permute.xlu0 %1686
        %v1688 = vsel %vm340, %v1685, 0.0
        %v1689 = vsel %vm340, %v1687, 0.0
        %1690 = vrot.lane.b32.xlu0 %v1681, 127
        %v1691 = vpop.permute.xlu0 %1690
        %1692 = vrot.lane.b32.xlu0 %v1683, 127
        %v1693 = vpop.permute.xlu0 %1692
        %v1694 = vsel %vm341, %v1691, 0.0
        %v1695 = vsel %vm341, %v1693, 0.0
        %v1696 = vrot.slane %v1688, 7
        %v1697 = vrot.slane %v1689, 7
        %v1698 = vsel %vm362, %v1696, %v1697
        %v1699 = vsel %vm362, %v1697, %v1696
        %v1700 = vsel %vm342, %v1699, 0.0
        %v1701 = vsel %vm343, %v1698, 0.0
        %v1702 = vld [vmem:[#allocation4 + $0x36] sm:$0x1]
        %v1703 = vlaneseq
        %v1704 = vshrl.u32 %v1703, 7
        %v1705 = vsub.s32 0, %v1704
        %v1706 = vrot.slane %v1702, %v1705
        %v1707 = vmul.f32 %v1700, %v1706
        %v1708 = vmul.f32 %v1701, %v1706
        %v1709 = vadd.f32 %v1678, %v1707
        %v1710 = vadd.f32 %v1679, %v1708
        %v1711 = vrot.slane %v1681, 7
        %v1712 = vrot.slane %v1683, 7
        %v1713 = vsel %vm362, %v1711, %v1712
        %v1714 = vsel %vm362, %v1712, %v1711
        %v1715 = vsel %vm342, %v1714, 0.0
        %v1716 = vsel %vm343, %v1713, 0.0
        %v1717 = vld [vmem:[#allocation4 + $0x37] sm:$0x1]
        %v1718 = vlaneseq
        %v1719 = vshrl.u32 %v1718, 7
        %v1720 = vsub.s32 0, %v1719
        %v1721 = vrot.slane %v1717, %v1720
        %v1722 = vmul.f32 %v1715, %v1721
        %v1723 = vmul.f32 %v1716, %v1721
        %v1724 = vadd.f32 %v1709, %v1722
        %v1725 = vadd.f32 %v1710, %v1723
        %v1726 = vrot.slane %v1694, 7
        %v1727 = vrot.slane %v1695, 7
        %v1728 = vsel %vm362, %v1726, %v1727
        %v1729 = vsel %vm362, %v1727, %v1726
        %v1730 = vsel %vm342, %v1729, 0.0
        %v1731 = vsel %vm343, %v1728, 0.0
        %v1732 = vld [vmem:[#allocation4 + $0x38] sm:$0x1]
        %v1733 = vlaneseq
        %v1734 = vshrl.u32 %v1733, 7
        %v1735 = vsub.s32 0, %v1734
        %v1736 = vrot.slane %v1732, %v1735
        %v1737 = vmul.f32 %v1730, %v1736
        %v1738 = vmul.f32 %v1731, %v1736
        %v1739 = vadd.f32 %v1724, %v1737
        %v1740 = vadd.f32 %v1725, %v1738
        %v1741 = vld [vmem:[#allocation4 + $0x39] sm:$0x1]
        %v1742 = vlaneseq
        %v1743 = vshrl.u32 %v1742, 7
        %v1744 = vsub.s32 0, %v1743
        %v1745 = vrot.slane %v1741, %v1744
        %v1746 = vmul.f32 %v1688, %v1745
        %v1747 = vmul.f32 %v1689, %v1745
        %v1748 = vadd.f32 %v1739, %v1746
        %v1749 = vadd.f32 %v1740, %v1747
        %v1750 = vld [vmem:[#allocation4 + $0x3a] sm:$0x1]
        %v1751 = vlaneseq
        %v1752 = vshrl.u32 %v1751, 7
        %v1753 = vsub.s32 0, %v1752
        %v1754 = vrot.slane %v1750, %v1753
        %v1755 = vmul.f32 %v1681, %v1754
        %v1756 = vmul.f32 %v1683, %v1754
        %v1757 = vadd.f32 %v1748, %v1755
        %v1758 = vadd.f32 %v1749, %v1756
        %v1759 = vld [vmem:[#allocation4 + $0x3b] sm:$0x1]
        %v1760 = vlaneseq
        %v1761 = vshrl.u32 %v1760, 7
        %v1762 = vsub.s32 0, %v1761
        %v1763 = vrot.slane %v1759, %v1762
        %v1764 = vmul.f32 %v1694, %v1763
        %v1765 = vmul.f32 %v1695, %v1763
        %v1766 = vadd.f32 %v1757, %v1764
        %v1767 = vadd.f32 %v1758, %v1765
        %v1768 = vrot.slane %v1688, 1
        %v1769 = vrot.slane %v1689, 1
        %v1770 = vsel %vm435, %v1768, %v1769
        %v1771 = vsel %vm435, %v1769, %v1768
        %v1772 = vsel %vm344, %v1770, 0.0
        %v1773 = vsel %vm345, %v1771, 0.0
        %v1774 = vld [vmem:[#allocation4 + $0x3c] sm:$0x1]
        %v1775 = vlaneseq
        %v1776 = vshrl.u32 %v1775, 7
        %v1777 = vsub.s32 0, %v1776
        %v1778 = vrot.slane %v1774, %v1777
        %v1779 = vmul.f32 %v1772, %v1778
        %v1780 = vmul.f32 %v1773, %v1778
        %v1781 = vadd.f32 %v1766, %v1779
        %v1782 = vadd.f32 %v1767, %v1780
        %v1783 = vrot.slane %v1681, 1
        %v1784 = vrot.slane %v1683, 1
        %v1785 = vsel %vm435, %v1783, %v1784
        %v1786 = vsel %vm435, %v1784, %v1783
        %v1787 = vsel %vm344, %v1785, 0.0
        %v1788 = vsel %vm345, %v1786, 0.0
        %v1789 = vld [vmem:[#allocation4 + $0x3d] sm:$0x1]
        %v1790 = vlaneseq
        %v1791 = vshrl.u32 %v1790, 7
        %v1792 = vsub.s32 0, %v1791
        %v1793 = vrot.slane %v1789, %v1792
        %v1794 = vmul.f32 %v1787, %v1793
        %v1795 = vmul.f32 %v1788, %v1793
        %v1796 = vadd.f32 %v1781, %v1794
        %v1797 = vadd.f32 %v1782, %v1795
        %v1798 = vrot.slane %v1694, 1
        %v1799 = vrot.slane %v1695, 1
        %v1800 = vsel %vm435, %v1798, %v1799
        %v1801 = vsel %vm435, %v1799, %v1798
        %v1802 = vsel %vm344, %v1800, 0.0
        %v1803 = vsel %vm345, %v1801, 0.0
        %v1804 = vld [vmem:[#allocation4 + $0x3e] sm:$0x1]
        %v1805 = vlaneseq
        %v1806 = vshrl.u32 %v1805, 7
        %v1807 = vsub.s32 0, %v1806
        %v1808 = vrot.slane %v1804, %v1807
        %v1809 = vmul.f32 %v1802, %v1808
        %v1810 = vmul.f32 %v1803, %v1808
        %v1811 = vadd.f32 %v1796, %v1809
        %v1812 = vadd.f32 %v1797, %v1810
        %1813 = vrot.lane.b32.xlu0 %v884, 112
        %v1814 = vpop.permute.xlu0 %1813
        %1815 = vrot.lane.b32.xlu0 %v885, 112
        %v1816 = vpop.permute.xlu0 %1815
        %1817 = vrot.lane.b32.xlu0 %v1814, 1
        %v1818 = vpop.permute.xlu0 %1817
        %1819 = vrot.lane.b32.xlu0 %v1816, 1
        %v1820 = vpop.permute.xlu0 %1819
        %v1821 = vsel %vm340, %v1818, 0.0
        %v1822 = vsel %vm340, %v1820, 0.0
        %1823 = vrot.lane.b32.xlu0 %v1814, 127
        %v1824 = vpop.permute.xlu0 %1823
        %1825 = vrot.lane.b32.xlu0 %v1816, 127
        %v1826 = vpop.permute.xlu0 %1825
        %v1827 = vsel %vm341, %v1824, 0.0
        %v1828 = vsel %vm341, %v1826, 0.0
        %v1829 = vrot.slane %v1821, 7
        %v1830 = vrot.slane %v1822, 7
        %v1831 = vsel %vm362, %v1829, %v1830
        %v1832 = vsel %vm362, %v1830, %v1829
        %v1833 = vsel %vm342, %v1832, 0.0
        %v1834 = vsel %vm343, %v1831, 0.0
        %v1835 = vld [vmem:[#allocation4 + $0x3f] sm:$0x1]
        %v1836 = vlaneseq
        %v1837 = vshrl.u32 %v1836, 7
        %v1838 = vsub.s32 0, %v1837
        %v1839 = vrot.slane %v1835, %v1838
        %v1840 = vmul.f32 %v1833, %v1839
        %v1841 = vmul.f32 %v1834, %v1839
        %v1842 = vadd.f32 %v1811, %v1840
        %v1843 = vadd.f32 %v1812, %v1841
        %v1844 = vrot.slane %v1814, 7
        %v1845 = vrot.slane %v1816, 7
        %v1846 = vsel %vm362, %v1844, %v1845
        %v1847 = vsel %vm362, %v1845, %v1844
        %v1848 = vsel %vm342, %v1847, 0.0
        %v1849 = vsel %vm343, %v1846, 0.0
        %v1850 = vld [vmem:[#allocation4 + $0x40] sm:$0x1]
        %v1851 = vlaneseq
        %v1852 = vshrl.u32 %v1851, 7
        %v1853 = vsub.s32 0, %v1852
        %v1854 = vrot.slane %v1850, %v1853
        %v1855 = vmul.f32 %v1848, %v1854
        %v1856 = vmul.f32 %v1849, %v1854
        %v1857 = vadd.f32 %v1842, %v1855
        %v1858 = vadd.f32 %v1843, %v1856
        %v1859 = vrot.slane %v1827, 7
        %v1860 = vrot.slane %v1828, 7
        %v1861 = vsel %vm362, %v1859, %v1860
        %v1862 = vsel %vm362, %v1860, %v1859
        %v1863 = vsel %vm342, %v1862, 0.0
        %v1864 = vsel %vm343, %v1861, 0.0
        %v1865 = vld [vmem:[#allocation4 + $0x41] sm:$0x1]
        %v1866 = vlaneseq
        %v1867 = vshrl.u32 %v1866, 7
        %v1868 = vsub.s32 0, %v1867
        %v1869 = vrot.slane %v1865, %v1868
        %v1870 = vmul.f32 %v1863, %v1869
        %v1871 = vmul.f32 %v1864, %v1869
        %v1872 = vadd.f32 %v1857, %v1870
        %v1873 = vadd.f32 %v1858, %v1871
        %v1874 = vld [vmem:[#allocation4 + $0x42] sm:$0x1]
        %v1875 = vlaneseq
        %v1876 = vshrl.u32 %v1875, 7
        %v1877 = vsub.s32 0, %v1876
        %v1878 = vrot.slane %v1874, %v1877
        %v1879 = vmul.f32 %v1821, %v1878
        %v1880 = vmul.f32 %v1822, %v1878
        %v1881 = vadd.f32 %v1872, %v1879
        %v1882 = vadd.f32 %v1873, %v1880
        %v1883 = vld [vmem:[#allocation4 + $0x43] sm:$0x1]
        %v1884 = vlaneseq
        %v1885 = vshrl.u32 %v1884, 7
        %v1886 = vsub.s32 0, %v1885
        %v1887 = vrot.slane %v1883, %v1886
        %v1888 = vmul.f32 %v1814, %v1887
        %v1889 = vmul.f32 %v1816, %v1887
        %v1890 = vadd.f32 %v1881, %v1888
        %v1891 = vadd.f32 %v1882, %v1889
        %v1892 = vld [vmem:[#allocation4 + $0x44] sm:$0x1]
        %v1893 = vlaneseq
        %v1894 = vshrl.u32 %v1893, 7
        %v1895 = vsub.s32 0, %v1894
        %v1896 = vrot.slane %v1892, %v1895
        %v1897 = vmul.f32 %v1827, %v1896
        %v1898 = vmul.f32 %v1828, %v1896
        %v1899 = vadd.f32 %v1890, %v1897
        %v1900 = vadd.f32 %v1891, %v1898
        %v1901 = vrot.slane %v1821, 1
        %v1902 = vrot.slane %v1822, 1
        %v1903 = vsel %vm435, %v1901, %v1902
        %v1904 = vsel %vm435, %v1902, %v1901
        %v1905 = vsel %vm344, %v1903, 0.0
        %v1906 = vsel %vm345, %v1904, 0.0
        %v1907 = vld [vmem:[#allocation4 + $0x45] sm:$0x1]
        %v1908 = vlaneseq
        %v1909 = vshrl.u32 %v1908, 7
        %v1910 = vsub.s32 0, %v1909
        %v1911 = vrot.slane %v1907, %v1910
        %v1912 = vmul.f32 %v1905, %v1911
        %v1913 = vmul.f32 %v1906, %v1911
        %v1914 = vadd.f32 %v1899, %v1912
        %v1915 = vadd.f32 %v1900, %v1913
        %v1916 = vrot.slane %v1814, 1
        %v1917 = vrot.slane %v1816, 1
        %v1918 = vsel %vm435, %v1916, %v1917
        %v1919 = vsel %vm435, %v1917, %v1916
        %v1920 = vsel %vm344, %v1918, 0.0
        %v1921 = vsel %vm345, %v1919, 0.0
        %v1922 = vld [vmem:[#allocation4 + $0x46] sm:$0x1]
        %v1923 = vlaneseq
        %v1924 = vshrl.u32 %v1923, 7
        %v1925 = vsub.s32 0, %v1924
        %v1926 = vrot.slane %v1922, %v1925
        %v1927 = vmul.f32 %v1920, %v1926
        %v1928 = vmul.f32 %v1921, %v1926
        %v1929 = vadd.f32 %v1914, %v1927
        %v1930 = vadd.f32 %v1915, %v1928
        %v1931 = vrot.slane %v1827, 1
        %v1932 = vrot.slane %v1828, 1
        %v1933 = vsel %vm435, %v1931, %v1932
        %v1934 = vsel %vm435, %v1932, %v1931
        %v1935 = vsel %vm344, %v1933, 0.0
        %v1936 = vsel %vm345, %v1934, 0.0
        %v1937 = vld [vmem:[#allocation4 + $0x47] sm:$0x1]
        %v1938 = vlaneseq
        %v1939 = vshrl.u32 %v1938, 7
        %v1940 = vsub.s32 0, %v1939
        %v1941 = vrot.slane %v1937, %v1940
        %v1942 = vmul.f32 %v1935, %v1941
        %v1943 = vmul.f32 %v1936, %v1941
        %v1944 = vadd.f32 %v1929, %v1942
        %v1945 = vadd.f32 %v1930, %v1943
        %v1946 = vld [vmem:[%s4] sm:$0x1]
        %v1948 = vlaneseq
        %v1949 = vshrl.u32 %v1948, 7
        %v1950 = vsub.s32 0, %v1949
        %v1951 = vrot.slane %v1946, %v1950
        %v1953 = vadd.f32 %v1944, %v1951
        %v1954 = vadd.f32 %v1945, %v1951
        %v1955 = vmax.f32 %v1953, 0.0
        %v1956 = vmax.f32 %v1954, 0.0
        %1957 = vrot.lane.b32.xlu0 %v1955, 112
        %v1958 = vpop.permute.xlu0 %1957
        %1959 = vrot.lane.b32.xlu0 %v1956, 112
        %v1960 = vpop.permute.xlu0 %1959
        %1961 = vrot.lane.b32.xlu0 %v1955, 96
        %v1962 = vpop.permute.xlu0 %1961
        %1963 = vrot.lane.b32.xlu0 %v1956, 96
        %v1964 = vpop.permute.xlu0 %1963
        %1965 = vrot.lane.b32.xlu0 %v1955, 80
        %v1966 = vpop.permute.xlu0 %1965
        %1967 = vrot.lane.b32.xlu0 %v1956, 80
        %v1968 = vpop.permute.xlu0 %1967
        %1969 = vrot.lane.b32.xlu0 %v1955, 64
        %v1970 = vpop.permute.xlu0 %1969
        %1971 = vrot.lane.b32.xlu0 %v1956, 64
        %v1972 = vpop.permute.xlu0 %1971
        %1973 = vrot.lane.b32.xlu0 %v1955, 48
        %v1974 = vpop.permute.xlu0 %1973
        %1975 = vrot.lane.b32.xlu0 %v1956, 48
        %v1976 = vpop.permute.xlu0 %1975
        %1977 = vrot.lane.b32.xlu0 %v1955, 32
        %v1978 = vpop.permute.xlu0 %1977
        %1979 = vrot.lane.b32.xlu0 %v1956, 32
        %v1980 = vpop.permute.xlu0 %1979
        %1981 = vrot.lane.b32.xlu0 %v1955, 16
        %v1982 = vpop.permute.xlu0 %1981
        %1983 = vrot.lane.b32.xlu0 %v1956, 16
        %v1984 = vpop.permute.xlu0 %1983
        %v1985 = vld [vmem:[#allocation6] sm:$0xff]
        %v1986 = vld [vmem:[#allocation6 + $0x8] sm:$0xff]
        %v1987 = vld [vmem:[#allocation6 + $0x10] sm:$0xff]
        %v1988 = vld [vmem:[#allocation6 + $0x18] sm:$0xff]
        %v1989 = vld [vmem:[#allocation6 + $0x20] sm:$0xff]
        %v1990 = vld [vmem:[#allocation6 + $0x28] sm:$0xff]
        %v1991 = vld [vmem:[#allocation6 + $0x30] sm:$0xff]
        %v1992 = vld [vmem:[#allocation6 + $0x38] sm:$0xff]
        %v1993 = vld [vmem:[#allocation6 + $0x40] sm:$0xff]
        %v1994 = vld [vmem:[#allocation6 + $0x48] sm:$0xff]
        %v1995 = vld [vmem:[#allocation6 + $0x50] sm:$0xff]
        %v1996 = vld [vmem:[#allocation6 + $0x58] sm:$0xff]
        %v1997 = vld [vmem:[#allocation6 + $0x60] sm:$0xff]
        %v1998 = vld [vmem:[#allocation6 + $0x68] sm:$0xff]
        %v1999 = vld [vmem:[#allocation6 + $0x70] sm:$0xff]
        %v2000 = vld [vmem:[#allocation6 + $0x78] sm:$0xff]
        %v2001 = vld [vmem:[#allocation6 + $0x80] sm:$0xff]
        %v2002 = vld [vmem:[#allocation6 + $0x88] sm:$0xff]
        %v2003 = vld [vmem:[#allocation6 + $0x90] sm:$0xff]
        %v2004 = vld [vmem:[#allocation6 + $0x98] sm:$0xff]
        %v2005 = vld [vmem:[#allocation6 + $0xa0] sm:$0xff]
        %v2006 = vld [vmem:[#allocation6 + $0xa8] sm:$0xff]
        %v2007 = vld [vmem:[#allocation6 + $0xb0] sm:$0xff]
        %v2008 = vld [vmem:[#allocation6 + $0xb8] sm:$0xff]
        %v2009 = vld [vmem:[#allocation6 + $0xc0] sm:$0xff]
        %v2010 = vld [vmem:[#allocation6 + $0xc8] sm:$0xff]
        %v2011 = vld [vmem:[#allocation6 + $0xd0] sm:$0xff]
        %v2012 = vld [vmem:[#allocation6 + $0xd8] sm:$0xff]
        %v2013 = vld [vmem:[#allocation6 + $0xe0] sm:$0xff]
        %v2014 = vld [vmem:[#allocation6 + $0xe8] sm:$0xff]
        %v2015 = vld [vmem:[#allocation6 + $0xf0] sm:$0xff]
        %v2016 = vld [vmem:[#allocation6 + $0xf8] sm:$0xff]
        %2017 = vmatprep.subr.mxu0 0.0
        %2018 = vmatpush1.msra.mxu0 %v1955
        %2019 = vmatprep.subr.mxu0 0.0
        %2020 = vmatpush1.msra.mxu0 %v1956
        %2021 = vmatprep.subr.mxu0 0.0
        %2022 = vmatpush1.msra.mxu0 %v1958
        %2023 = vmatprep.subr.mxu0 0.0
        %2024 = vmatpush1.msra.mxu0 %v1960
        %2025 = vmatprep.subr.mxu0 0.0
        %2026 = vmatpush1.msra.mxu0 %v1962
        %2027 = vmatprep.subr.mxu0 0.0
        %2028 = vmatpush1.msra.mxu0 %v1964
        %2029 = vmatprep.subr.mxu0 0.0
        %2030 = vmatpush1.msra.mxu0 %v1966
        %2031 = vmatprep.subr.mxu0 0.0
        %2032 = vmatpush1.msra.mxu0 %v1968
        %2033 = vmatprep.subr.mxu0 0.0
        %2034 = vmatpush1.msra.mxu0 %v1970
        %2035 = vmatprep.subr.mxu0 0.0
        %2036 = vmatpush1.msra.mxu0 %v1972
        %2037 = vmatprep.subr.mxu0 0.0
        %2038 = vmatpush1.msra.mxu0 %v1974
        %2039 = vmatprep.subr.mxu0 0.0
        %2040 = vmatpush1.msra.mxu0 %v1976
        %2041 = vmatprep.subr.mxu0 0.0
        %2042 = vmatpush1.msra.mxu0 %v1978
        %2043 = vmatprep.subr.mxu0 0.0
        %2044 = vmatpush1.msra.mxu0 %v1980
        %2045 = vmatprep.subr.mxu0 0.0
        %2046 = vmatpush1.msra.mxu0 %v1982
        %2047 = vmatprep.subr.mxu0 0.0
        %2048 = vmatpush1.msra.mxu0 %v1984
        %2049 = vmatprep.subr.mxu0 0.0
        %2050 = vmatpush1.msra.mxu0 0.0
        %2051 = vmatprep.subr.mxu0 0.0
        %2052 = vmatpush1.msra.mxu0 0.0
        %2053 = vmatprep.subr.mxu0 0.0
        %2054 = vmatpush1.msra.mxu0 0.0
        %2055 = vmatprep.subr.mxu0 0.0
        %2056 = vmatpush1.msra.mxu0 0.0
        %2057 = vmatprep.subr.mxu0 0.0
        %2058 = vmatpush1.msra.mxu0 0.0
        %2059 = vmatprep.subr.mxu0 0.0
        %2060 = vmatpush1.msra.mxu0 0.0
        %2061 = vmatprep.subr.mxu0 0.0
        %2062 = vmatpush1.msra.mxu0 0.0
        %2063 = vmatprep.subr.mxu0 0.0
        %2064 = vmatpush1.msra.mxu0 0.0
        %2065 = vmatprep.subr.mxu0 0.0
        %2066 = vmatpush1.msra.mxu0 0.0
        %2067 = vmatprep.subr.mxu0 0.0
        %2068 = vmatpush1.msra.mxu0 0.0
        %2069 = vmatprep.subr.mxu0 0.0
        %2070 = vmatpush1.msra.mxu0 0.0
        %2071 = vmatprep.subr.mxu0 0.0
        %2072 = vmatpush1.msra.mxu0 0.0
        %2073 = vmatprep.subr.mxu0 0.0
        %2074 = vmatpush1.msra.mxu0 0.0
        %2075 = vmatprep.subr.mxu0 0.0
        %2076 = vmatpush1.msra.mxu0 0.0
        %2077 = vmatprep.subr.mxu0 0.0
        %2078 = vmatpush1.msra.mxu0 0.0
        %2079 = vmatprep.subr.mxu0 0.0
        %2080 = vmatpush1.msra.mxu0 0.0
        %2081 = vmatprep.mubr.f32.mxu0 0.0
        %2082 = vmatmul.mubr.f32.gmra.mrb[0].mxu0 %v1985
        %v2083 = vpop.f32.mrb[0].mxu0
        %v2084 = vadd.f32 0.0, %v2083
        %v2085 = vpop.f32.mrb[0].mxu0
        %2086 = vmatprep.mubr.f32.mxu0 0.0
        %2087 = vmatmul.mubr.f32.gmra.mrb[0].mxu0 %v1986
        %v2088 = vpop.f32.mrb[0].mxu0
        %v2089 = vadd.f32 0.0, %v2088
        %v2090 = vpop.f32.mrb[0].mxu0
        %2091 = vmatprep.mubr.f32.mxu0 0.0
        %2092 = vmatmul.mubr.f32.gmra.mrb[0].mxu0 %v1987
        %v2093 = vpop.f32.mrb[0].mxu0
        %v2094 = vadd.f32 0.0, %v2093
        %v2095 = vpop.f32.mrb[0].mxu0
        %2096 = vmatprep.mubr.f32.mxu0 0.0
        %2097 = vmatmul.mubr.f32.gmra.mrb[0].mxu0 %v1988
        %v2098 = vpop.f32.mrb[0].mxu0
        %v2099 = vadd.f32 0.0, %v2098
        %v2100 = vpop.f32.mrb[0].mxu0
        %2101 = vmatprep.mubr.f32.mxu0 0.0
        %2102 = vmatmul.mubr.f32.gmra.mrb[0].mxu0 %v1989
        %v2103 = vpop.f32.mrb[0].mxu0
        %v2104 = vadd.f32 0.0, %v2103
        %v2105 = vpop.f32.mrb[0].mxu0
        %2106 = vmatprep.mubr.f32.mxu0 0.0
        %2107 = vmatmul.mubr.f32.gmra.mrb[0].mxu0 %v1990
        %v2108 = vpop.f32.mrb[0].mxu0
        %v2109 = vadd.f32 0.0, %v2108
        %v2110 = vpop.f32.mrb[0].mxu0
        %2111 = vmatprep.mubr.f32.mxu0 0.0
        %2112 = vmatmul.mubr.f32.gmra.mrb[0].mxu0 %v1991
        %v2113 = vpop.f32.mrb[0].mxu0
        %v2114 = vadd.f32 0.0, %v2113
        %v2115 = vpop.f32.mrb[0].mxu0
        %2116 = vmatprep.mubr.f32.mxu0 0.0
        %2117 = vmatmul.mubr.f32.gmra.mrb[0].mxu0 %v1992
        %v2118 = vpop.f32.mrb[0].mxu0
        %v2119 = vadd.f32 0.0, %v2118
        %v2120 = vpop.f32.mrb[0].mxu0
        %2121 = vmatprep.mubr.f32.mxu0 0.0
        %2122 = vmatmul.mubr.f32.gmra.mrb[0].mxu0 %v1993
        %v2123 = vpop.f32.mrb[0].mxu0
        %v2124 = vadd.f32 0.0, %v2123
        %v2125 = vpop.f32.mrb[0].mxu0
        %2126 = vmatprep.mubr.f32.mxu0 0.0
        %2127 = vmatmul.mubr.f32.gmra.mrb[0].mxu0 %v1994
        %v2128 = vpop.f32.mrb[0].mxu0
        %v2129 = vadd.f32 0.0, %v2128
        %v2130 = vpop.f32.mrb[0].mxu0
        %2131 = vmatprep.mubr.f32.mxu0 0.0
        %2132 = vmatmul.mubr.f32.gmra.mrb[0].mxu0 %v1995
        %v2133 = vpop.f32.mrb[0].mxu0
        %v2134 = vadd.f32 0.0, %v2133
        %v2135 = vpop.f32.mrb[0].mxu0
        %2136 = vmatprep.mubr.f32.mxu0 0.0
        %2137 = vmatmul.mubr.f32.gmra.mrb[0].mxu0 %v1996
        %v2138 = vpop.f32.mrb[0].mxu0
        %v2139 = vadd.f32 0.0, %v2138
        %v2140 = vpop.f32.mrb[0].mxu0
        %2141 = vmatprep.mubr.f32.mxu0 0.0
        %2142 = vmatmul.mubr.f32.gmra.mrb[0].mxu0 %v1997
        %v2143 = vpop.f32.mrb[0].mxu0
        %v2144 = vadd.f32 0.0, %v2143
        %v2145 = vpop.f32.mrb[0].mxu0
        %2146 = vmatprep.mubr.f32.mxu0 0.0
        %2147 = vmatmul.mubr.f32.gmra.mrb[0].mxu0 %v1998
        %v2148 = vpop.f32.mrb[0].mxu0
        %v2149 = vadd.f32 0.0, %v2148
        %v2150 = vpop.f32.mrb[0].mxu0
        %2151 = vmatprep.mubr.f32.mxu0 0.0
        %2152 = vmatmul.mubr.f32.gmra.mrb[0].mxu0 %v1999
        %v2153 = vpop.f32.mrb[0].mxu0
        %v2154 = vadd.f32 0.0, %v2153
        %v2155 = vpop.f32.mrb[0].mxu0
        %2156 = vmatprep.mubr.f32.mxu0 0.0
        %2157 = vmatmul.mubr.f32.gmra.mrb[0].mxu0 %v2000
        %v2158 = vpop.f32.mrb[0].mxu0
        %v2159 = vadd.f32 0.0, %v2158
        %v2160 = vpop.f32.mrb[0].mxu0
        %2161 = vmatprep.mubr.f32.mxu0 0.0
        %2162 = vmatmul.mubr.f32.gmra.mrb[0].mxu0 %v2001
        %v2163 = vpop.f32.mrb[0].mxu0
        %v2164 = vadd.f32 0.0, %v2163
        %v2165 = vpop.f32.mrb[0].mxu0
        %2166 = vmatprep.mubr.f32.mxu0 0.0
        %2167 = vmatmul.mubr.f32.gmra.mrb[0].mxu0 %v2002
        %v2168 = vpop.f32.mrb[0].mxu0
        %v2169 = vadd.f32 0.0, %v2168
        %v2170 = vpop.f32.mrb[0].mxu0
        %2171 = vmatprep.mubr.f32.mxu0 0.0
        %2172 = vmatmul.mubr.f32.gmra.mrb[0].mxu0 %v2003
        %v2173 = vpop.f32.mrb[0].mxu0
        %v2174 = vadd.f32 0.0, %v2173
        %v2175 = vpop.f32.mrb[0].mxu0
        %2176 = vmatprep.mubr.f32.mxu0 0.0
        %2177 = vmatmul.mubr.f32.gmra.mrb[0].mxu0 %v2004
        %v2178 = vpop.f32.mrb[0].mxu0
        %v2179 = vadd.f32 0.0, %v2178
        %v2180 = vpop.f32.mrb[0].mxu0
        %2181 = vmatprep.mubr.f32.mxu0 0.0
        %2182 = vmatmul.mubr.f32.gmra.mrb[0].mxu0 %v2005
        %v2183 = vpop.f32.mrb[0].mxu0
        %v2184 = vadd.f32 0.0, %v2183
        %v2185 = vpop.f32.mrb[0].mxu0
        %2186 = vmatprep.mubr.f32.mxu0 0.0
        %2187 = vmatmul.mubr.f32.gmra.mrb[0].mxu0 %v2006
        %v2188 = vpop.f32.mrb[0].mxu0
        %v2189 = vadd.f32 0.0, %v2188
        %v2190 = vpop.f32.mrb[0].mxu0
        %2191 = vmatprep.mubr.f32.mxu0 0.0
        %2192 = vmatmul.mubr.f32.gmra.mrb[0].mxu0 %v2007
        %v2193 = vpop.f32.mrb[0].mxu0
        %v2194 = vadd.f32 0.0, %v2193
        %v2195 = vpop.f32.mrb[0].mxu0
        %2196 = vmatprep.mubr.f32.mxu0 0.0
        %2197 = vmatmul.mubr.f32.gmra.mrb[0].mxu0 %v2008
        %v2198 = vpop.f32.mrb[0].mxu0
        %v2199 = vadd.f32 0.0, %v2198
        %v2200 = vpop.f32.mrb[0].mxu0
        %2201 = vmatprep.mubr.f32.mxu0 0.0
        %2202 = vmatmul.mubr.f32.gmra.mrb[0].mxu0 %v2009
        %v2203 = vpop.f32.mrb[0].mxu0
        %v2204 = vadd.f32 0.0, %v2203
        %v2205 = vpop.f32.mrb[0].mxu0
        %2206 = vmatprep.mubr.f32.mxu0 0.0
        %2207 = vmatmul.mubr.f32.gmra.mrb[0].mxu0 %v2010
        %v2208 = vpop.f32.mrb[0].mxu0
        %v2209 = vadd.f32 0.0, %v2208
        %v2210 = vpop.f32.mrb[0].mxu0
        %2211 = vmatprep.mubr.f32.mxu0 0.0
        %2212 = vmatmul.mubr.f32.gmra.mrb[0].mxu0 %v2011
        %v2213 = vpop.f32.mrb[0].mxu0
        %v2214 = vadd.f32 0.0, %v2213
        %v2215 = vpop.f32.mrb[0].mxu0
        %2216 = vmatprep.mubr.f32.mxu0 0.0
        %2217 = vmatmul.mubr.f32.gmra.mrb[0].mxu0 %v2012
        %v2218 = vpop.f32.mrb[0].mxu0
        %v2219 = vadd.f32 0.0, %v2218
        %v2220 = vpop.f32.mrb[0].mxu0
        %2221 = vmatprep.mubr.f32.mxu0 0.0
        %2222 = vmatmul.mubr.f32.gmra.mrb[0].mxu0 %v2013
        %v2223 = vpop.f32.mrb[0].mxu0
        %v2224 = vadd.f32 0.0, %v2223
        %v2225 = vpop.f32.mrb[0].mxu0
        %2226 = vmatprep.mubr.f32.mxu0 0.0
        %2227 = vmatmul.mubr.f32.gmra.mrb[0].mxu0 %v2014
        %v2228 = vpop.f32.mrb[0].mxu0
        %v2229 = vadd.f32 0.0, %v2228
        %v2230 = vpop.f32.mrb[0].mxu0
        %2231 = vmatprep.mubr.f32.mxu0 0.0
        %2232 = vmatmul.mubr.f32.gmra.mrb[0].mxu0 %v2015
        %v2233 = vpop.f32.mrb[0].mxu0
        %v2234 = vadd.f32 0.0, %v2233
        %v2235 = vpop.f32.mrb[0].mxu0
        %2236 = vmatprep.mubr.f32.mxu0 0.0
        %2237 = vmatmul.mubr.f32.gmra.mrb[0].mxu0 %v2016
        %v2238 = vpop.f32.mrb[0].mxu0
        %v2239 = vadd.f32 0.0, %v2238
        %v2240 = vpop.f32.mrb[0].mxu0
        %2241 = vdwg.mxu0
        %v2242 = vld [vmem:[%s6] sm:$0xff]
        %v2243 = vld [vmem:[%s6 + $0x8] sm:$0xff]
        %v2244 = vld [vmem:[%s6 + $0x10] sm:$0xff]
        %v2245 = vld [vmem:[%s6 + $0x18] sm:$0xff]
        %v2246 = vld [vmem:[%s6 + $0x20] sm:$0xff]
        %v2247 = vld [vmem:[%s6 + $0x28] sm:$0xff]
        %v2248 = vld [vmem:[%s6 + $0x30] sm:$0xff]
        %v2249 = vld [vmem:[%s6 + $0x38] sm:$0xff]
        %v2250 = vld [vmem:[%s6 + $0x40] sm:$0xff]
        %v2251 = vld [vmem:[%s6 + $0x48] sm:$0xff]
        %v2252 = vld [vmem:[%s6 + $0x50] sm:$0xff]
        %v2253 = vld [vmem:[%s6 + $0x58] sm:$0xff]
        %v2254 = vld [vmem:[%s6 + $0x60] sm:$0xff]
        %v2255 = vld [vmem:[%s6 + $0x68] sm:$0xff]
        %v2256 = vld [vmem:[%s6 + $0x70] sm:$0xff]
        %v2257 = vld [vmem:[%s6 + $0x78] sm:$0xff]
        %2258 = vmatprep.subr.mxu0 0.0
        %2259 = vmatpush1.msra.mxu0 %v2242
        %2260 = vmatprep.subr.mxu0 0.0
        %2261 = vmatpush1.msra.mxu0 %v2243
        %2262 = vmatprep.subr.mxu0 0.0
        %2263 = vmatpush1.msra.mxu0 %v2244
        %2264 = vmatprep.subr.mxu0 0.0
        %2265 = vmatpush1.msra.mxu0 %v2245
        %2266 = vmatprep.subr.mxu0 0.0
        %2267 = vmatpush1.msra.mxu0 %v2246
        %2268 = vmatprep.subr.mxu0 0.0
        %2269 = vmatpush1.msra.mxu0 %v2247
        %2270 = vmatprep.subr.mxu0 0.0
        %2271 = vmatpush1.msra.mxu0 %v2248
        %2272 = vmatprep.subr.mxu0 0.0
        %2273 = vmatpush1.msra.mxu0 %v2249
        %2274 = vmatprep.subr.mxu0 0.0
        %2275 = vmatpush1.msra.mxu0 %v2250
        %2276 = vmatprep.subr.mxu0 0.0
        %2277 = vmatpush1.msra.mxu0 %v2251
        %2278 = vmatprep.subr.mxu0 0.0
        %2279 = vmatpush1.msra.mxu0 %v2252
        %2280 = vmatprep.subr.mxu0 0.0
        %2281 = vmatpush1.msra.mxu0 %v2253
        %2282 = vmatprep.subr.mxu0 0.0
        %2283 = vmatpush1.msra.mxu0 %v2254
        %2284 = vmatprep.subr.mxu0 0.0
        %2285 = vmatpush1.msra.mxu0 %v2255
        %2286 = vmatprep.subr.mxu0 0.0
        %2287 = vmatpush1.msra.mxu0 %v2256
        %2288 = vmatprep.subr.mxu0 0.0
        %2289 = vmatpush1.msra.mxu0 %v2257
        %2290 = vmatprep.subr.mxu0 0.0
        %2291 = vmatpush1.msra.mxu0 0.0
        %2292 = vmatprep.subr.mxu0 0.0
        %2293 = vmatpush1.msra.mxu0 0.0
        %2294 = vmatprep.subr.mxu0 0.0
        %2295 = vmatpush1.msra.mxu0 0.0
        %2296 = vmatprep.subr.mxu0 0.0
        %2297 = vmatpush1.msra.mxu0 0.0
        %2298 = vmatprep.subr.mxu0 0.0
        %2299 = vmatpush1.msra.mxu0 0.0
        %2300 = vmatprep.subr.mxu0 0.0
        %2301 = vmatpush1.msra.mxu0 0.0
        %2302 = vmatprep.subr.mxu0 0.0
        %2303 = vmatpush1.msra.mxu0 0.0
        %2304 = vmatprep.subr.mxu0 0.0
        %2305 = vmatpush1.msra.mxu0 0.0
        %2306 = vmatprep.subr.mxu0 0.0
        %2307 = vmatpush1.msra.mxu0 0.0
        %2308 = vmatprep.subr.mxu0 0.0
        %2309 = vmatpush1.msra.mxu0 0.0
        %2310 = vmatprep.subr.mxu0 0.0
        %2311 = vmatpush1.msra.mxu0 0.0
        %2312 = vmatprep.subr.mxu0 0.0
        %2313 = vmatpush1.msra.mxu0 0.0
        %2314 = vmatprep.subr.mxu0 0.0
        %2315 = vmatpush1.msra.mxu0 0.0
        %2316 = vmatprep.subr.mxu0 0.0
        %2317 = vmatpush1.msra.mxu0 0.0
        %2318 = vmatprep.subr.mxu0 0.0
        %2319 = vmatpush1.msra.mxu0 0.0
        %2320 = vmatprep.subr.mxu0 0.0
        %2321 = vmatpush1.msra.mxu0 0.0
        %2322 = vmatprep.mubr.f32.mxu0 0.0
        %2323 = vmatmul.mubr.f32.gmra.mrb[0].mxu0 %v2084
        %v2324 = vpop.f32.mrb[0].mxu0
        %v2325 = vadd.f32 0.0, %v2324
        %v2326 = vpop.f32.mrb[0].mxu0
        %2327 = vmatprep.mubr.f32.mxu0 0.0
        %2328 = vmatmul.mubr.f32.gmra.mrb[0].mxu0 %v2089
        %v2329 = vpop.f32.mrb[0].mxu0
        %v2330 = vadd.f32 0.0, %v2329
        %v2331 = vpop.f32.mrb[0].mxu0
        %2332 = vmatprep.mubr.f32.mxu0 0.0
        %2333 = vmatmul.mubr.f32.gmra.mrb[0].mxu0 %v2094
        %v2334 = vpop.f32.mrb[0].mxu0
        %v2335 = vadd.f32 0.0, %v2334
        %v2336 = vpop.f32.mrb[0].mxu0
        %2337 = vmatprep.mubr.f32.mxu0 0.0
        %2338 = vmatmul.mubr.f32.gmra.mrb[0].mxu0 %v2099
        %v2339 = vpop.f32.mrb[0].mxu0
        %v2340 = vadd.f32 0.0, %v2339
        %v2341 = vpop.f32.mrb[0].mxu0
        %2342 = vmatprep.mubr.f32.mxu0 0.0
        %2343 = vmatmul.mubr.f32.gmra.mrb[0].mxu0 %v2104
        %v2344 = vpop.f32.mrb[0].mxu0
        %v2345 = vadd.f32 0.0, %v2344
        %v2346 = vpop.f32.mrb[0].mxu0
        %2347 = vmatprep.mubr.f32.mxu0 0.0
        %2348 = vmatmul.mubr.f32.gmra.mrb[0].mxu0 %v2109
        %v2349 = vpop.f32.mrb[0].mxu0
        %v2350 = vadd.f32 0.0, %v2349
        %v2351 = vpop.f32.mrb[0].mxu0
        %2352 = vmatprep.mubr.f32.mxu0 0.0
        %2353 = vmatmul.mubr.f32.gmra.mrb[0].mxu0 %v2114
        %v2354 = vpop.f32.mrb[0].mxu0
        %v2355 = vadd.f32 0.0, %v2354
        %v2356 = vpop.f32.mrb[0].mxu0
        %2357 = vmatprep.mubr.f32.mxu0 0.0
        %2358 = vmatmul.mubr.f32.gmra.mrb[0].mxu0 %v2119
        %v2359 = vpop.f32.mrb[0].mxu0
        %v2360 = vadd.f32 0.0, %v2359
        %v2361 = vpop.f32.mrb[0].mxu0
        %2362 = vmatprep.mubr.f32.mxu0 0.0
        %2363 = vmatmul.mubr.f32.gmra.mrb[0].mxu0 %v2124
        %v2364 = vpop.f32.mrb[0].mxu0
        %v2365 = vadd.f32 0.0, %v2364
        %v2366 = vpop.f32.mrb[0].mxu0
        %2367 = vmatprep.mubr.f32.mxu0 0.0
        %2368 = vmatmul.mubr.f32.gmra.mrb[0].mxu0 %v2129
        %v2369 = vpop.f32.mrb[0].mxu0
        %v2370 = vadd.f32 0.0, %v2369
        %v2371 = vpop.f32.mrb[0].mxu0
        %2372 = vmatprep.mubr.f32.mxu0 0.0
        %2373 = vmatmul.mubr.f32.gmra.mrb[0].mxu0 %v2134
        %v2374 = vpop.f32.mrb[0].mxu0
        %v2375 = vadd.f32 0.0, %v2374
        %v2376 = vpop.f32.mrb[0].mxu0
        %2377 = vmatprep.mubr.f32.mxu0 0.0
        %2378 = vmatmul.mubr.f32.gmra.mrb[0].mxu0 %v2139
        %v2379 = vpop.f32.mrb[0].mxu0
        %v2380 = vadd.f32 0.0, %v2379
        %v2381 = vpop.f32.mrb[0].mxu0
        %2382 = vmatprep.mubr.f32.mxu0 0.0
        %2383 = vmatmul.mubr.f32.gmra.mrb[0].mxu0 %v2144
        %v2384 = vpop.f32.mrb[0].mxu0
        %v2385 = vadd.f32 0.0, %v2384
        %v2386 = vpop.f32.mrb[0].mxu0
        %2387 = vmatprep.mubr.f32.mxu0 0.0
        %2388 = vmatmul.mubr.f32.gmra.mrb[0].mxu0 %v2149
        %v2389 = vpop.f32.mrb[0].mxu0
        %v2390 = vadd.f32 0.0, %v2389
        %v2391 = vpop.f32.mrb[0].mxu0
        %2392 = vmatprep.mubr.f32.mxu0 0.0
        %2393 = vmatmul.mubr.f32.gmra.mrb[0].mxu0 %v2154
        %v2394 = vpop.f32.mrb[0].mxu0
        %v2395 = vadd.f32 0.0, %v2394
        %v2396 = vpop.f32.mrb[0].mxu0
        %2397 = vmatprep.mubr.f32.mxu0 0.0
        %2398 = vmatmul.mubr.f32.gmra.mrb[0].mxu0 %v2159
        %v2399 = vpop.f32.mrb[0].mxu0
        %v2400 = vadd.f32 0.0, %v2399
        %v2401 = vpop.f32.mrb[0].mxu0
        %2402 = vmatprep.mubr.f32.mxu0 0.0
        %2403 = vmatmul.mubr.f32.gmra.mrb[0].mxu0 %v2164
        %v2404 = vpop.f32.mrb[0].mxu0
        %v2405 = vadd.f32 0.0, %v2404
        %v2406 = vpop.f32.mrb[0].mxu0
        %2407 = vmatprep.mubr.f32.mxu0 0.0
        %2408 = vmatmul.mubr.f32.gmra.mrb[0].mxu0 %v2169
        %v2409 = vpop.f32.mrb[0].mxu0
        %v2410 = vadd.f32 0.0, %v2409
        %v2411 = vpop.f32.mrb[0].mxu0
        %2412 = vmatprep.mubr.f32.mxu0 0.0
        %2413 = vmatmul.mubr.f32.gmra.mrb[0].mxu0 %v2174
        %v2414 = vpop.f32.mrb[0].mxu0
        %v2415 = vadd.f32 0.0, %v2414
        %v2416 = vpop.f32.mrb[0].mxu0
        %2417 = vmatprep.mubr.f32.mxu0 0.0
        %2418 = vmatmul.mubr.f32.gmra.mrb[0].mxu0 %v2179
        %v2419 = vpop.f32.mrb[0].mxu0
        %v2420 = vadd.f32 0.0, %v2419
        %v2421 = vpop.f32.mrb[0].mxu0
        %2422 = vmatprep.mubr.f32.mxu0 0.0
        %2423 = vmatmul.mubr.f32.gmra.mrb[0].mxu0 %v2184
        %v2424 = vpop.f32.mrb[0].mxu0
        %v2425 = vadd.f32 0.0, %v2424
        %v2426 = vpop.f32.mrb[0].mxu0
        %2427 = vmatprep.mubr.f32.mxu0 0.0
        %2428 = vmatmul.mubr.f32.gmra.mrb[0].mxu0 %v2189
        %v2429 = vpop.f32.mrb[0].mxu0
        %v2430 = vadd.f32 0.0, %v2429
        %v2431 = vpop.f32.mrb[0].mxu0
        %2432 = vmatprep.mubr.f32.mxu0 0.0
        %2433 = vmatmul.mubr.f32.gmra.mrb[0].mxu0 %v2194
        %v2434 = vpop.f32.mrb[0].mxu0
        %v2435 = vadd.f32 0.0, %v2434
        %v2436 = vpop.f32.mrb[0].mxu0
        %2437 = vmatprep.mubr.f32.mxu0 0.0
        %2438 = vmatmul.mubr.f32.gmra.mrb[0].mxu0 %v2199
        %v2439 = vpop.f32.mrb[0].mxu0
        %v2440 = vadd.f32 0.0, %v2439
        %v2441 = vpop.f32.mrb[0].mxu0
        %2442 = vmatprep.mubr.f32.mxu0 0.0
        %2443 = vmatmul.mubr.f32.gmra.mrb[0].mxu0 %v2204
        %v2444 = vpop.f32.mrb[0].mxu0
        %v2445 = vadd.f32 0.0, %v2444
        %v2446 = vpop.f32.mrb[0].mxu0
        %2447 = vmatprep.mubr.f32.mxu0 0.0
        %2448 = vmatmul.mubr.f32.gmra.mrb[0].mxu0 %v2209
        %v2449 = vpop.f32.mrb[0].mxu0
        %v2450 = vadd.f32 0.0, %v2449
        %v2451 = vpop.f32.mrb[0].mxu0
        %2452 = vmatprep.mubr.f32.mxu0 0.0
        %2453 = vmatmul.mubr.f32.gmra.mrb[0].mxu0 %v2214
        %v2454 = vpop.f32.mrb[0].mxu0
        %v2455 = vadd.f32 0.0, %v2454
        %v2456 = vpop.f32.mrb[0].mxu0
        %2457 = vmatprep.mubr.f32.mxu0 0.0
        %2458 = vmatmul.mubr.f32.gmra.mrb[0].mxu0 %v2219
        %v2459 = vpop.f32.mrb[0].mxu0
        %v2460 = vadd.f32 0.0, %v2459
        %v2461 = vpop.f32.mrb[0].mxu0
        %2462 = vmatprep.mubr.f32.mxu0 0.0
        %2463 = vmatmul.mubr.f32.gmra.mrb[0].mxu0 %v2224
        %v2464 = vpop.f32.mrb[0].mxu0
        %v2465 = vadd.f32 0.0, %v2464
        %v2466 = vpop.f32.mrb[0].mxu0
        %2467 = vmatprep.mubr.f32.mxu0 0.0
        %2468 = vmatmul.mubr.f32.gmra.mrb[0].mxu0 %v2229
        %v2469 = vpop.f32.mrb[0].mxu0
        %v2470 = vadd.f32 0.0, %v2469
        %v2471 = vpop.f32.mrb[0].mxu0
        %2472 = vmatprep.mubr.f32.mxu0 0.0
        %2473 = vmatmul.mubr.f32.gmra.mrb[0].mxu0 %v2234
        %v2474 = vpop.f32.mrb[0].mxu0
        %v2475 = vadd.f32 0.0, %v2474
        %v2476 = vpop.f32.mrb[0].mxu0
        %2477 = vmatprep.mubr.f32.mxu0 0.0
        %2478 = vmatmul.mubr.f32.gmra.mrb[0].mxu0 %v2239
        %v2479 = vpop.f32.mrb[0].mxu0
        %v2480 = vadd.f32 0.0, %v2479
        %v2481 = vpop.f32.mrb[0].mxu0
        %2482 = vdwg.mxu0
        %vm2483 = vcmask 261120
        %2484 = vst.msk [vmem:[%s322] sm:$0xff] %vm2483, %v2325
        %2485 = vst.msk [vmem:[%s322 + $0x8] sm:$0xff] %vm2483, %v2330
        %2486 = vst.msk [vmem:[%s322 + $0x10] sm:$0xff] %vm2483, %v2335
        %2487 = vst.msk [vmem:[%s322 + $0x18] sm:$0xff] %vm2483, %v2340
        %2488 = vst.msk [vmem:[%s322 + $0x20] sm:$0xff] %vm2483, %v2345
        %2489 = vst.msk [vmem:[%s322 + $0x28] sm:$0xff] %vm2483, %v2350
        %2490 = vst.msk [vmem:[%s322 + $0x30] sm:$0xff] %vm2483, %v2355
        %2491 = vst.msk [vmem:[%s322 + $0x38] sm:$0xff] %vm2483, %v2360
        %2492 = vst.msk [vmem:[%s322 + $0x40] sm:$0xff] %vm2483, %v2365
        %2493 = vst.msk [vmem:[%s322 + $0x48] sm:$0xff] %vm2483, %v2370
        %2494 = vst.msk [vmem:[%s322 + $0x50] sm:$0xff] %vm2483, %v2375
        %2495 = vst.msk [vmem:[%s322 + $0x58] sm:$0xff] %vm2483, %v2380
        %2496 = vst.msk [vmem:[%s322 + $0x60] sm:$0xff] %vm2483, %v2385
        %2497 = vst.msk [vmem:[%s322 + $0x68] sm:$0xff] %vm2483, %v2390
        %2498 = vst.msk [vmem:[%s322 + $0x70] sm:$0xff] %vm2483, %v2395
        %2499 = vst.msk [vmem:[%s322 + $0x78] sm:$0xff] %vm2483, %v2400
        %2500 = vst.msk [vmem:[%s322 + $0x80] sm:$0xff] %vm2483, %v2405
        %2501 = vst.msk [vmem:[%s322 + $0x88] sm:$0xff] %vm2483, %v2410
        %2502 = vst.msk [vmem:[%s322 + $0x90] sm:$0xff] %vm2483, %v2415
        %2503 = vst.msk [vmem:[%s322 + $0x98] sm:$0xff] %vm2483, %v2420
        %2504 = vst.msk [vmem:[%s322 + $0xa0] sm:$0xff] %vm2483, %v2425
        %2505 = vst.msk [vmem:[%s322 + $0xa8] sm:$0xff] %vm2483, %v2430
        %2506 = vst.msk [vmem:[%s322 + $0xb0] sm:$0xff] %vm2483, %v2435
        %2507 = vst.msk [vmem:[%s322 + $0xb8] sm:$0xff] %vm2483, %v2440
        %2508 = vst.msk [vmem:[%s322 + $0xc0] sm:$0xff] %vm2483, %v2445
        %2509 = vst.msk [vmem:[%s322 + $0xc8] sm:$0xff] %vm2483, %v2450
        %2510 = vst.msk [vmem:[%s322 + $0xd0] sm:$0xff] %vm2483, %v2455
        %2511 = vst.msk [vmem:[%s322 + $0xd8] sm:$0xff] %vm2483, %v2460
        %2512 = vst.msk [vmem:[%s322 + $0xe0] sm:$0xff] %vm2483, %v2465
        %2513 = vst.msk [vmem:[%s322 + $0xe8] sm:$0xff] %vm2483, %v2470
        %2514 = vst.msk [vmem:[%s322 + $0xf0] sm:$0xff] %vm2483, %v2475
        %2515 = vst.msk [vmem:[%s322 + $0xf8] sm:$0xff] %vm2483, %v2480
        %p2516 = scmp.lt.s32.totalorder %s20, 1
        %s2517 = scalar_select %p2516, %s20, 1
        %s2518 = smul.addr %s2517, 32
        %s2519 = smul.addr %s2518, 8
        %s2520 = scalar_lea.vmem %s7, %s2519
        // Predicated region
        $region61: #{tpu_custom_call.1} parent=47 // pred_check
          %p2521 = pneg %p190
        $region62: #{tpu_custom_call.1} parent=47 // pred_check_branch
          %2523 = sbr.rel (%p2521) target = $region64
        $region63: #{tpu_custom_call.1} parent=47 // pred_region
          _
        $region64: #{tpu_custom_call.1} parent=47 // pred_fallthru
          _
      $region48: #{tpu_custom_call.1} parent=5 // pred_fallthru
        _
      %p2524 = scmp.le.s32.totalorder 2, %s15
      // Predicated region
      $region65: #{tpu_custom_call.1} parent=5 // pred_check
        %p2525 = pneg %p2524
      $region66: #{tpu_custom_call.1} parent=5 // pred_check_branch
        %2527 = sbr.rel (%p2525) target = $region68
      $region67: #{tpu_custom_call.1} parent=5 // pred_region
        %s2528 = ssub.s32 %s15, 2
        // Predicated region
        $region69: #{tpu_custom_call.1} parent=67 // pred_check
          %p2529 = pneg %p196
        $region70: #{tpu_custom_call.1} parent=67 // pred_check_branch
          %2531 = sbr.rel (%p2529) target = $region72
        $region71: #{tpu_custom_call.1} parent=67 // pred_region
          %p2532 = scmp.lt.s32.totalorder %s21, 1
          %s2533 = scalar_select %p2532, %s21, 1
          %s2534 = smul.addr %s2533, 32
          %s2535 = smul.addr %s2534, 8
          %s2536 = scalar_lea.vmem %s7, %s2535
        $region72: #{tpu_custom_call.1} parent=67 // pred_fallthru
          _
      $region68: #{tpu_custom_call.1} parent=5 // pred_fallthru
        _
    $region6: #{tpu_custom_call.1} parent=1 // loop_footer
      %s19 = sadd.s32 1, %s15
    $region7: #{tpu_custom_call.1} parent=1 // loop_footer_branch
      %14 = sbr.rel target = $region3
    $region8: #{tpu_custom_call.1} parent=1 // loop_exit
      _
    %2537 = vsyncpa [#allocation3], 1
    %s2538 = scalar_lea.sflag [#allocation3], 1
    %2539 = vsyncpa %s2538, 1
    %2540 = vsyncpa [#allocation5], 1

</llo_original>
